<compile_context>
chip_gen: v5e
topology: v5e:2x2
jax: 0.10.0
libtpu: 0.0.40
codegen_flags: <defaults>
</compile_context>

<pallas_src>
import functools

import jax
import jax.numpy as jnp
from jax.experimental import pallas as pl
from jax.experimental.pallas import tpu as pltpu


# ---------------------------------------------------------------------------
# Pallas kernels
# ---------------------------------------------------------------------------
def _gemm_bias_relu_kernel(a_ref, w_ref, b_ref, o_ref):
    # a:[tm,K] bf16, w:[K,N] bf16, b:[1,N] f32 -> o:[tm,N] (relu, cast to o dtype)
    y = jnp.dot(a_ref[...], w_ref[...], preferred_element_type=jnp.float32)
    y = jnp.maximum(y + b_ref[...], 0.0)
    o_ref[...] = y.astype(o_ref.dtype)


def _branch_gemm_bias_relu_kernel(a_ref, w_ref, b_ref, o_ref):
    # Leading grid axis = branch (actor / critic). Blocks carry a size-1 lead dim.
    y = jnp.dot(a_ref[0], w_ref[0], preferred_element_type=jnp.float32)
    y = jnp.maximum(y + b_ref[0], 0.0)
    o_ref[0] = y.astype(o_ref.dtype)


def _branch_fc_head_kernel(x_ref, wfc_ref, bfc_ref, wh_ref, bh_ref, o_ref):
    # Fused: h = relu(x @ wfc + bfc); o = h @ wh + bh   (per branch)
    h = jnp.dot(x_ref[0], wfc_ref[0], preferred_element_type=jnp.float32)
    h = jnp.maximum(h + bfc_ref[0], 0.0)
    y = jnp.dot(h.astype(jnp.bfloat16), wh_ref[0],
                preferred_element_type=jnp.float32)
    o_ref[0] = y + bh_ref[0]


# ---------------------------------------------------------------------------
# pallas_call wrappers
# ---------------------------------------------------------------------------
def _conv1_pallas(patches, w, b):
    """patches:[M,K] bf16 (shared), w:[K,32] bf16 (conv1|conv4), b:[1,32] f32."""
    M, K = patches.shape
    N = w.shape[1]
    tm = M // 2  # M = B*400 -> tm = B*200, always a multiple of 8
    return pl.pallas_call(
        _gemm_bias_relu_kernel,
        out_shape=jax.ShapeDtypeStruct((M, N), jnp.bfloat16),
        grid=(2,),
        in_specs=[
            pl.BlockSpec((tm, K), lambda i: (i, 0)),
            pl.BlockSpec((K, N), lambda i: (0, 0)),
            pl.BlockSpec((1, N), lambda i: (0, 0)),
        ],
        out_specs=pl.BlockSpec((tm, N), lambda i: (i, 0)),
        compiler_params=pltpu.CompilerParams(dimension_semantics=("parallel",)),
    )(patches, w, b)


def _conv2_pallas(patches, w, b):
    """patches:[2,M,256] bf16, w:[2,256,32] bf16, b:[2,1,32] f32."""
    _, M, K = patches.shape
    N = w.shape[2]
    return pl.pallas_call(
        _branch_gemm_bias_relu_kernel,
        out_shape=jax.ShapeDtypeStruct((2, M, N), jnp.bfloat16),
        grid=(2,),
        in_specs=[
            pl.BlockSpec((1, M, K), lambda i: (i, 0, 0)),
            pl.BlockSpec((1, K, N), lambda i: (i, 0, 0)),
            pl.BlockSpec((1, 1, N), lambda i: (i, 0, 0)),
        ],
        out_specs=pl.BlockSpec((1, M, N), lambda i: (i, 0, 0)),
        compiler_params=pltpu.CompilerParams(dimension_semantics=("parallel",)),
    )(patches, w, b)


def _fc_head_pallas(x, wfc, bfc, wh, bh):
    """x:[2,B,2592] bf16, wfc:[2,2592,256] bf16, wh:[2,256,Nh] bf16 -> [2,B,Nh] f32."""
    _, B, K = x.shape
    H = wfc.shape[2]
    N = wh.shape[2]
    return pl.pallas_call(
        _branch_fc_head_kernel,
        out_shape=jax.ShapeDtypeStruct((2, B, N), jnp.float32),
        grid=(2,),
        in_specs=[
            pl.BlockSpec((1, B, K), lambda i: (i, 0, 0)),
            pl.BlockSpec((1, K, H), lambda i: (i, 0, 0)),
            pl.BlockSpec((1, 1, H), lambda i: (i, 0, 0)),
            pl.BlockSpec((1, H, N), lambda i: (i, 0, 0)),
            pl.BlockSpec((1, 1, N), lambda i: (i, 0, 0)),
        ],
        out_specs=pl.BlockSpec((1, B, N), lambda i: (i, 0, 0)),
        compiler_params=pltpu.CompilerParams(dimension_semantics=("parallel",)),
    )(x, wfc, bfc, wh, bh)


# ---------------------------------------------------------------------------
# Host-side im2col (pure data movement, NHWC, patch order = (C, kH, kW))
# ---------------------------------------------------------------------------
def _im2col_nhwc(x, k, s):
    B, H, W, C = x.shape
    OH = (H - k) // s + 1
    OW = (W - k) // s + 1
    rows = (jnp.arange(OH) * s)[:, None] + jnp.arange(k)[None, :]   # [OH, k]
    cols = (jnp.arange(OW) * s)[:, None] + jnp.arange(k)[None, :]   # [OW, k]
    # [B, OH, OW, k, k, C]
    p = x[:, rows[:, None, :, None], cols[None, :, None, :], :]
    p = jnp.transpose(p, (0, 1, 2, 5, 3, 4))                        # [B,OH,OW,C,k,k]
    return p.reshape(B * OH * OW, C * k * k), OH, OW


# ---------------------------------------------------------------------------
# Parameter init (mirrors init_weights: W ~ U(-0.01, 0.01), b = 0.01)
# ---------------------------------------------------------------------------
def init_params(key, no_frames, actions_n):
    def u(key, shape):
        return jax.random.uniform(key, shape, jnp.float32, -0.01, 0.01)

    keys = jax.random.split(key, 8)
    return {
        "conv1_w": u(keys[0], (16, no_frames, 8, 8)), "conv1_b": jnp.full((16,), 0.01, jnp.float32),
        "conv2_w": u(keys[1], (32, 16, 4, 4)),        "conv2_b": jnp.full((32,), 0.01, jnp.float32),
        "fc3_w":   u(keys[2], (256, 2592)),           "fc3_b":   jnp.full((256,), 0.01, jnp.float32),
        "conv4_w": u(keys[3], (16, no_frames, 8, 8)), "conv4_b": jnp.full((16,), 0.01, jnp.float32),
        "conv5_w": u(keys[4], (32, 16, 4, 4)),        "conv5_b": jnp.full((32,), 0.01, jnp.float32),
        "fc6_w":   u(keys[5], (256, 2592)),           "fc6_b":   jnp.full((256,), 0.01, jnp.float32),
        "actor_w": u(keys[6], (actions_n, 256)),      "actor_b": jnp.full((actions_n,), 0.01, jnp.float32),
        "critic_w": u(keys[7], (1, 256)),             "critic_b": jnp.full((1,), 0.01, jnp.float32),
    }


# ---------------------------------------------------------------------------
# One-time weight preparation: transpose / concat / permute / pad / cast bf16
# ---------------------------------------------------------------------------
def prepare_params(params):
    f32, bf16 = jnp.float32, jnp.bfloat16
    C = params["conv1_w"].shape[1]

    # Layer 1: concat actor/critic kernels along Cout -> single [C*64, 32] GEMM.
    w1 = jnp.concatenate([params["conv1_w"], params["conv4_w"]], axis=0)
    w1 = w1.reshape(32, C * 64).T.astype(bf16)                       # rows = (Cin,kh,kw)
    b1 = jnp.concatenate([params["conv1_b"], params["conv4_b"]])[None, :].astype(f32)

    # Layer 2: stack branches; rows = PyTorch (Cin, kh, kw) flatten.
    w2 = jnp.stack([params["conv2_w"].reshape(32, 256).T,
                    params["conv5_w"].reshape(32, 256).T]).astype(bf16)   # [2,256,32]
    b2 = jnp.stack([params["conv2_b"], params["conv5_b"]])[:, None, :].astype(f32)

    # FC: transpose + permute rows so the kernel consumes the NHWC (h,w,c)
    # flatten directly (absorbs PyTorch's NCHW .view(B,-1) ordering).
    def fc_perm(w):   # [256, 2592(c*81+h*9+w)] -> [2592(h*288+w*32+c), 256]
        return jnp.transpose(w.reshape(256, 32, 9, 9), (2, 3, 1, 0)).reshape(2592, 256)
    wfc = jnp.stack([fc_perm(params["fc3_w"]), fc_perm(params["fc6_w"])]).astype(bf16)
    bfc = jnp.stack([params["fc3_b"], params["fc6_b"]])[:, None, :].astype(f32)

    # Heads: actor (A cols) and critic (1 col) padded to a common small width.
    A = params["actor_w"].shape[0]
    Nh = max(8, ((A + 7) // 8) * 8)
    wa = jnp.zeros((256, Nh), f32).at[:, :A].set(params["actor_w"].T)
    wc = jnp.zeros((256, Nh), f32).at[:, :1].set(params["critic_w"].T)
    wh = jnp.stack([wa, wc]).astype(bf16)                                # [2,256,Nh]
    ba = jnp.zeros((Nh,), f32).at[:A].set(params["actor_b"])
    bc = jnp.zeros((Nh,), f32).at[:1].set(params["critic_b"])
    bh = jnp.stack([ba, bc])[:, None, :].astype(f32)                     # [2,1,Nh]

    return {"w1": w1, "b1": b1, "w2": w2, "b2": b2,
            "wfc": wfc, "bfc": bfc, "wh": wh, "bh": bh}


# ---------------------------------------------------------------------------
# Forward pass (returns (value, action_logits), like the PyTorch module)
# ---------------------------------------------------------------------------
def actor_critic_forward(prepped, x, *, actions_n):
    # x: [B, no_frames, 84, 84] NCHW (84x84 implied by Linear(2592, 256))
    B = x.shape[0]
    x_nhwc = jnp.transpose(x, (0, 2, 3, 1)).astype(jnp.bfloat16)

    # Layer 1: im2col once, shared by both branches; conv1+conv4 in one GEMM.
    p1, OH1, OW1 = _im2col_nhwc(x_nhwc, 8, 4)                 # [B*400, C*64]
    y1 = _conv1_pallas(p1, prepped["w1"], prepped["b1"])       # [B*400, 32] bf16
    y1 = y1.reshape(B, OH1, OW1, 32)                           # NHWC; [:16]=actor, [16:]=critic

    # Layer 2: per-branch im2col, branches stacked on a parallel grid axis.
    p2a, OH2, OW2 = _im2col_nhwc(y1[..., :16], 4, 2)           # [B*81, 256]
    p2c, _, _ = _im2col_nhwc(y1[..., 16:], 4, 2)
    p2 = jnp.stack([p2a, p2c])                                 # [2, B*81, 256] bf16
    y2 = _conv2_pallas(p2, prepped["w2"], prepped["b2"])       # [2, B*81, 32] bf16

    # fc (+ReLU) fused with actor/critic head; NHWC flatten, perm folded in wfc.
    flat = y2.reshape(2, B, OH2 * OW2 * 32)                    # [2, B, 2592]
    out = _fc_head_pallas(flat, prepped["wfc"], prepped["bfc"],
                          prepped["wh"], prepped["bh"])        # [2, B, Nh] f32

    action_logits = out[0, :, :actions_n]
    value = out[1, :, :1]
    return value, action_logits


# ---------------------------------------------------------------------------
if __name__ == "__main__":
    hyperparameters = {"no_frames_to_network": 4, "actions_n": 6}
    B = 2

    key = jax.random.PRNGKey(0)
    pkey, xkey = jax.random.split(key)
    params = init_params(pkey, hyperparameters["no_frames_to_network"],
                         hyperparameters["actions_n"])
    prepped = prepare_params(params)   # one-time weight prep, outside the forward

    # Input must be 84x84 so that 32*9*9 == 2592 (Atari convention).
    x = jax.random.uniform(
        xkey,
        (B, hyperparameters["no_frames_to_network"], 84, 84),
        jnp.float32, 0.0, 1.0,
    )

    fwd = jax.jit(functools.partial(actor_critic_forward,
                                    actions_n=hyperparameters["actions_n"]))
    value, action_logits = fwd(prepped, x)
    jax.block_until_ready((value, action_logits))

    assert value.shape == (B, 1)
    assert action_logits.shape == (B, hyperparameters["actions_n"])
    print("KERNEL_OK")
</pallas_src>

<mosaic_0001>
module attributes {stable_mosaic.version = 11 : i64} {
  func.func @_gemm_bias_relu_kernel(%arg0: i32, %arg1: memref<400x256xbf16, #tpu.memory_space<vmem>>, %arg2: memref<256x32xbf16, #tpu.memory_space<vmem>>, %arg3: memref<1x32xf32, #tpu.memory_space<vmem>>, %arg4: memref<400x32xbf16, #tpu.memory_space<vmem>>) attributes {dimension_semantics = [#tpu.dimension_semantics<parallel>], iteration_bounds = array<i64: 2>, scalar_prefetch = 0 : i64, scratch_operands = 0 : i64, tpu.core_type = #tpu.core_type<tc>, window_params = [{transform_indices = @transform_0, window_bounds = array<i64: 400, 256>}, {pipeline_mode = #tpu.pipeline_mode<synchronous>, transform_indices = @transform_1, window_bounds = array<i64: 256, 32>}, {pipeline_mode = #tpu.pipeline_mode<synchronous>, transform_indices = @transform_2, window_bounds = array<i64: 1, 32>}, {transform_indices = @transform_3, window_bounds = array<i64: 400, 32>}]} {
    %c0 = arith.constant 0 : index
    %c0_0 = arith.constant 0 : index
    %0 = vector.load %arg1[%c0, %c0_0] : memref<400x256xbf16, #tpu.memory_space<vmem>>, vector<400x256xbf16>
    %c0_1 = arith.constant 0 : index
    %c0_2 = arith.constant 0 : index
    %1 = vector.load %arg2[%c0_1, %c0_2] : memref<256x32xbf16, #tpu.memory_space<vmem>>, vector<256x32xbf16>
    %cst = arith.constant dense<0.000000e+00> : vector<400x32xf32>
    %2 = tpu.matmul %0, %1, %cst {dimension_numbers = #tpu.dot_dimension_numbers<[1], [0], [0], [1], [0, 0, 1, 1], [], []>} : vector<400x256xbf16>, vector<256x32xbf16>, vector<400x32xf32> -> vector<400x32xf32>
    %c0_3 = arith.constant 0 : index
    %c0_4 = arith.constant 0 : index
    %3 = vector.load %arg3[%c0_3, %c0_4] : memref<1x32xf32, #tpu.memory_space<vmem>>, vector<1x32xf32>
    %4 = vector.broadcast %3 : vector<1x32xf32> to vector<400x32xf32>
    %5 = arith.addf %2, %4 : vector<400x32xf32>
    %cst_5 = arith.constant 0.000000e+00 : f32
    %6 = vector.broadcast %cst_5 : f32 to vector<400x32xf32>
    %7 = arith.maximumf %5, %6 : vector<400x32xf32>
    %8 = arith.truncf %7 : vector<400x32xf32> to vector<400x32xbf16>
    %c0_6 = arith.constant 0 : index
    %c0_7 = arith.constant 0 : index
    %9 = vector.load %arg4[%c0_6, %c0_7] : memref<400x32xbf16, #tpu.memory_space<vmem>>, vector<400x32xbf16>
    tpu.vector_store %arg4[%c0_6, %c0_7], %8 {strides = array<i32>} : memref<400x32xbf16, #tpu.memory_space<vmem>>, vector<400x32xbf16>,
    return
  }
  func.func @transform_0(%arg0: i32) -> (i32, i32) {
    %c0_i32 = arith.constant 0 : i32
    %c0_i32_0 = arith.constant 0 : i32
    return %arg0, %c0_i32 : i32, i32
  }
  func.func @transform_1(%arg0: i32) -> (i32, i32) {
    %c0_i32 = arith.constant 0 : i32
    %c0_i32_0 = arith.constant 0 : i32
    %c0_i32_1 = arith.constant 0 : i32
    return %c0_i32, %c0_i32_0 : i32, i32
  }
  func.func @transform_2(%arg0: i32) -> (i32, i32) {
    %c0_i32 = arith.constant 0 : i32
    %c0_i32_0 = arith.constant 0 : i32
    %c0_i32_1 = arith.constant 0 : i32
    return %c0_i32, %c0_i32_0 : i32, i32
  }
  func.func @transform_3(%arg0: i32) -> (i32, i32) {
    %c0_i32 = arith.constant 0 : i32
    %c0_i32_0 = arith.constant 0 : i32
    return %arg0, %c0_i32 : i32, i32
  }
}

module attributes {stable_mosaic.version = 11 : i64} {
  func.func @_branch_gemm_bias_relu_kernel(%arg0: i32, %arg1: memref<1x162x256xbf16, #tpu.memory_space<vmem>>, %arg2: memref<1x256x32xbf16, #tpu.memory_space<vmem>>, %arg3: memref<1x1x32xf32, #tpu.memory_space<vmem>>, %arg4: memref<1x162x32xbf16, #tpu.memory_space<vmem>>) attributes {dimension_semantics = [#tpu.dimension_semantics<parallel>], iteration_bounds = array<i64: 2>, scalar_prefetch = 0 : i64, scratch_operands = 0 : i64, tpu.core_type = #tpu.core_type<tc>, window_params = [{transform_indices = @transform_0, window_bounds = array<i64: 1, 162, 256>}, {transform_indices = @transform_1, window_bounds = array<i64: 1, 256, 32>}, {transform_indices = @transform_2, window_bounds = array<i64: 1, 1, 32>}, {transform_indices = @transform_3, window_bounds = array<i64: 1, 162, 32>}]} {
    %c0 = arith.constant 0 : index
    %c0_0 = arith.constant 0 : index
    %c0_1 = arith.constant 0 : index
    %0 = vector.load %arg1[%c0, %c0_0, %c0_1] : memref<1x162x256xbf16, #tpu.memory_space<vmem>>, vector<1x162x256xbf16>
    %1 = vector.shape_cast %0 : vector<1x162x256xbf16> to vector<162x256xbf16>
    %c0_2 = arith.constant 0 : index
    %c0_3 = arith.constant 0 : index
    %c0_4 = arith.constant 0 : index
    %2 = vector.load %arg2[%c0_2, %c0_3, %c0_4] : memref<1x256x32xbf16, #tpu.memory_space<vmem>>, vector<1x256x32xbf16>
    %3 = vector.shape_cast %2 : vector<1x256x32xbf16> to vector<256x32xbf16>
    %cst = arith.constant dense<0.000000e+00> : vector<162x32xf32>
    %4 = tpu.matmul %1, %3, %cst {dimension_numbers = #tpu.dot_dimension_numbers<[1], [0], [0], [1], [0, 0, 1, 1], [], []>} : vector<162x256xbf16>, vector<256x32xbf16>, vector<162x32xf32> -> vector<162x32xf32>
    %c0_5 = arith.constant 0 : index
    %c0_6 = arith.constant 0 : index
    %c0_7 = arith.constant 0 : index
    %5 = vector.load %arg3[%c0_5, %c0_6, %c0_7] : memref<1x1x32xf32, #tpu.memory_space<vmem>>, vector<1x1x32xf32>
    %6 = vector.shape_cast %5 : vector<1x1x32xf32> to vector<1x32xf32>
    %7 = vector.broadcast %6 : vector<1x32xf32> to vector<162x32xf32>
    %8 = arith.addf %4, %7 : vector<162x32xf32>
    %cst_8 = arith.constant 0.000000e+00 : f32
    %9 = vector.broadcast %cst_8 : f32 to vector<162x32xf32>
    %10 = arith.maximumf %8, %9 : vector<162x32xf32>
    %11 = arith.truncf %10 : vector<162x32xf32> to vector<162x32xbf16>
    %c0_9 = arith.constant 0 : index
    %c0_10 = arith.constant 0 : index
    %c0_11 = arith.constant 0 : index
    %12 = vector.load %arg4[%c0_9, %c0_10, %c0_11] : memref<1x162x32xbf16, #tpu.memory_space<vmem>>, vector<1x162x32xbf16>
    %13 = vector.shape_cast %12 : vector<1x162x32xbf16> to vector<162x32xbf16>
    %14 = vector.shape_cast %11 : vector<162x32xbf16> to vector<1x162x32xbf16>
    tpu.vector_store %arg4[%c0_9, %c0_10, %c0_11], %14 {strides = array<i32>} : memref<1x162x32xbf16, #tpu.memory_space<vmem>>, vector<1x162x32xbf16>,
    return
  }
  func.func @transform_0(%arg0: i32) -> (i32, i32, i32) {
    %c0_i32 = arith.constant 0 : i32
    %c0_i32_0 = arith.constant 0 : i32
    %c0_i32_1 = arith.constant 0 : i32
    return %arg0, %c0_i32, %c0_i32_0 : i32, i32, i32
  }
  func.func @transform_1(%arg0: i32) -> (i32, i32, i32) {
    %c0_i32 = arith.constant 0 : i32
    %c0_i32_0 = arith.constant 0 : i32
    %c0_i32_1 = arith.constant 0 : i32
    return %arg0, %c0_i32, %c0_i32_0 : i32, i32, i32
  }
  func.func @transform_2(%arg0: i32) -> (i32, i32, i32) {
    %c0_i32 = arith.constant 0 : i32
    %c0_i32_0 = arith.constant 0 : i32
    %c0_i32_1 = arith.constant 0 : i32
    return %arg0, %c0_i32, %c0_i32_0 : i32, i32, i32
  }
  func.func @transform_3(%arg0: i32) -> (i32, i32, i32) {
    %c0_i32 = arith.constant 0 : i32
    %c0_i32_0 = arith.constant 0 : i32
    %c0_i32_1 = arith.constant 0 : i32
    return %arg0, %c0_i32, %c0_i32_0 : i32, i32, i32
  }
}

module attributes {stable_mosaic.version = 11 : i64} {
  func.func @_branch_fc_head_kernel(%arg0: i32, %arg1: memref<1x2x2592xbf16, #tpu.memory_space<vmem>>, %arg2: memref<1x2592x256xbf16, #tpu.memory_space<vmem>>, %arg3: memref<1x1x256xf32, #tpu.memory_space<vmem>>, %arg4: memref<1x256x8xbf16, #tpu.memory_space<vmem>>, %arg5: memref<1x1x8xf32, #tpu.memory_space<vmem>>, %arg6: memref<1x2x8xf32, #tpu.memory_space<vmem>>) attributes {dimension_semantics = [#tpu.dimension_semantics<parallel>], iteration_bounds = array<i64: 2>, scalar_prefetch = 0 : i64, scratch_operands = 0 : i64, tpu.core_type = #tpu.core_type<tc>, window_params = [{transform_indices = @transform_0, window_bounds = array<i64: 1, 2, 2592>}, {transform_indices = @transform_1, window_bounds = array<i64: 1, 2592, 256>}, {transform_indices = @transform_2, window_bounds = array<i64: 1, 1, 256>}, {transform_indices = @transform_3, window_bounds = array<i64: 1, 256, 8>}, {transform_indices = @transform_4, window_bounds = array<i64: 1, 1, 8>}, {transform_indices = @transform_5, window_bounds = array<i64: 1, 2, 8>}]} {
    %c0 = arith.constant 0 : index
    %c0_0 = arith.constant 0 : index
    %c0_1 = arith.constant 0 : index
    %0 = vector.load %arg1[%c0, %c0_0, %c0_1] : memref<1x2x2592xbf16, #tpu.memory_space<vmem>>, vector<1x2x2592xbf16>
    %1 = vector.shape_cast %0 : vector<1x2x2592xbf16> to vector<2x2592xbf16>
    %c0_2 = arith.constant 0 : index
    %c0_3 = arith.constant 0 : index
    %c0_4 = arith.constant 0 : index
    %2 = vector.load %arg2[%c0_2, %c0_3, %c0_4] : memref<1x2592x256xbf16, #tpu.memory_space<vmem>>, vector<1x2592x256xbf16>
    %3 = vector.shape_cast %2 : vector<1x2592x256xbf16> to vector<2592x256xbf16>
    %cst = arith.constant dense<0.000000e+00> : vector<2x256xf32>
    %4 = tpu.matmul %1, %3, %cst {dimension_numbers = #tpu.dot_dimension_numbers<[1], [0], [0], [1], [0, 0, 1, 1], [], []>} : vector<2x2592xbf16>, vector<2592x256xbf16>, vector<2x256xf32> -> vector<2x256xf32>
    %c0_5 = arith.constant 0 : index
    %c0_6 = arith.constant 0 : index
    %c0_7 = arith.constant 0 : index
    %5 = vector.load %arg3[%c0_5, %c0_6, %c0_7] : memref<1x1x256xf32, #tpu.memory_space<vmem>>, vector<1x1x256xf32>
    %6 = vector.shape_cast %5 : vector<1x1x256xf32> to vector<1x256xf32>
    %7 = vector.broadcast %6 : vector<1x256xf32> to vector<2x256xf32>
    %8 = arith.addf %4, %7 : vector<2x256xf32>
    %cst_8 = arith.constant 0.000000e+00 : f32
    %9 = vector.broadcast %cst_8 : f32 to vector<2x256xf32>
    %10 = arith.maximumf %8, %9 : vector<2x256xf32>
    %11 = arith.truncf %10 : vector<2x256xf32> to vector<2x256xbf16>
    %c0_9 = arith.constant 0 : index
    %c0_10 = arith.constant 0 : index
    %c0_11 = arith.constant 0 : index
    %12 = vector.load %arg4[%c0_9, %c0_10, %c0_11] : memref<1x256x8xbf16, #tpu.memory_space<vmem>>, vector<1x256x8xbf16>
    %13 = vector.shape_cast %12 : vector<1x256x8xbf16> to vector<256x8xbf16>
    %cst_12 = arith.constant dense<0.000000e+00> : vector<2x8xf32>
    %14 = tpu.matmul %11, %13, %cst_12 {dimension_numbers = #tpu.dot_dimension_numbers<[1], [0], [0], [1], [0, 0, 1, 1], [], []>} : vector<2x256xbf16>, vector<256x8xbf16>, vector<2x8xf32> -> vector<2x8xf32>
    %c0_13 = arith.constant 0 : index
    %c0_14 = arith.constant 0 : index
    %c0_15 = arith.constant 0 : index
    %15 = vector.load %arg5[%c0_13, %c0_14, %c0_15] : memref<1x1x8xf32, #tpu.memory_space<vmem>>, vector<1x1x8xf32>
    %16 = vector.shape_cast %15 : vector<1x1x8xf32> to vector<1x8xf32>
    %17 = vector.broadcast %16 : vector<1x8xf32> to vector<2x8xf32>
    %18 = arith.addf %14, %17 : vector<2x8xf32>
    %c0_16 = arith.constant 0 : index
    %c0_17 = arith.constant 0 : index
    %c0_18 = arith.constant 0 : index
    %19 = vector.load %arg6[%c0_16, %c0_17, %c0_18] : memref<1x2x8xf32, #tpu.memory_space<vmem>>, vector<1x2x8xf32>
    %20 = vector.shape_cast %19 : vector<1x2x8xf32> to vector<2x8xf32>
    %21 = vector.shape_cast %18 : vector<2x8xf32> to vector<1x2x8xf32>
    tpu.vector_store %arg6[%c0_16, %c0_17, %c0_18], %21 {strides = array<i32>} : memref<1x2x8xf32, #tpu.memory_space<vmem>>, vector<1x2x8xf32>,
    return
  }
  func.func @transform_0(%arg0: i32) -> (i32, i32, i32) {
    %c0_i32 = arith.constant 0 : i32
    %c0_i32_0 = arith.constant 0 : i32
    %c0_i32_1 = arith.constant 0 : i32
    return %arg0, %c0_i32, %c0_i32_0 : i32, i32, i32
  }
  func.func @transform_1(%arg0: i32) -> (i32, i32, i32) {
    %c0_i32 = arith.constant 0 : i32
    %c0_i32_0 = arith.constant 0 : i32
    %c0_i32_1 = arith.constant 0 : i32
    return %arg0, %c0_i32, %c0_i32_0 : i32, i32, i32
  }
  func.func @transform_2(%arg0: i32) -> (i32, i32, i32) {
    %c0_i32 = arith.constant 0 : i32
    %c0_i32_0 = arith.constant 0 : i32
    %c0_i32_1 = arith.constant 0 : i32
    return %arg0, %c0_i32, %c0_i32_0 : i32, i32, i32
  }
  func.func @transform_3(%arg0: i32) -> (i32, i32, i32) {
    %c0_i32 = arith.constant 0 : i32
    %c0_i32_0 = arith.constant 0 : i32
    %c0_i32_1 = arith.constant 0 : i32
    return %arg0, %c0_i32, %c0_i32_0 : i32, i32, i32
  }
  func.func @transform_4(%arg0: i32) -> (i32, i32, i32) {
    %c0_i32 = arith.constant 0 : i32
    %c0_i32_0 = arith.constant 0 : i32
    %c0_i32_1 = arith.constant 0 : i32
    return %arg0, %c0_i32, %c0_i32_0 : i32, i32, i32
  }
  func.func @transform_5(%arg0: i32) -> (i32, i32, i32) {
    %c0_i32 = arith.constant 0 : i32
    %c0_i32_0 = arith.constant 0 : i32
    %c0_i32_1 = arith.constant 0 : i32
    return %arg0, %c0_i32, %c0_i32_0 : i32, i32, i32
  }
}

</mosaic_0001>

<llo_original>
// kernel: actor_critic_forward.3
$region0: #{actor_critic_forward.3}
  #allocation0 [shape = 'u32[]', space=smem, size = 0x4, offset = 0x4, fixed_abs, tag = 'smem constant byte address 0x4 - core index']
  #allocation1 [shape = 'u32[72,128]{1,0:T(1,128)}', space=vmem, size = 0x9000, scoped, tag = 'internal scratch']
  %s0 = inlined_call_operand.vmem [shape: bf16[800,256], index: 0, kind: input, shape index: {}]
  %s1 = inlined_call_operand.vmem [shape: bf16[256,32], index: 1, kind: input, shape index: {}]
  %s2 = inlined_call_operand.vmem [shape: f32[1,32], index: 2, kind: input, shape index: {}]
  %s3 = inlined_call_operand.vmem [shape: bf16[800,32], index: 3, kind: output, shape index: {}]
  %s4 = sld [smem:[#allocation0]]
  $region45: #{actor_critic_forward.3} parent=0
    _
  %s6 = ssub.s32 1, %s4
  %s7 = scalar_select 0, %s6, %s4
  loop: start=0, step=1, limit=4
  $region2: #{actor_critic_forward.3} parent=0 // loop_pre_header
    _
  $region3: #{actor_critic_forward.3} parent=0 // loop_header
    %s9 = sphi 0, %s13
    %p10 = scmp.ge.s32.totalorder %s9, 4
    %s19 = sphi 0, %s21
    %s22 = sphi 0, %s19
    %s23 = sphi 0, %s22
    %s39 = sphi 0, %s23
    %s43 = sphi 0, %s43
    %s45 = sphi 0, %s43
    %s46 = sphi 0, %s45
    %s60 = sphi 0, %s46
    %s64 = sphi 0, %s64
    %s66 = sphi 0, %s64
    %s67 = sphi 0, %s66
    %s81 = sphi 0, %s67
    %s87 = sphi 0, %s89
    %s90 = sphi 0, %s87
    %s91 = sphi 0, %s90
    %s107 = sphi 0, %s91
  $region4: #{actor_critic_forward.3} parent=0 // loop_header_branch
    %12 = sbr.rel (%p10) target = $region8
  $region5: #{actor_critic_forward.3} parent=0 // loop_body
    %s14 = ssub.s32 %s9, 1
    %s15 = ssub.s32 %s9, 2
    %s16 = sadd.s32 %s9, 1
    %s17 = ssub.s32 %s9, %s16
    %p18 = scmp.eq.s32.totalorder %s17, 0
    %s20 = sadd.s32 %s19, 1
    %s21 = scalar_select %p18, %s19, %s20
    %p24 = pneg %p18
    %p25 = scmp.eq.s32.totalorder %s9, 1
    %p26 = por %p24, %p25
    %p27 = scmp.ne.s32.totalorder %s19, %s22
    %p28 = scmp.eq.s32.totalorder %s9, 0
    %p29 = por %p27, %p28
    %p30 = scmp.ne.s32.totalorder %s19, %s22
    %p31 = scmp.eq.s32.totalorder %s14, 1
    %p32 = por %p30, %p31
    %p33 = scmp.ne.s32.totalorder %s22, %s23
    %p34 = scmp.eq.s32.totalorder %s14, 0
    %p35 = por %p33, %p34
    %p36 = scmp.ne.s32.totalorder %s22, %s23
    %p37 = scmp.eq.s32.totalorder %s15, 1
    %p38 = por %p36, %p37
    %p40 = scmp.ne.s32.totalorder %s23, %s39
    %p41 = scmp.eq.s32.totalorder %s15, 0
    %p42 = por %p40, %p41
    %s44 = sadd.s32 %s43, 1
    %p47 = scmp.eq.s32.totalorder %s9, 1
    %p48 = scmp.ne.s32.totalorder %s43, %s45
    %p49 = scmp.eq.s32.totalorder %s9, 0
    %p50 = por %p48, %p49
    %p51 = scmp.ne.s32.totalorder %s43, %s45
    %p52 = scmp.eq.s32.totalorder %s14, 1
    %p53 = por %p51, %p52
    %p54 = scmp.ne.s32.totalorder %s45, %s46
    %p55 = scmp.eq.s32.totalorder %s14, 0
    %p56 = por %p54, %p55
    %p57 = scmp.ne.s32.totalorder %s45, %s46
    %p58 = scmp.eq.s32.totalorder %s15, 1
    %p59 = por %p57, %p58
    %p61 = scmp.ne.s32.totalorder %s46, %s60
    %p62 = scmp.eq.s32.totalorder %s15, 0
    %p63 = por %p61, %p62
    %s65 = sadd.s32 %s64, 1
    %p68 = scmp.eq.s32.totalorder %s9, 1
    %p69 = scmp.ne.s32.totalorder %s64, %s66
    %p70 = scmp.eq.s32.totalorder %s9, 0
    %p71 = por %p69, %p70
    %p72 = scmp.ne.s32.totalorder %s64, %s66
    %p73 = scmp.eq.s32.totalorder %s14, 1
    %p74 = por %p72, %p73
    %p75 = scmp.ne.s32.totalorder %s66, %s67
    %p76 = scmp.eq.s32.totalorder %s14, 0
    %p77 = por %p75, %p76
    %p78 = scmp.ne.s32.totalorder %s66, %s67
    %p79 = scmp.eq.s32.totalorder %s15, 1
    %p80 = por %p78, %p79
    %p82 = scmp.ne.s32.totalorder %s67, %s81
    %p83 = scmp.eq.s32.totalorder %s15, 0
    %p84 = por %p82, %p83
    %s85 = ssub.s32 %s9, %s16
    %p86 = scmp.eq.s32.totalorder %s85, 0
    %s88 = sadd.s32 %s87, 1
    %s89 = scalar_select %p86, %s87, %s88
    %p92 = pneg %p86
    %p93 = scmp.eq.s32.totalorder %s9, 1
    %p94 = por %p92, %p93
    %p95 = scmp.ne.s32.totalorder %s87, %s90
    %p96 = scmp.eq.s32.totalorder %s9, 0
    %p97 = por %p95, %p96
    %p98 = scmp.ne.s32.totalorder %s87, %s90
    %p99 = scmp.eq.s32.totalorder %s14, 1
    %p100 = por %p98, %p99
    %p101 = scmp.ne.s32.totalorder %s90, %s91
    %p102 = scmp.eq.s32.totalorder %s14, 0
    %p103 = por %p101, %p102
    %p104 = scmp.ne.s32.totalorder %s90, %s91
    %p105 = scmp.eq.s32.totalorder %s15, 1
    %p106 = por %p104, %p105
    %p108 = scmp.ne.s32.totalorder %s91, %s107
    %p109 = scmp.eq.s32.totalorder %s15, 0
    %p110 = por %p108, %p109
    %p111 = scmp.le.s32.totalorder 1, %s9
    %p112 = scmp.lt.s32.totalorder %s9, 3
    %p113 = pnand %p111, %p112
    %p114 = pneg %p113
    // Predicated region
    $region9: #{actor_critic_forward.3} parent=5 // pred_check
      _
    $region10: #{actor_critic_forward.3} parent=5 // pred_check_branch
      %116 = sbr.rel (%p113) target = $region12
    $region11: #{actor_critic_forward.3} parent=5 // pred_region
      %s117 = ssub.s32 %s9, 1
      // Predicated region
      $region13: #{actor_critic_forward.3} parent=11 // pred_check
        %p118 = pneg %p56
      $region14: #{actor_critic_forward.3} parent=11 // pred_check_branch
        %120 = sbr.rel (%p118) target = $region16
      $region15: #{actor_critic_forward.3} parent=11 // pred_region
        _
      $region16: #{actor_critic_forward.3} parent=11 // pred_fallthru
        _
      // Predicated region
      $region17: #{actor_critic_forward.3} parent=11 // pred_check
        %p121 = pneg %p77
      $region18: #{actor_critic_forward.3} parent=11 // pred_check_branch
        %123 = sbr.rel (%p121) target = $region20
      $region19: #{actor_critic_forward.3} parent=11 // pred_region
        _
      $region20: #{actor_critic_forward.3} parent=11 // pred_fallthru
        _
    $region12: #{actor_critic_forward.3} parent=5 // pred_fallthru
      _
    %p124 = scmp.lt.s32.totalorder %s9, 2
    // Predicated region
    $region21: #{actor_critic_forward.3} parent=5 // pred_check
      %p125 = pneg %p124
    $region22: #{actor_critic_forward.3} parent=5 // pred_check_branch
      %127 = sbr.rel (%p125) target = $region24
    $region23: #{actor_critic_forward.3} parent=5 // pred_region
      // Predicated region
      $region25: #{actor_critic_forward.3} parent=23 // pred_check
        %p128 = pneg %p29
      $region26: #{actor_critic_forward.3} parent=23 // pred_check_branch
        %130 = sbr.rel (%p128) target = $region28
      $region27: #{actor_critic_forward.3} parent=23 // pred_region
        %s131 = smul.u32 50, %s9
        %p132 = scmp.lt.s32.totalorder %s131, 99
        %s133 = scalar_select %p132, %s131, 99
        %s134 = smul.addr %s133, 2
        %s135 = smul.addr %s134, 4
        %s136 = scalar_lea.vmem %s0, %s135
        %s137 = smul.u32 50, %s9
      $region28: #{actor_critic_forward.3} parent=23 // pred_fallthru
        _
    $region24: #{actor_critic_forward.3} parent=5 // pred_fallthru
      _
    %p138 = scmp.le.s32.totalorder 1, %s9
    %p139 = scmp.lt.s32.totalorder %s9, 3
    %p140 = pnand %p138, %p139
    %p141 = pneg %p140
    // Predicated region
    $region29: #{actor_critic_forward.3} parent=5 // pred_check
      _
    $region30: #{actor_critic_forward.3} parent=5 // pred_check_branch
      %143 = sbr.rel (%p140) target = $region32
    $region31: #{actor_critic_forward.3} parent=5 // pred_region
      %s144 = ssub.s32 %s9, 1
      %s145 = smul.u32 50, %s14
      %p146 = scmp.lt.s32.totalorder %s145, 99
      %s147 = scalar_select %p146, %s145, 99
      %s148 = smul.addr %s147, 2
      %s149 = smul.addr %s148, 4
      %s150 = scalar_lea.vmem %s0, %s149
      %p151 = pneg %p35
      %p152 = pneg %p32
      %p153 = pneg %p56
      %p154 = pneg %p53
      %p155 = pneg %p77
      %p156 = pneg %p74
      %p157 = pneg %p103
      %p158 = pneg %p100
      %s159 = smul.u32 50, %s14
      %p160 = scmp.lt.s32.totalorder %s159, 99
      %s161 = scalar_select %p160, %s159, 99
      %s162 = smul.addr %s161, 4
      %s163 = scalar_lea.vmem %s3, %s162
      %s164 = smul.u32 50, %s14
      %p165 = scmp.lt.s32.totalorder %s164, 99
      %s166 = scalar_select %p165, %s164, 99
      %s167 = smul.addr %s166, 2
      %s168 = smul.addr %s167, 4
      %s169 = scalar_lea.vmem %s0, %s168
      %s170 = smul.u32 50, %s14
      %s171 = smul.u32 50, %s14
      %p172 = scmp.lt.s32.totalorder %s171, 99
      %s173 = scalar_select %p172, %s171, 99
      %s174 = smul.addr %s173, 4
      %s175 = scalar_lea.vmem %s3, %s174
      %s176 = smul.u32 50, %s14
      %v177 = vld [vmem:[%s169] sm:$0xff]
      %v178 = vld [vmem:[%s169 + $0x8] sm:$0xff]
      %v179 = vld [vmem:[%s169 + $0x10] sm:$0xff]
      %v180 = vld [vmem:[%s169 + $0x18] sm:$0xff]
      %v181 = vld [vmem:[%s169 + $0x20] sm:$0xff]
      %v182 = vld [vmem:[%s169 + $0x28] sm:$0xff]
      %v183 = vld [vmem:[%s169 + $0x30] sm:$0xff]
      %v184 = vld [vmem:[%s169 + $0x38] sm:$0xff]
      %v185 = vld [vmem:[%s169 + $0x40] sm:$0xff]
      %v186 = vld [vmem:[%s169 + $0x48] sm:$0xff]
      %v187 = vld [vmem:[%s169 + $0x50] sm:$0xff]
      %v188 = vld [vmem:[%s169 + $0x58] sm:$0xff]
      %v189 = vld [vmem:[%s169 + $0x60] sm:$0xff]
      %v190 = vld [vmem:[%s169 + $0x68] sm:$0xff]
      %v191 = vld [vmem:[%s169 + $0x70] sm:$0xff]
      %v192 = vld [vmem:[%s169 + $0x78] sm:$0xff]
      %v193 = vld [vmem:[%s169 + $0x80] sm:$0xff]
      %v194 = vld [vmem:[%s169 + $0x88] sm:$0xff]
      %v195 = vld [vmem:[%s169 + $0x90] sm:$0xff]
      %v196 = vld [vmem:[%s169 + $0x98] sm:$0xff]
      %v197 = vld [vmem:[%s169 + $0xa0] sm:$0xff]
      %v198 = vld [vmem:[%s169 + $0xa8] sm:$0xff]
      %v199 = vld [vmem:[%s169 + $0xb0] sm:$0xff]
      %v200 = vld [vmem:[%s169 + $0xb8] sm:$0xff]
      %v201 = vld [vmem:[%s169 + $0xc0] sm:$0xff]
      %v202 = vld [vmem:[%s169 + $0xc8] sm:$0xff]
      %v203 = vld [vmem:[%s169 + $0xd0] sm:$0xff]
      %v204 = vld [vmem:[%s169 + $0xd8] sm:$0xff]
      %v205 = vld [vmem:[%s169 + $0xe0] sm:$0xff]
      %v206 = vld [vmem:[%s169 + $0xe8] sm:$0xff]
      %v207 = vld [vmem:[%s169 + $0xf0] sm:$0xff]
      %v208 = vld [vmem:[%s169 + $0xf8] sm:$0xff]
      %v209 = vld [vmem:[%s169 + $0x100] sm:$0xff]
      %v210 = vld [vmem:[%s169 + $0x108] sm:$0xff]
      %v211 = vld [vmem:[%s169 + $0x110] sm:$0xff]
      %v212 = vld [vmem:[%s169 + $0x118] sm:$0xff]
      %v213 = vld [vmem:[%s169 + $0x120] sm:$0xff]
      %v214 = vld [vmem:[%s169 + $0x128] sm:$0xff]
      %v215 = vld [vmem:[%s169 + $0x130] sm:$0xff]
      %v216 = vld [vmem:[%s169 + $0x138] sm:$0xff]
      %v217 = vld [vmem:[%s169 + $0x140] sm:$0xff]
      %v218 = vld [vmem:[%s169 + $0x148] sm:$0xff]
      %v219 = vld [vmem:[%s169 + $0x150] sm:$0xff]
      %v220 = vld [vmem:[%s169 + $0x158] sm:$0xff]
      %v221 = vld [vmem:[%s169 + $0x160] sm:$0xff]
      %v222 = vld [vmem:[%s169 + $0x168] sm:$0xff]
      %v223 = vld [vmem:[%s169 + $0x170] sm:$0xff]
      %v224 = vld [vmem:[%s169 + $0x178] sm:$0xff]
      %v225 = vld [vmem:[%s169 + $0x180] sm:$0xff]
      %v226 = vld [vmem:[%s169 + $0x188] sm:$0xff]
      %v227 = vld [vmem:[%s1] sm:$0xf]
      %v228 = vld [vmem:[%s1 + $0x4] sm:$0xf]
      %v229 = vld [vmem:[%s1 + $0x8] sm:$0xf]
      %v230 = vld [vmem:[%s1 + $0xc] sm:$0xf]
      %v231 = vld [vmem:[%s1 + $0x10] sm:$0xf]
      %v232 = vld [vmem:[%s1 + $0x14] sm:$0xf]
      %v233 = vld [vmem:[%s1 + $0x18] sm:$0xf]
      %v234 = vld [vmem:[%s1 + $0x1c] sm:$0xf]
      %v235 = vld [vmem:[%s1 + $0x20] sm:$0xf]
      %v236 = vld [vmem:[%s1 + $0x24] sm:$0xf]
      %v237 = vld [vmem:[%s1 + $0x28] sm:$0xf]
      %v238 = vld [vmem:[%s1 + $0x2c] sm:$0xf]
      %v239 = vld [vmem:[%s1 + $0x30] sm:$0xf]
      %v240 = vld [vmem:[%s1 + $0x34] sm:$0xf]
      %v241 = vld [vmem:[%s1 + $0x38] sm:$0xf]
      %v242 = vld [vmem:[%s1 + $0x3c] sm:$0xf]
      %v243 = vld [vmem:[%s1 + $0x40] sm:$0xf]
      %v244 = vld [vmem:[%s1 + $0x44] sm:$0xf]
      %v245 = vld [vmem:[%s1 + $0x48] sm:$0xf]
      %v246 = vld [vmem:[%s1 + $0x4c] sm:$0xf]
      %v247 = vld [vmem:[%s1 + $0x50] sm:$0xf]
      %v248 = vld [vmem:[%s1 + $0x54] sm:$0xf]
      %v249 = vld [vmem:[%s1 + $0x58] sm:$0xf]
      %v250 = vld [vmem:[%s1 + $0x5c] sm:$0xf]
      %v251 = vld [vmem:[%s1 + $0x60] sm:$0xf]
      %v252 = vld [vmem:[%s1 + $0x64] sm:$0xf]
      %v253 = vld [vmem:[%s1 + $0x68] sm:$0xf]
      %v254 = vld [vmem:[%s1 + $0x6c] sm:$0xf]
      %v255 = vld [vmem:[%s1 + $0x70] sm:$0xf]
      %v256 = vld [vmem:[%s1 + $0x74] sm:$0xf]
      %v257 = vld [vmem:[%s1 + $0x78] sm:$0xf]
      %v258 = vld [vmem:[%s1 + $0x7c] sm:$0xf]
      %v259 = vld [vmem:[%s2] sm:$0x1]
      %v261 = vperm.slane %v259, 0
      %v313 = vunpack.c.l.b16 %v177
      %v314 = vunpack.c.h.b16 %v177
      %v315 = vunpack.c.l.b16 %v178
      %v316 = vunpack.c.h.b16 %v178
      %v317 = vunpack.c.l.b16 %v179
      %v318 = vunpack.c.h.b16 %v179
      %v319 = vunpack.c.l.b16 %v180
      %v320 = vunpack.c.h.b16 %v180
      %v321 = vunpack.c.l.b16 %v181
      %v322 = vunpack.c.h.b16 %v181
      %v323 = vunpack.c.l.b16 %v182
      %v324 = vunpack.c.h.b16 %v182
      %v325 = vunpack.c.l.b16 %v183
      %v326 = vunpack.c.h.b16 %v183
      %v327 = vunpack.c.l.b16 %v184
      %v328 = vunpack.c.h.b16 %v184
      %v329 = vunpack.c.l.b16 %v185
      %v330 = vunpack.c.h.b16 %v185
      %v331 = vunpack.c.l.b16 %v186
      %v332 = vunpack.c.h.b16 %v186
      %v333 = vunpack.c.l.b16 %v187
      %v334 = vunpack.c.h.b16 %v187
      %v335 = vunpack.c.l.b16 %v188
      %v336 = vunpack.c.h.b16 %v188
      %v337 = vunpack.c.l.b16 %v189
      %v338 = vunpack.c.h.b16 %v189
      %v339 = vunpack.c.l.b16 %v190
      %v340 = vunpack.c.h.b16 %v190
      %v341 = vunpack.c.l.b16 %v191
      %v342 = vunpack.c.h.b16 %v191
      %v343 = vunpack.c.l.b16 %v192
      %v344 = vunpack.c.h.b16 %v192
      %v345 = vunpack.c.l.b16 %v193
      %v346 = vunpack.c.h.b16 %v193
      %v347 = vunpack.c.l.b16 %v194
      %v348 = vunpack.c.h.b16 %v194
      %v349 = vunpack.c.l.b16 %v195
      %v350 = vunpack.c.h.b16 %v195
      %v351 = vunpack.c.l.b16 %v196
      %v352 = vunpack.c.h.b16 %v196
      %v353 = vunpack.c.l.b16 %v197
      %v354 = vunpack.c.h.b16 %v197
      %v355 = vunpack.c.l.b16 %v198
      %v356 = vunpack.c.h.b16 %v198
      %v357 = vunpack.c.l.b16 %v199
      %v358 = vunpack.c.h.b16 %v199
      %v359 = vunpack.c.l.b16 %v200
      %v360 = vunpack.c.h.b16 %v200
      %v361 = vunpack.c.l.b16 %v201
      %v362 = vunpack.c.h.b16 %v201
      %v363 = vunpack.c.l.b16 %v202
      %v364 = vunpack.c.h.b16 %v202
      %v365 = vunpack.c.l.b16 %v203
      %v366 = vunpack.c.h.b16 %v203
      %v367 = vunpack.c.l.b16 %v204
      %v368 = vunpack.c.h.b16 %v204
      %v369 = vunpack.c.l.b16 %v205
      %v370 = vunpack.c.h.b16 %v205
      %v371 = vunpack.c.l.b16 %v206
      %v372 = vunpack.c.h.b16 %v206
      %v373 = vunpack.c.l.b16 %v207
      %v374 = vunpack.c.h.b16 %v207
      %v375 = vunpack.c.l.b16 %v208
      %v376 = vunpack.c.h.b16 %v208
      %v377 = vunpack.c.l.b16 %v209
      %v378 = vunpack.c.h.b16 %v209
      %v379 = vunpack.c.l.b16 %v210
      %v380 = vunpack.c.h.b16 %v210
      %v381 = vunpack.c.l.b16 %v211
      %v382 = vunpack.c.h.b16 %v211
      %v383 = vunpack.c.l.b16 %v212
      %v384 = vunpack.c.h.b16 %v212
      %v385 = vunpack.c.l.b16 %v213
      %v386 = vunpack.c.h.b16 %v213
      %v387 = vunpack.c.l.b16 %v214
      %v388 = vunpack.c.h.b16 %v214
      %v389 = vunpack.c.l.b16 %v215
      %v390 = vunpack.c.h.b16 %v215
      %v391 = vunpack.c.l.b16 %v216
      %v392 = vunpack.c.h.b16 %v216
      %v393 = vunpack.c.l.b16 %v217
      %v394 = vunpack.c.h.b16 %v217
      %v395 = vunpack.c.l.b16 %v218
      %v396 = vunpack.c.h.b16 %v218
      %v397 = vunpack.c.l.b16 %v219
      %v398 = vunpack.c.h.b16 %v219
      %v399 = vunpack.c.l.b16 %v220
      %v400 = vunpack.c.h.b16 %v220
      %v401 = vunpack.c.l.b16 %v221
      %v402 = vunpack.c.h.b16 %v221
      %v403 = vunpack.c.l.b16 %v222
      %v404 = vunpack.c.h.b16 %v222
      %v405 = vunpack.c.l.b16 %v223
      %v406 = vunpack.c.h.b16 %v223
      %v407 = vunpack.c.l.b16 %v224
      %v408 = vunpack.c.h.b16 %v224
      %v409 = vunpack.c.l.b16 %v225
      %v410 = vunpack.c.h.b16 %v225
      %v411 = vunpack.c.l.b16 %v226
      %v412 = vunpack.c.h.b16 %v226
      %v413 = vpack.c.b16 %v315, %v313
      %v414 = vpack.c.b16 %v316, %v314
      %v415 = vpack.c.b16 %v319, %v317
      %v416 = vpack.c.b16 %v320, %v318
      %v417 = vpack.c.b16 %v323, %v321
      %v418 = vpack.c.b16 %v324, %v322
      %v419 = vpack.c.b16 %v327, %v325
      %v420 = vpack.c.b16 %v328, %v326
      %v421 = vpack.c.b16 %v331, %v329
      %v422 = vpack.c.b16 %v332, %v330
      %v423 = vpack.c.b16 %v335, %v333
      %v424 = vpack.c.b16 %v336, %v334
      %v425 = vpack.c.b16 %v339, %v337
      %v426 = vpack.c.b16 %v340, %v338
      %v427 = vpack.c.b16 %v343, %v341
      %v428 = vpack.c.b16 %v344, %v342
      %v429 = vpack.c.b16 %v347, %v345
      %v430 = vpack.c.b16 %v348, %v346
      %v431 = vpack.c.b16 %v351, %v349
      %v432 = vpack.c.b16 %v352, %v350
      %v433 = vpack.c.b16 %v355, %v353
      %v434 = vpack.c.b16 %v356, %v354
      %v435 = vpack.c.b16 %v359, %v357
      %v436 = vpack.c.b16 %v360, %v358
      %v437 = vpack.c.b16 %v363, %v361
      %v438 = vpack.c.b16 %v364, %v362
      %v439 = vpack.c.b16 %v367, %v365
      %v440 = vpack.c.b16 %v368, %v366
      %v441 = vpack.c.b16 %v371, %v369
      %v442 = vpack.c.b16 %v372, %v370
      %v443 = vpack.c.b16 %v375, %v373
      %v444 = vpack.c.b16 %v376, %v374
      %v445 = vpack.c.b16 %v379, %v377
      %v446 = vpack.c.b16 %v380, %v378
      %v447 = vpack.c.b16 %v383, %v381
      %v448 = vpack.c.b16 %v384, %v382
      %v449 = vpack.c.b16 %v387, %v385
      %v450 = vpack.c.b16 %v388, %v386
      %v451 = vpack.c.b16 %v391, %v389
      %v452 = vpack.c.b16 %v392, %v390
      %v453 = vpack.c.b16 %v395, %v393
      %v454 = vpack.c.b16 %v396, %v394
      %v455 = vpack.c.b16 %v399, %v397
      %v456 = vpack.c.b16 %v400, %v398
      %v457 = vpack.c.b16 %v403, %v401
      %v458 = vpack.c.b16 %v404, %v402
      %v459 = vpack.c.b16 %v407, %v405
      %v460 = vpack.c.b16 %v408, %v406
      %v461 = vpack.c.b16 %v411, %v409
      %v462 = vpack.c.b16 %v412, %v410
      %v545 = vunpack.c.l.b16 %v227
      %v546 = vunpack.c.l.b16 %v228
      %v547 = vunpack.c.l.b16 %v229
      %v548 = vunpack.c.l.b16 %v230
      %v549 = vunpack.c.l.b16 %v231
      %v550 = vunpack.c.l.b16 %v232
      %v551 = vunpack.c.l.b16 %v233
      %v552 = vunpack.c.l.b16 %v234
      %v553 = vunpack.c.l.b16 %v235
      %v554 = vunpack.c.l.b16 %v236
      %v555 = vunpack.c.l.b16 %v237
      %v556 = vunpack.c.l.b16 %v238
      %v557 = vunpack.c.l.b16 %v239
      %v558 = vunpack.c.l.b16 %v240
      %v559 = vunpack.c.l.b16 %v241
      %v560 = vunpack.c.l.b16 %v242
      %v561 = vunpack.c.l.b16 %v243
      %v562 = vunpack.c.l.b16 %v244
      %v563 = vunpack.c.l.b16 %v245
      %v564 = vunpack.c.l.b16 %v246
      %v565 = vunpack.c.l.b16 %v247
      %v566 = vunpack.c.l.b16 %v248
      %v567 = vunpack.c.l.b16 %v249
      %v568 = vunpack.c.l.b16 %v250
      %v569 = vunpack.c.l.b16 %v251
      %v570 = vunpack.c.l.b16 %v252
      %v571 = vunpack.c.l.b16 %v253
      %v572 = vunpack.c.l.b16 %v254
      %v573 = vunpack.c.l.b16 %v255
      %v574 = vunpack.c.l.b16 %v256
      %v575 = vunpack.c.l.b16 %v257
      %v576 = vunpack.c.l.b16 %v258
      %v577 = vpack.c.b16 %v546, %v545
      %v578 = vpack.c.b16 %v548, %v547
      %v579 = vpack.c.b16 %v550, %v549
      %v580 = vpack.c.b16 %v552, %v551
      %v581 = vpack.c.b16 %v554, %v553
      %v582 = vpack.c.b16 %v556, %v555
      %v583 = vpack.c.b16 %v558, %v557
      %v584 = vpack.c.b16 %v560, %v559
      %v585 = vpack.c.b16 %v562, %v561
      %v586 = vpack.c.b16 %v564, %v563
      %v587 = vpack.c.b16 %v566, %v565
      %v588 = vpack.c.b16 %v568, %v567
      %v589 = vpack.c.b16 %v570, %v569
      %v590 = vpack.c.b16 %v572, %v571
      %v591 = vpack.c.b16 %v574, %v573
      %v592 = vpack.c.b16 %v576, %v575
      %609 = vmatpush.bf16.msra.mxu0 %v584
      %610 = vmatpush.bf16.msra.mxu0 %v583
      %611 = vmatpush.bf16.msra.mxu0 %v582
      %612 = vmatpush.bf16.msra.mxu0 %v581
      %613 = vmatpush.bf16.msra.mxu0 %v580
      %614 = vmatpush.bf16.msra.mxu0 %v579
      %615 = vmatpush.bf16.msra.mxu0 %v578
      %616 = vmatpush.bf16.msra.mxu0 %v577
      %617 = vmatmul.bf16.gmra.mxu0 %v413
      %v618 = vpop.f32.mrf.mxu0
      %v619 = vadd.f32 %v261, %v618
      %v620 = vpop.f32.mrf.mxu0
      %v621 = vadd.f32 %v261, %v620
      %622 = vmatmul.bf16.gmra.mxu0 %v415
      %v623 = vpop.f32.mrf.mxu0
      %v624 = vadd.f32 %v261, %v623
      %v625 = vpop.f32.mrf.mxu0
      %v626 = vadd.f32 %v261, %v625
      %627 = vmatmul.bf16.gmra.mxu0 %v417
      %v628 = vpop.f32.mrf.mxu0
      %v629 = vadd.f32 %v261, %v628
      %v630 = vpop.f32.mrf.mxu0
      %v631 = vadd.f32 %v261, %v630
      %632 = vmatmul.bf16.gmra.mxu0 %v419
      %v633 = vpop.f32.mrf.mxu0
      %v634 = vadd.f32 %v261, %v633
      %v635 = vpop.f32.mrf.mxu0
      %v636 = vadd.f32 %v261, %v635
      %637 = vmatmul.bf16.gmra.mxu0 %v421
      %v638 = vpop.f32.mrf.mxu0
      %v639 = vadd.f32 %v261, %v638
      %v640 = vpop.f32.mrf.mxu0
      %v641 = vadd.f32 %v261, %v640
      %642 = vmatmul.bf16.gmra.mxu0 %v423
      %v643 = vpop.f32.mrf.mxu0
      %v644 = vadd.f32 %v261, %v643
      %v645 = vpop.f32.mrf.mxu0
      %v646 = vadd.f32 %v261, %v645
      %647 = vmatmul.bf16.gmra.mxu0 %v425
      %v648 = vpop.f32.mrf.mxu0
      %v649 = vadd.f32 %v261, %v648
      %v650 = vpop.f32.mrf.mxu0
      %v651 = vadd.f32 %v261, %v650
      %652 = vmatmul.bf16.gmra.mxu0 %v427
      %v653 = vpop.f32.mrf.mxu0
      %v654 = vadd.f32 %v261, %v653
      %v655 = vpop.f32.mrf.mxu0
      %v656 = vadd.f32 %v261, %v655
      %657 = vmatmul.bf16.gmra.mxu0 %v429
      %v658 = vpop.f32.mrf.mxu0
      %v659 = vadd.f32 %v261, %v658
      %v660 = vpop.f32.mrf.mxu0
      %v661 = vadd.f32 %v261, %v660
      %662 = vmatmul.bf16.gmra.mxu0 %v431
      %v663 = vpop.f32.mrf.mxu0
      %v664 = vadd.f32 %v261, %v663
      %v665 = vpop.f32.mrf.mxu0
      %v666 = vadd.f32 %v261, %v665
      %667 = vmatmul.bf16.gmra.mxu0 %v433
      %v668 = vpop.f32.mrf.mxu0
      %v669 = vadd.f32 %v261, %v668
      %v670 = vpop.f32.mrf.mxu0
      %v671 = vadd.f32 %v261, %v670
      %672 = vmatmul.bf16.gmra.mxu0 %v435
      %v673 = vpop.f32.mrf.mxu0
      %v674 = vadd.f32 %v261, %v673
      %v675 = vpop.f32.mrf.mxu0
      %v676 = vadd.f32 %v261, %v675
      %677 = vmatmul.bf16.gmra.mxu0 %v437
      %v678 = vpop.f32.mrf.mxu0
      %v679 = vadd.f32 %v261, %v678
      %v680 = vpop.f32.mrf.mxu0
      %v681 = vadd.f32 %v261, %v680
      %682 = vmatmul.bf16.gmra.mxu0 %v439
      %v683 = vpop.f32.mrf.mxu0
      %v684 = vadd.f32 %v261, %v683
      %v685 = vpop.f32.mrf.mxu0
      %v686 = vadd.f32 %v261, %v685
      %687 = vmatmul.bf16.gmra.mxu0 %v441
      %v688 = vpop.f32.mrf.mxu0
      %v689 = vadd.f32 %v261, %v688
      %v690 = vpop.f32.mrf.mxu0
      %v691 = vadd.f32 %v261, %v690
      %692 = vmatmul.bf16.gmra.mxu0 %v443
      %v693 = vpop.f32.mrf.mxu0
      %v694 = vadd.f32 %v261, %v693
      %v695 = vpop.f32.mrf.mxu0
      %v696 = vadd.f32 %v261, %v695
      %697 = vmatmul.bf16.gmra.mxu0 %v445
      %v698 = vpop.f32.mrf.mxu0
      %v699 = vadd.f32 %v261, %v698
      %v700 = vpop.f32.mrf.mxu0
      %v701 = vadd.f32 %v261, %v700
      %702 = vmatmul.bf16.gmra.mxu0 %v447
      %v703 = vpop.f32.mrf.mxu0
      %v704 = vadd.f32 %v261, %v703
      %v705 = vpop.f32.mrf.mxu0
      %v706 = vadd.f32 %v261, %v705
      %707 = vmatmul.bf16.gmra.mxu0 %v449
      %v708 = vpop.f32.mrf.mxu0
      %v709 = vadd.f32 %v261, %v708
      %v710 = vpop.f32.mrf.mxu0
      %v711 = vadd.f32 %v261, %v710
      %712 = vmatmul.bf16.gmra.mxu0 %v451
      %v713 = vpop.f32.mrf.mxu0
      %v714 = vadd.f32 %v261, %v713
      %v715 = vpop.f32.mrf.mxu0
      %v716 = vadd.f32 %v261, %v715
      %717 = vmatmul.bf16.gmra.mxu0 %v453
      %v718 = vpop.f32.mrf.mxu0
      %v719 = vadd.f32 %v261, %v718
      %v720 = vpop.f32.mrf.mxu0
      %v721 = vadd.f32 %v261, %v720
      %722 = vmatmul.bf16.gmra.mxu0 %v455
      %v723 = vpop.f32.mrf.mxu0
      %v724 = vadd.f32 %v261, %v723
      %v725 = vpop.f32.mrf.mxu0
      %v726 = vadd.f32 %v261, %v725
      %727 = vmatmul.bf16.gmra.mxu0 %v457
      %v728 = vpop.f32.mrf.mxu0
      %v729 = vadd.f32 %v261, %v728
      %v730 = vpop.f32.mrf.mxu0
      %v731 = vadd.f32 %v261, %v730
      %732 = vmatmul.bf16.gmra.mxu0 %v459
      %v733 = vpop.f32.mrf.mxu0
      %v734 = vadd.f32 %v261, %v733
      %v735 = vpop.f32.mrf.mxu0
      %v736 = vadd.f32 %v261, %v735
      %737 = vmatmul.bf16.gmra.mxu0 %v461
      %v738 = vpop.f32.mrf.mxu0
      %v739 = vadd.f32 %v261, %v738
      %v740 = vpop.f32.mrf.mxu0
      %v741 = vadd.f32 %v261, %v740
      %742 = vdwg.mxu0
      %743 = vmatpush.bf16.msra.mxu0 %v592
      %744 = vmatpush.bf16.msra.mxu0 %v591
      %745 = vmatpush.bf16.msra.mxu0 %v590
      %746 = vmatpush.bf16.msra.mxu0 %v589
      %747 = vmatpush.bf16.msra.mxu0 %v588
      %748 = vmatpush.bf16.msra.mxu0 %v587
      %749 = vmatpush.bf16.msra.mxu0 %v586
      %750 = vmatpush.bf16.msra.mxu0 %v585
      %751 = vmatmul.bf16.gmra.mxu0 %v414
      %v752 = vpop.f32.mrf.mxu0
      %v753 = vadd.f32 %v619, %v752
      %v754 = vpop.f32.mrf.mxu0
      %v755 = vadd.f32 %v621, %v754
      %756 = vmatmul.bf16.gmra.mxu0 %v416
      %v757 = vpop.f32.mrf.mxu0
      %v758 = vadd.f32 %v624, %v757
      %v759 = vpop.f32.mrf.mxu0
      %v760 = vadd.f32 %v626, %v759
      %761 = vmatmul.bf16.gmra.mxu0 %v418
      %v762 = vpop.f32.mrf.mxu0
      %v763 = vadd.f32 %v629, %v762
      %v764 = vpop.f32.mrf.mxu0
      %v765 = vadd.f32 %v631, %v764
      %766 = vmatmul.bf16.gmra.mxu0 %v420
      %v767 = vpop.f32.mrf.mxu0
      %v768 = vadd.f32 %v634, %v767
      %v769 = vpop.f32.mrf.mxu0
      %v770 = vadd.f32 %v636, %v769
      %771 = vmatmul.bf16.gmra.mxu0 %v422
      %v772 = vpop.f32.mrf.mxu0
      %v773 = vadd.f32 %v639, %v772
      %v774 = vpop.f32.mrf.mxu0
      %v775 = vadd.f32 %v641, %v774
      %776 = vmatmul.bf16.gmra.mxu0 %v424
      %v777 = vpop.f32.mrf.mxu0
      %v778 = vadd.f32 %v644, %v777
      %v779 = vpop.f32.mrf.mxu0
      %v780 = vadd.f32 %v646, %v779
      %781 = vmatmul.bf16.gmra.mxu0 %v426
      %v782 = vpop.f32.mrf.mxu0
      %v783 = vadd.f32 %v649, %v782
      %v784 = vpop.f32.mrf.mxu0
      %v785 = vadd.f32 %v651, %v784
      %786 = vmatmul.bf16.gmra.mxu0 %v428
      %v787 = vpop.f32.mrf.mxu0
      %v788 = vadd.f32 %v654, %v787
      %v789 = vpop.f32.mrf.mxu0
      %v790 = vadd.f32 %v656, %v789
      %791 = vmatmul.bf16.gmra.mxu0 %v430
      %v792 = vpop.f32.mrf.mxu0
      %v793 = vadd.f32 %v659, %v792
      %v794 = vpop.f32.mrf.mxu0
      %v795 = vadd.f32 %v661, %v794
      %796 = vmatmul.bf16.gmra.mxu0 %v432
      %v797 = vpop.f32.mrf.mxu0
      %v798 = vadd.f32 %v664, %v797
      %v799 = vpop.f32.mrf.mxu0
      %v800 = vadd.f32 %v666, %v799
      %801 = vmatmul.bf16.gmra.mxu0 %v434
      %v802 = vpop.f32.mrf.mxu0
      %v803 = vadd.f32 %v669, %v802
      %v804 = vpop.f32.mrf.mxu0
      %v805 = vadd.f32 %v671, %v804
      %806 = vmatmul.bf16.gmra.mxu0 %v436
      %v807 = vpop.f32.mrf.mxu0
      %v808 = vadd.f32 %v674, %v807
      %v809 = vpop.f32.mrf.mxu0
      %v810 = vadd.f32 %v676, %v809
      %811 = vmatmul.bf16.gmra.mxu0 %v438
      %v812 = vpop.f32.mrf.mxu0
      %v813 = vadd.f32 %v679, %v812
      %v814 = vpop.f32.mrf.mxu0
      %v815 = vadd.f32 %v681, %v814
      %816 = vmatmul.bf16.gmra.mxu0 %v440
      %v817 = vpop.f32.mrf.mxu0
      %v818 = vadd.f32 %v684, %v817
      %v819 = vpop.f32.mrf.mxu0
      %v820 = vadd.f32 %v686, %v819
      %821 = vmatmul.bf16.gmra.mxu0 %v442
      %v822 = vpop.f32.mrf.mxu0
      %v823 = vadd.f32 %v689, %v822
      %v824 = vpop.f32.mrf.mxu0
      %v825 = vadd.f32 %v691, %v824
      %826 = vmatmul.bf16.gmra.mxu0 %v444
      %v827 = vpop.f32.mrf.mxu0
      %v828 = vadd.f32 %v694, %v827
      %v829 = vpop.f32.mrf.mxu0
      %v830 = vadd.f32 %v696, %v829
      %831 = vmatmul.bf16.gmra.mxu0 %v446
      %v832 = vpop.f32.mrf.mxu0
      %v833 = vadd.f32 %v699, %v832
      %v834 = vpop.f32.mrf.mxu0
      %v835 = vadd.f32 %v701, %v834
      %836 = vmatmul.bf16.gmra.mxu0 %v448
      %v837 = vpop.f32.mrf.mxu0
      %v838 = vadd.f32 %v704, %v837
      %v839 = vpop.f32.mrf.mxu0
      %v840 = vadd.f32 %v706, %v839
      %841 = vmatmul.bf16.gmra.mxu0 %v450
      %v842 = vpop.f32.mrf.mxu0
      %v843 = vadd.f32 %v709, %v842
      %v844 = vpop.f32.mrf.mxu0
      %v845 = vadd.f32 %v711, %v844
      %846 = vmatmul.bf16.gmra.mxu0 %v452
      %v847 = vpop.f32.mrf.mxu0
      %v848 = vadd.f32 %v714, %v847
      %v849 = vpop.f32.mrf.mxu0
      %v850 = vadd.f32 %v716, %v849
      %851 = vmatmul.bf16.gmra.mxu0 %v454
      %v852 = vpop.f32.mrf.mxu0
      %v853 = vadd.f32 %v719, %v852
      %v854 = vpop.f32.mrf.mxu0
      %v855 = vadd.f32 %v721, %v854
      %856 = vmatmul.bf16.gmra.mxu0 %v456
      %v857 = vpop.f32.mrf.mxu0
      %v858 = vadd.f32 %v724, %v857
      %v859 = vpop.f32.mrf.mxu0
      %v860 = vadd.f32 %v726, %v859
      %861 = vmatmul.bf16.gmra.mxu0 %v458
      %v862 = vpop.f32.mrf.mxu0
      %v863 = vadd.f32 %v729, %v862
      %v864 = vpop.f32.mrf.mxu0
      %v865 = vadd.f32 %v731, %v864
      %866 = vmatmul.bf16.gmra.mxu0 %v460
      %v867 = vpop.f32.mrf.mxu0
      %v868 = vadd.f32 %v734, %v867
      %v869 = vpop.f32.mrf.mxu0
      %v870 = vadd.f32 %v736, %v869
      %871 = vmatmul.bf16.gmra.mxu0 %v462
      %v872 = vpop.f32.mrf.mxu0
      %v873 = vadd.f32 %v739, %v872
      %v874 = vpop.f32.mrf.mxu0
      %v875 = vadd.f32 %v741, %v874
      %876 = vdwg.mxu0
      %v877 = vmax.f32 %v753, 0.0
      %v878 = vmax.f32 %v755, 0.0
      %v879 = vmax.f32 %v758, 0.0
      %v880 = vmax.f32 %v760, 0.0
      %v881 = vmax.f32 %v763, 0.0
      %v882 = vmax.f32 %v765, 0.0
      %v883 = vmax.f32 %v768, 0.0
      %v884 = vmax.f32 %v770, 0.0
      %v885 = vmax.f32 %v773, 0.0
      %v886 = vmax.f32 %v775, 0.0
      %v887 = vmax.f32 %v778, 0.0
      %v888 = vmax.f32 %v780, 0.0
      %v889 = vmax.f32 %v783, 0.0
      %v890 = vmax.f32 %v785, 0.0
      %v891 = vmax.f32 %v788, 0.0
      %v892 = vmax.f32 %v790, 0.0
      %v893 = vmax.f32 %v793, 0.0
      %v894 = vmax.f32 %v795, 0.0
      %v895 = vmax.f32 %v798, 0.0
      %v896 = vmax.f32 %v800, 0.0
      %v897 = vmax.f32 %v803, 0.0
      %v898 = vmax.f32 %v805, 0.0
      %v899 = vmax.f32 %v808, 0.0
      %v900 = vmax.f32 %v810, 0.0
      %v901 = vmax.f32 %v813, 0.0
      %v902 = vmax.f32 %v815, 0.0
      %v903 = vmax.f32 %v818, 0.0
      %v904 = vmax.f32 %v820, 0.0
      %v905 = vmax.f32 %v823, 0.0
      %v906 = vmax.f32 %v825, 0.0
      %v907 = vmax.f32 %v828, 0.0
      %v908 = vmax.f32 %v830, 0.0
      %v909 = vmax.f32 %v833, 0.0
      %v910 = vmax.f32 %v835, 0.0
      %v911 = vmax.f32 %v838, 0.0
      %v912 = vmax.f32 %v840, 0.0
      %v913 = vmax.f32 %v843, 0.0
      %v914 = vmax.f32 %v845, 0.0
      %v915 = vmax.f32 %v848, 0.0
      %v916 = vmax.f32 %v850, 0.0
      %v917 = vmax.f32 %v853, 0.0
      %v918 = vmax.f32 %v855, 0.0
      %v919 = vmax.f32 %v858, 0.0
      %v920 = vmax.f32 %v860, 0.0
      %v921 = vmax.f32 %v863, 0.0
      %v922 = vmax.f32 %v865, 0.0
      %v923 = vmax.f32 %v868, 0.0
      %v924 = vmax.f32 %v870, 0.0
      %v925 = vmax.f32 %v873, 0.0
      %v926 = vmax.f32 %v875, 0.0
      %v927 = vpack.c.bf16 %v877, %v877
      %v928 = vpack.c.bf16 %v878, %v878
      %v929 = vpack.c.bf16 %v879, %v879
      %v930 = vpack.c.bf16 %v880, %v880
      %v931 = vpack.c.bf16 %v881, %v881
      %v932 = vpack.c.bf16 %v882, %v882
      %v933 = vpack.c.bf16 %v883, %v883
      %v934 = vpack.c.bf16 %v884, %v884
      %v935 = vpack.c.bf16 %v885, %v885
      %v936 = vpack.c.bf16 %v886, %v886
      %v937 = vpack.c.bf16 %v887, %v887
      %v938 = vpack.c.bf16 %v888, %v888
      %v939 = vpack.c.bf16 %v889, %v889
      %v940 = vpack.c.bf16 %v890, %v890
      %v941 = vpack.c.bf16 %v891, %v891
      %v942 = vpack.c.bf16 %v892, %v892
      %v943 = vpack.c.bf16 %v893, %v893
      %v944 = vpack.c.bf16 %v894, %v894
      %v945 = vpack.c.bf16 %v895, %v895
      %v946 = vpack.c.bf16 %v896, %v896
      %v947 = vpack.c.bf16 %v897, %v897
      %v948 = vpack.c.bf16 %v898, %v898
      %v949 = vpack.c.bf16 %v899, %v899
      %v950 = vpack.c.bf16 %v900, %v900
      %v951 = vpack.c.bf16 %v901, %v901
      %v952 = vpack.c.bf16 %v902, %v902
      %v953 = vpack.c.bf16 %v903, %v903
      %v954 = vpack.c.bf16 %v904, %v904
      %v955 = vpack.c.bf16 %v905, %v905
      %v956 = vpack.c.bf16 %v906, %v906
      %v957 = vpack.c.bf16 %v907, %v907
      %v958 = vpack.c.bf16 %v908, %v908
      %v959 = vpack.c.bf16 %v909, %v909
      %v960 = vpack.c.bf16 %v910, %v910
      %v961 = vpack.c.bf16 %v911, %v911
      %v962 = vpack.c.bf16 %v912, %v912
      %v963 = vpack.c.bf16 %v913, %v913
      %v964 = vpack.c.bf16 %v914, %v914
      %v965 = vpack.c.bf16 %v915, %v915
      %v966 = vpack.c.bf16 %v916, %v916
      %v967 = vpack.c.bf16 %v917, %v917
      %v968 = vpack.c.bf16 %v918, %v918
      %v969 = vpack.c.bf16 %v919, %v919
      %v970 = vpack.c.bf16 %v920, %v920
      %v971 = vpack.c.bf16 %v921, %v921
      %v972 = vpack.c.bf16 %v922, %v922
      %v973 = vpack.c.bf16 %v923, %v923
      %v974 = vpack.c.bf16 %v924, %v924
      %v975 = vpack.c.bf16 %v925, %v925
      %v976 = vpack.c.bf16 %v926, %v926
      %vm977 = vcmask 257024
      %978 = vst.msk [vmem:[%s175] sm:$0xf] %vm977, %v927
      %979 = vst.msk [vmem:[%s175 + $0x4] sm:$0xf] %vm977, %v928
      %980 = vst.msk [vmem:[%s175 + $0x8] sm:$0xf] %vm977, %v929
      %981 = vst.msk [vmem:[%s175 + $0xc] sm:$0xf] %vm977, %v930
      %982 = vst.msk [vmem:[%s175 + $0x10] sm:$0xf] %vm977, %v931
      %983 = vst.msk [vmem:[%s175 + $0x14] sm:$0xf] %vm977, %v932
      %984 = vst.msk [vmem:[%s175 + $0x18] sm:$0xf] %vm977, %v933
      %985 = vst.msk [vmem:[%s175 + $0x1c] sm:$0xf] %vm977, %v934
      %986 = vst.msk [vmem:[%s175 + $0x20] sm:$0xf] %vm977, %v935
      %987 = vst.msk [vmem:[%s175 + $0x24] sm:$0xf] %vm977, %v936
      %988 = vst.msk [vmem:[%s175 + $0x28] sm:$0xf] %vm977, %v937
      %989 = vst.msk [vmem:[%s175 + $0x2c] sm:$0xf] %vm977, %v938
      %990 = vst.msk [vmem:[%s175 + $0x30] sm:$0xf] %vm977, %v939
      %991 = vst.msk [vmem:[%s175 + $0x34] sm:$0xf] %vm977, %v940
      %992 = vst.msk [vmem:[%s175 + $0x38] sm:$0xf] %vm977, %v941
      %993 = vst.msk [vmem:[%s175 + $0x3c] sm:$0xf] %vm977, %v942
      %994 = vst.msk [vmem:[%s175 + $0x40] sm:$0xf] %vm977, %v943
      %995 = vst.msk [vmem:[%s175 + $0x44] sm:$0xf] %vm977, %v944
      %996 = vst.msk [vmem:[%s175 + $0x48] sm:$0xf] %vm977, %v945
      %997 = vst.msk [vmem:[%s175 + $0x4c] sm:$0xf] %vm977, %v946
      %998 = vst.msk [vmem:[%s175 + $0x50] sm:$0xf] %vm977, %v947
      %999 = vst.msk [vmem:[%s175 + $0x54] sm:$0xf] %vm977, %v948
      %1000 = vst.msk [vmem:[%s175 + $0x58] sm:$0xf] %vm977, %v949
      %1001 = vst.msk [vmem:[%s175 + $0x5c] sm:$0xf] %vm977, %v950
      %1002 = vst.msk [vmem:[%s175 + $0x60] sm:$0xf] %vm977, %v951
      %1003 = vst.msk [vmem:[%s175 + $0x64] sm:$0xf] %vm977, %v952
      %1004 = vst.msk [vmem:[%s175 + $0x68] sm:$0xf] %vm977, %v953
      %1005 = vst.msk [vmem:[%s175 + $0x6c] sm:$0xf] %vm977, %v954
      %1006 = vst.msk [vmem:[%s175 + $0x70] sm:$0xf] %vm977, %v955
      %1007 = vst.msk [vmem:[%s175 + $0x74] sm:$0xf] %vm977, %v956
      %1008 = vst.msk [vmem:[%s175 + $0x78] sm:$0xf] %vm977, %v957
      %1009 = vst.msk [vmem:[%s175 + $0x7c] sm:$0xf] %vm977, %v958
      %1010 = vst.msk [vmem:[%s175 + $0x80] sm:$0xf] %vm977, %v959
      %1011 = vst.msk [vmem:[%s175 + $0x84] sm:$0xf] %vm977, %v960
      %1012 = vst.msk [vmem:[%s175 + $0x88] sm:$0xf] %vm977, %v961
      %1013 = vst.msk [vmem:[%s175 + $0x8c] sm:$0xf] %vm977, %v962
      %1014 = vst.msk [vmem:[%s175 + $0x90] sm:$0xf] %vm977, %v963
      %1015 = vst.msk [vmem:[%s175 + $0x94] sm:$0xf] %vm977, %v964
      %1016 = vst.msk [vmem:[%s175 + $0x98] sm:$0xf] %vm977, %v965
      %1017 = vst.msk [vmem:[%s175 + $0x9c] sm:$0xf] %vm977, %v966
      %1018 = vst.msk [vmem:[%s175 + $0xa0] sm:$0xf] %vm977, %v967
      %1019 = vst.msk [vmem:[%s175 + $0xa4] sm:$0xf] %vm977, %v968
      %1020 = vst.msk [vmem:[%s175 + $0xa8] sm:$0xf] %vm977, %v969
      %1021 = vst.msk [vmem:[%s175 + $0xac] sm:$0xf] %vm977, %v970
      %1022 = vst.msk [vmem:[%s175 + $0xb0] sm:$0xf] %vm977, %v971
      %1023 = vst.msk [vmem:[%s175 + $0xb4] sm:$0xf] %vm977, %v972
      %1024 = vst.msk [vmem:[%s175 + $0xb8] sm:$0xf] %vm977, %v973
      %1025 = vst.msk [vmem:[%s175 + $0xbc] sm:$0xf] %vm977, %v974
      %1026 = vst.msk [vmem:[%s175 + $0xc0] sm:$0xf] %vm977, %v975
      %1027 = vst.msk [vmem:[%s175 + $0xc4] sm:$0xf] %vm977, %v976
      %s1028 = smul.u32 50, %s14
      %p1029 = scmp.lt.s32.totalorder %s1028, 99
      %s1030 = scalar_select %p1029, %s1028, 99
      %s1031 = smul.addr %s1030, 4
      %s1032 = scalar_lea.vmem %s3, %s1031
      // Predicated region
      $region33: #{actor_critic_forward.3} parent=31 // pred_check
        %p1033 = pneg %p100
      $region34: #{actor_critic_forward.3} parent=31 // pred_check_branch
        %1035 = sbr.rel (%p1033) target = $region36
      $region35: #{actor_critic_forward.3} parent=31 // pred_region
        %s1036 = smul.u32 50, %s14
      $region36: #{actor_critic_forward.3} parent=31 // pred_fallthru
        _
    $region32: #{actor_critic_forward.3} parent=5 // pred_fallthru
      _
    %p1037 = scmp.le.s32.totalorder 2, %s9
    // Predicated region
    $region37: #{actor_critic_forward.3} parent=5 // pred_check
      %p1038 = pneg %p1037
    $region38: #{actor_critic_forward.3} parent=5 // pred_check_branch
      %1040 = sbr.rel (%p1038) target = $region40
    $region39: #{actor_critic_forward.3} parent=5 // pred_region
      %s1041 = ssub.s32 %s9, 2
      // Predicated region
      $region41: #{actor_critic_forward.3} parent=39 // pred_check
        %p1042 = pneg %p106
      $region42: #{actor_critic_forward.3} parent=39 // pred_check_branch
        %1044 = sbr.rel (%p1042) target = $region44
      $region43: #{actor_critic_forward.3} parent=39 // pred_region
        %s1045 = smul.u32 50, %s15
        %p1046 = scmp.lt.s32.totalorder %s1045, 99
        %s1047 = scalar_select %p1046, %s1045, 99
        %s1048 = smul.addr %s1047, 4
        %s1049 = scalar_lea.vmem %s3, %s1048
      $region44: #{actor_critic_forward.3} parent=39 // pred_fallthru
        _
    $region40: #{actor_critic_forward.3} parent=5 // pred_fallthru
      _
  $region6: #{actor_critic_forward.3} parent=0 // loop_footer
    %s13 = sadd.s32 1, %s9
  $region7: #{actor_critic_forward.3} parent=0 // loop_footer_branch
    %8 = sbr.rel target = $region3
  $region8: #{actor_critic_forward.3} parent=0 // loop_exit
    _

// kernel: actor_critic_forward.4
$region0: #{actor_critic_forward.4}
  #allocation0 [shape = 'u32[]', space=smem, size = 0x4, offset = 0x4, fixed_abs, tag = 'smem constant byte address 0x4 - core index']
  #allocation1 [shape = 'u32[72,128]{1,0:T(1,128)}', space=vmem, size = 0x9000, scoped, tag = 'internal scratch']
  %s0 = inlined_call_operand.vmem [shape: bf16[2,162,256], index: 0, kind: input, shape index: {}]
  %s1 = inlined_call_operand.vmem [shape: bf16[2,256,32], index: 1, kind: input, shape index: {}]
  %s2 = inlined_call_operand.vmem [shape: f32[2,1,32], index: 2, kind: input, shape index: {}]
  %s3 = inlined_call_operand.vmem [shape: bf16[2,162,32], index: 3, kind: output, shape index: {}]
  %s4 = sld [smem:[#allocation0]]
  $region45: #{actor_critic_forward.4} parent=0
    _
  %s6 = ssub.s32 1, %s4
  %s7 = scalar_select 0, %s6, %s4
  loop: start=0, step=1, limit=4
  $region2: #{actor_critic_forward.4} parent=0 // loop_pre_header
    _
  $region3: #{actor_critic_forward.4} parent=0 // loop_header
    %s9 = sphi 0, %s13
    %p10 = scmp.ge.s32.totalorder %s9, 4
    %s19 = sphi 0, %s21
    %s22 = sphi 0, %s19
    %s23 = sphi 0, %s22
    %s39 = sphi 0, %s23
    %s45 = sphi 0, %s47
    %s48 = sphi 0, %s45
    %s49 = sphi 0, %s48
    %s65 = sphi 0, %s49
    %s71 = sphi 0, %s73
    %s74 = sphi 0, %s71
    %s75 = sphi 0, %s74
    %s91 = sphi 0, %s75
    %s97 = sphi 0, %s99
    %s100 = sphi 0, %s97
    %s101 = sphi 0, %s100
    %s117 = sphi 0, %s101
  $region4: #{actor_critic_forward.4} parent=0 // loop_header_branch
    %12 = sbr.rel (%p10) target = $region8
  $region5: #{actor_critic_forward.4} parent=0 // loop_body
    %s14 = ssub.s32 %s9, 1
    %s15 = ssub.s32 %s9, 2
    %s16 = sadd.s32 %s9, 1
    %s17 = ssub.s32 %s9, %s16
    %p18 = scmp.eq.s32.totalorder %s17, 0
    %s20 = sadd.s32 %s19, 1
    %s21 = scalar_select %p18, %s19, %s20
    %p24 = pneg %p18
    %p25 = scmp.eq.s32.totalorder %s9, 1
    %p26 = por %p24, %p25
    %p27 = scmp.ne.s32.totalorder %s19, %s22
    %p28 = scmp.eq.s32.totalorder %s9, 0
    %p29 = por %p27, %p28
    %p30 = scmp.ne.s32.totalorder %s19, %s22
    %p31 = scmp.eq.s32.totalorder %s14, 1
    %p32 = por %p30, %p31
    %p33 = scmp.ne.s32.totalorder %s22, %s23
    %p34 = scmp.eq.s32.totalorder %s14, 0
    %p35 = por %p33, %p34
    %p36 = scmp.ne.s32.totalorder %s22, %s23
    %p37 = scmp.eq.s32.totalorder %s15, 1
    %p38 = por %p36, %p37
    %p40 = scmp.ne.s32.totalorder %s23, %s39
    %p41 = scmp.eq.s32.totalorder %s15, 0
    %p42 = por %p40, %p41
    %s43 = ssub.s32 %s9, %s16
    %p44 = scmp.eq.s32.totalorder %s43, 0
    %s46 = sadd.s32 %s45, 1
    %s47 = scalar_select %p44, %s45, %s46
    %p50 = pneg %p44
    %p51 = scmp.eq.s32.totalorder %s9, 1
    %p52 = por %p50, %p51
    %p53 = scmp.ne.s32.totalorder %s45, %s48
    %p54 = scmp.eq.s32.totalorder %s9, 0
    %p55 = por %p53, %p54
    %p56 = scmp.ne.s32.totalorder %s45, %s48
    %p57 = scmp.eq.s32.totalorder %s14, 1
    %p58 = por %p56, %p57
    %p59 = scmp.ne.s32.totalorder %s48, %s49
    %p60 = scmp.eq.s32.totalorder %s14, 0
    %p61 = por %p59, %p60
    %p62 = scmp.ne.s32.totalorder %s48, %s49
    %p63 = scmp.eq.s32.totalorder %s15, 1
    %p64 = por %p62, %p63
    %p66 = scmp.ne.s32.totalorder %s49, %s65
    %p67 = scmp.eq.s32.totalorder %s15, 0
    %p68 = por %p66, %p67
    %s69 = ssub.s32 %s9, %s16
    %p70 = scmp.eq.s32.totalorder %s69, 0
    %s72 = sadd.s32 %s71, 1
    %s73 = scalar_select %p70, %s71, %s72
    %p76 = pneg %p70
    %p77 = scmp.eq.s32.totalorder %s9, 1
    %p78 = por %p76, %p77
    %p79 = scmp.ne.s32.totalorder %s71, %s74
    %p80 = scmp.eq.s32.totalorder %s9, 0
    %p81 = por %p79, %p80
    %p82 = scmp.ne.s32.totalorder %s71, %s74
    %p83 = scmp.eq.s32.totalorder %s14, 1
    %p84 = por %p82, %p83
    %p85 = scmp.ne.s32.totalorder %s74, %s75
    %p86 = scmp.eq.s32.totalorder %s14, 0
    %p87 = por %p85, %p86
    %p88 = scmp.ne.s32.totalorder %s74, %s75
    %p89 = scmp.eq.s32.totalorder %s15, 1
    %p90 = por %p88, %p89
    %p92 = scmp.ne.s32.totalorder %s75, %s91
    %p93 = scmp.eq.s32.totalorder %s15, 0
    %p94 = por %p92, %p93
    %s95 = ssub.s32 %s9, %s16
    %p96 = scmp.eq.s32.totalorder %s95, 0
    %s98 = sadd.s32 %s97, 1
    %s99 = scalar_select %p96, %s97, %s98
    %p102 = pneg %p96
    %p103 = scmp.eq.s32.totalorder %s9, 1
    %p104 = por %p102, %p103
    %p105 = scmp.ne.s32.totalorder %s97, %s100
    %p106 = scmp.eq.s32.totalorder %s9, 0
    %p107 = por %p105, %p106
    %p108 = scmp.ne.s32.totalorder %s97, %s100
    %p109 = scmp.eq.s32.totalorder %s14, 1
    %p110 = por %p108, %p109
    %p111 = scmp.ne.s32.totalorder %s100, %s101
    %p112 = scmp.eq.s32.totalorder %s14, 0
    %p113 = por %p111, %p112
    %p114 = scmp.ne.s32.totalorder %s100, %s101
    %p115 = scmp.eq.s32.totalorder %s15, 1
    %p116 = por %p114, %p115
    %p118 = scmp.ne.s32.totalorder %s101, %s117
    %p119 = scmp.eq.s32.totalorder %s15, 0
    %p120 = por %p118, %p119
    %p121 = scmp.le.s32.totalorder 1, %s9
    %p122 = scmp.lt.s32.totalorder %s9, 3
    %p123 = pnand %p121, %p122
    %p124 = pneg %p123
    // Predicated region
    $region9: #{actor_critic_forward.4} parent=5 // pred_check
      _
    $region10: #{actor_critic_forward.4} parent=5 // pred_check_branch
      %126 = sbr.rel (%p123) target = $region12
    $region11: #{actor_critic_forward.4} parent=5 // pred_region
      %s127 = ssub.s32 %s9, 1
    $region12: #{actor_critic_forward.4} parent=5 // pred_fallthru
      _
    %p128 = scmp.lt.s32.totalorder %s9, 2
    // Predicated region
    $region13: #{actor_critic_forward.4} parent=5 // pred_check
      %p129 = pneg %p128
    $region14: #{actor_critic_forward.4} parent=5 // pred_check_branch
      %131 = sbr.rel (%p129) target = $region16
    $region15: #{actor_critic_forward.4} parent=5 // pred_region
      // Predicated region
      $region17: #{actor_critic_forward.4} parent=15 // pred_check
        %p132 = pneg %p29
      $region18: #{actor_critic_forward.4} parent=15 // pred_check_branch
        %134 = sbr.rel (%p132) target = $region20
      $region19: #{actor_critic_forward.4} parent=15 // pred_region
        %p135 = scmp.lt.s32.totalorder %s9, 1
        %s136 = scalar_select %p135, %s9, 1
        %s137 = smul.addr %s136, 42
        %s138 = smul.addr %s137, 4
        %s139 = scalar_lea.vmem %s0, %s138
      $region20: #{actor_critic_forward.4} parent=15 // pred_fallthru
        _
      // Predicated region
      $region21: #{actor_critic_forward.4} parent=15 // pred_check
        %p140 = pneg %p55
      $region22: #{actor_critic_forward.4} parent=15 // pred_check_branch
        %142 = sbr.rel (%p140) target = $region24
      $region23: #{actor_critic_forward.4} parent=15 // pred_region
        %p143 = scmp.lt.s32.totalorder %s9, 1
        %s144 = scalar_select %p143, %s9, 1
        %s145 = smul.addr %s144, 32
        %s146 = smul.addr %s145, 4
        %s147 = scalar_lea.vmem %s1, %s146
      $region24: #{actor_critic_forward.4} parent=15 // pred_fallthru
        _
      // Predicated region
      $region25: #{actor_critic_forward.4} parent=15 // pred_check
        %p148 = pneg %p81
      $region26: #{actor_critic_forward.4} parent=15 // pred_check_branch
        %150 = sbr.rel (%p148) target = $region28
      $region27: #{actor_critic_forward.4} parent=15 // pred_region
        %p151 = scmp.lt.s32.totalorder %s9, 1
        %s152 = scalar_select %p151, %s9, 1
        %s153 = scalar_lea.vmem %s2, %s152
      $region28: #{actor_critic_forward.4} parent=15 // pred_fallthru
        _
    $region16: #{actor_critic_forward.4} parent=5 // pred_fallthru
      _
    %p154 = scmp.le.s32.totalorder 1, %s9
    %p155 = scmp.lt.s32.totalorder %s9, 3
    %p156 = pnand %p154, %p155
    %p157 = pneg %p156
    // Predicated region
    $region29: #{actor_critic_forward.4} parent=5 // pred_check
      _
    $region30: #{actor_critic_forward.4} parent=5 // pred_check_branch
      %159 = sbr.rel (%p156) target = $region32
    $region31: #{actor_critic_forward.4} parent=5 // pred_region
      %s160 = ssub.s32 %s9, 1
      %p161 = scmp.lt.s32.totalorder %s14, 1
      %s162 = scalar_select %p161, %s14, 1
      %s163 = smul.addr %s162, 42
      %s164 = smul.addr %s163, 4
      %s165 = scalar_lea.vmem %s0, %s164
      %p166 = pneg %p35
      %p167 = pneg %p32
      %p168 = scmp.lt.s32.totalorder %s14, 1
      %s169 = scalar_select %p168, %s14, 1
      %s170 = smul.addr %s169, 32
      %s171 = smul.addr %s170, 4
      %s172 = scalar_lea.vmem %s1, %s171
      %p173 = pneg %p61
      %p174 = pneg %p58
      %p175 = scmp.lt.s32.totalorder %s14, 1
      %s176 = scalar_select %p175, %s14, 1
      %s177 = scalar_lea.vmem %s2, %s176
      %p178 = pneg %p87
      %p179 = pneg %p84
      %p180 = pneg %p113
      %p181 = pneg %p110
      %p182 = scmp.lt.s32.totalorder %s14, 1
      %s183 = scalar_select %p182, %s14, 1
      %s184 = smul.addr %s183, 21
      %s185 = smul.addr %s184, 4
      %s186 = scalar_lea.vmem %s3, %s185
      %p187 = scmp.lt.s32.totalorder %s14, 1
      %s188 = scalar_select %p187, %s14, 1
      %s189 = smul.addr %s188, 42
      %s190 = smul.addr %s189, 4
      %s191 = scalar_lea.vmem %s0, %s190
      %p192 = scmp.lt.s32.totalorder %s14, 1
      %s193 = scalar_select %p192, %s14, 1
      %s194 = smul.addr %s193, 32
      %s195 = smul.addr %s194, 4
      %s196 = scalar_lea.vmem %s1, %s195
      %p197 = scmp.lt.s32.totalorder %s14, 1
      %s198 = scalar_select %p197, %s14, 1
      %s199 = scalar_lea.vmem %s2, %s198
      %p200 = scmp.lt.s32.totalorder %s14, 1
      %s201 = scalar_select %p200, %s14, 1
      %s202 = smul.addr %s201, 21
      %s203 = smul.addr %s202, 4
      %s204 = scalar_lea.vmem %s3, %s203
      %v205 = vld [vmem:[%s191] sm:$0xff]
      %v206 = vld [vmem:[%s191 + $0x8] sm:$0xff]
      %v207 = vld [vmem:[%s191 + $0x10] sm:$0xff]
      %v208 = vld [vmem:[%s191 + $0x18] sm:$0xff]
      %v209 = vld [vmem:[%s191 + $0x20] sm:$0xff]
      %v210 = vld [vmem:[%s191 + $0x28] sm:$0xff]
      %v211 = vld [vmem:[%s191 + $0x30] sm:$0xff]
      %v212 = vld [vmem:[%s191 + $0x38] sm:$0xff]
      %v213 = vld [vmem:[%s191 + $0x40] sm:$0xff]
      %v214 = vld [vmem:[%s191 + $0x48] sm:$0xff]
      %v215 = vld [vmem:[%s191 + $0x50] sm:$0xff]
      %v216 = vld [vmem:[%s191 + $0x58] sm:$0xff]
      %v217 = vld [vmem:[%s191 + $0x60] sm:$0xff]
      %v218 = vld [vmem:[%s191 + $0x68] sm:$0xff]
      %v219 = vld [vmem:[%s191 + $0x70] sm:$0xff]
      %v220 = vld [vmem:[%s191 + $0x78] sm:$0xff]
      %v221 = vld [vmem:[%s191 + $0x80] sm:$0xff]
      %v222 = vld [vmem:[%s191 + $0x88] sm:$0xff]
      %v223 = vld [vmem:[%s191 + $0x90] sm:$0xff]
      %v224 = vld [vmem:[%s191 + $0x98] sm:$0xff]
      %v225 = vld [vmem:[%s191 + $0xa0] sm:$0x11]
      %v226 = vld [vmem:[%s196] sm:$0xf]
      %v227 = vld [vmem:[%s196 + $0x4] sm:$0xf]
      %v228 = vld [vmem:[%s196 + $0x8] sm:$0xf]
      %v229 = vld [vmem:[%s196 + $0xc] sm:$0xf]
      %v230 = vld [vmem:[%s196 + $0x10] sm:$0xf]
      %v231 = vld [vmem:[%s196 + $0x14] sm:$0xf]
      %v232 = vld [vmem:[%s196 + $0x18] sm:$0xf]
      %v233 = vld [vmem:[%s196 + $0x1c] sm:$0xf]
      %v234 = vld [vmem:[%s196 + $0x20] sm:$0xf]
      %v235 = vld [vmem:[%s196 + $0x24] sm:$0xf]
      %v236 = vld [vmem:[%s196 + $0x28] sm:$0xf]
      %v237 = vld [vmem:[%s196 + $0x2c] sm:$0xf]
      %v238 = vld [vmem:[%s196 + $0x30] sm:$0xf]
      %v239 = vld [vmem:[%s196 + $0x34] sm:$0xf]
      %v240 = vld [vmem:[%s196 + $0x38] sm:$0xf]
      %v241 = vld [vmem:[%s196 + $0x3c] sm:$0xf]
      %v242 = vld [vmem:[%s196 + $0x40] sm:$0xf]
      %v243 = vld [vmem:[%s196 + $0x44] sm:$0xf]
      %v244 = vld [vmem:[%s196 + $0x48] sm:$0xf]
      %v245 = vld [vmem:[%s196 + $0x4c] sm:$0xf]
      %v246 = vld [vmem:[%s196 + $0x50] sm:$0xf]
      %v247 = vld [vmem:[%s196 + $0x54] sm:$0xf]
      %v248 = vld [vmem:[%s196 + $0x58] sm:$0xf]
      %v249 = vld [vmem:[%s196 + $0x5c] sm:$0xf]
      %v250 = vld [vmem:[%s196 + $0x60] sm:$0xf]
      %v251 = vld [vmem:[%s196 + $0x64] sm:$0xf]
      %v252 = vld [vmem:[%s196 + $0x68] sm:$0xf]
      %v253 = vld [vmem:[%s196 + $0x6c] sm:$0xf]
      %v254 = vld [vmem:[%s196 + $0x70] sm:$0xf]
      %v255 = vld [vmem:[%s196 + $0x74] sm:$0xf]
      %v256 = vld [vmem:[%s196 + $0x78] sm:$0xf]
      %v257 = vld [vmem:[%s196 + $0x7c] sm:$0xf]
      %v258 = vld [vmem:[%s199] sm:$0x1]
      %v260 = vperm.slane %v258, 0
      %v283 = vunpack.c.l.b16 %v205
      %v284 = vunpack.c.h.b16 %v205
      %v285 = vunpack.c.l.b16 %v206
      %v286 = vunpack.c.h.b16 %v206
      %v287 = vunpack.c.l.b16 %v207
      %v288 = vunpack.c.h.b16 %v207
      %v289 = vunpack.c.l.b16 %v208
      %v290 = vunpack.c.h.b16 %v208
      %v291 = vunpack.c.l.b16 %v209
      %v292 = vunpack.c.h.b16 %v209
      %v293 = vunpack.c.l.b16 %v210
      %v294 = vunpack.c.h.b16 %v210
      %v295 = vunpack.c.l.b16 %v211
      %v296 = vunpack.c.h.b16 %v211
      %v297 = vunpack.c.l.b16 %v212
      %v298 = vunpack.c.h.b16 %v212
      %v299 = vunpack.c.l.b16 %v213
      %v300 = vunpack.c.h.b16 %v213
      %v301 = vunpack.c.l.b16 %v214
      %v302 = vunpack.c.h.b16 %v214
      %v303 = vunpack.c.l.b16 %v215
      %v304 = vunpack.c.h.b16 %v215
      %v305 = vunpack.c.l.b16 %v216
      %v306 = vunpack.c.h.b16 %v216
      %v307 = vunpack.c.l.b16 %v217
      %v308 = vunpack.c.h.b16 %v217
      %v309 = vunpack.c.l.b16 %v218
      %v310 = vunpack.c.h.b16 %v218
      %v311 = vunpack.c.l.b16 %v219
      %v312 = vunpack.c.h.b16 %v219
      %v313 = vunpack.c.l.b16 %v220
      %v314 = vunpack.c.h.b16 %v220
      %v315 = vunpack.c.l.b16 %v221
      %v316 = vunpack.c.h.b16 %v221
      %v317 = vunpack.c.l.b16 %v222
      %v318 = vunpack.c.h.b16 %v222
      %v319 = vunpack.c.l.b16 %v223
      %v320 = vunpack.c.h.b16 %v223
      %v321 = vunpack.c.l.b16 %v224
      %v322 = vunpack.c.h.b16 %v224
      %v323 = vunpack.c.l.b16 %v225
      %v324 = vunpack.c.h.b16 %v225
      %v325 = vpack.c.b16 %v285, %v283
      %v326 = vpack.c.b16 %v286, %v284
      %v327 = vpack.c.b16 %v289, %v287
      %v328 = vpack.c.b16 %v290, %v288
      %v329 = vpack.c.b16 %v293, %v291
      %v330 = vpack.c.b16 %v294, %v292
      %v331 = vpack.c.b16 %v297, %v295
      %v332 = vpack.c.b16 %v298, %v296
      %v333 = vpack.c.b16 %v301, %v299
      %v334 = vpack.c.b16 %v302, %v300
      %v335 = vpack.c.b16 %v305, %v303
      %v336 = vpack.c.b16 %v306, %v304
      %v337 = vpack.c.b16 %v309, %v307
      %v338 = vpack.c.b16 %v310, %v308
      %v339 = vpack.c.b16 %v313, %v311
      %v340 = vpack.c.b16 %v314, %v312
      %v341 = vpack.c.b16 %v317, %v315
      %v342 = vpack.c.b16 %v318, %v316
      %v343 = vpack.c.b16 %v321, %v319
      %v344 = vpack.c.b16 %v322, %v320
      %v345 = vpack.c.b16 %v323, %v323
      %v346 = vpack.c.b16 %v324, %v324
      %v401 = vunpack.c.l.b16 %v226
      %v402 = vunpack.c.l.b16 %v227
      %v403 = vunpack.c.l.b16 %v228
      %v404 = vunpack.c.l.b16 %v229
      %v405 = vunpack.c.l.b16 %v230
      %v406 = vunpack.c.l.b16 %v231
      %v407 = vunpack.c.l.b16 %v232
      %v408 = vunpack.c.l.b16 %v233
      %v409 = vunpack.c.l.b16 %v234
      %v410 = vunpack.c.l.b16 %v235
      %v411 = vunpack.c.l.b16 %v236
      %v412 = vunpack.c.l.b16 %v237
      %v413 = vunpack.c.l.b16 %v238
      %v414 = vunpack.c.l.b16 %v239
      %v415 = vunpack.c.l.b16 %v240
      %v416 = vunpack.c.l.b16 %v241
      %v417 = vunpack.c.l.b16 %v242
      %v418 = vunpack.c.l.b16 %v243
      %v419 = vunpack.c.l.b16 %v244
      %v420 = vunpack.c.l.b16 %v245
      %v421 = vunpack.c.l.b16 %v246
      %v422 = vunpack.c.l.b16 %v247
      %v423 = vunpack.c.l.b16 %v248
      %v424 = vunpack.c.l.b16 %v249
      %v425 = vunpack.c.l.b16 %v250
      %v426 = vunpack.c.l.b16 %v251
      %v427 = vunpack.c.l.b16 %v252
      %v428 = vunpack.c.l.b16 %v253
      %v429 = vunpack.c.l.b16 %v254
      %v430 = vunpack.c.l.b16 %v255
      %v431 = vunpack.c.l.b16 %v256
      %v432 = vunpack.c.l.b16 %v257
      %v433 = vpack.c.b16 %v402, %v401
      %v434 = vpack.c.b16 %v404, %v403
      %v435 = vpack.c.b16 %v406, %v405
      %v436 = vpack.c.b16 %v408, %v407
      %v437 = vpack.c.b16 %v410, %v409
      %v438 = vpack.c.b16 %v412, %v411
      %v439 = vpack.c.b16 %v414, %v413
      %v440 = vpack.c.b16 %v416, %v415
      %v441 = vpack.c.b16 %v418, %v417
      %v442 = vpack.c.b16 %v420, %v419
      %v443 = vpack.c.b16 %v422, %v421
      %v444 = vpack.c.b16 %v424, %v423
      %v445 = vpack.c.b16 %v426, %v425
      %v446 = vpack.c.b16 %v428, %v427
      %v447 = vpack.c.b16 %v430, %v429
      %v448 = vpack.c.b16 %v432, %v431
      %465 = vmatpush.bf16.msra.mxu0 %v440
      %466 = vmatpush.bf16.msra.mxu0 %v439
      %467 = vmatpush.bf16.msra.mxu0 %v438
      %468 = vmatpush.bf16.msra.mxu0 %v437
      %469 = vmatpush.bf16.msra.mxu0 %v436
      %470 = vmatpush.bf16.msra.mxu0 %v435
      %471 = vmatpush.bf16.msra.mxu0 %v434
      %472 = vmatpush.bf16.msra.mxu0 %v433
      %473 = vmatmul.bf16.gmra.mxu0 %v325
      %v474 = vpop.f32.mrf.mxu0
      %v475 = vadd.f32 %v260, %v474
      %v476 = vpop.f32.mrf.mxu0
      %v477 = vadd.f32 %v260, %v476
      %478 = vmatmul.bf16.gmra.mxu0 %v327
      %v479 = vpop.f32.mrf.mxu0
      %v480 = vadd.f32 %v260, %v479
      %v481 = vpop.f32.mrf.mxu0
      %v482 = vadd.f32 %v260, %v481
      %483 = vmatmul.bf16.gmra.mxu0 %v329
      %v484 = vpop.f32.mrf.mxu0
      %v485 = vadd.f32 %v260, %v484
      %v486 = vpop.f32.mrf.mxu0
      %v487 = vadd.f32 %v260, %v486
      %488 = vmatmul.bf16.gmra.mxu0 %v331
      %v489 = vpop.f32.mrf.mxu0
      %v490 = vadd.f32 %v260, %v489
      %v491 = vpop.f32.mrf.mxu0
      %v492 = vadd.f32 %v260, %v491
      %493 = vmatmul.bf16.gmra.mxu0 %v333
      %v494 = vpop.f32.mrf.mxu0
      %v495 = vadd.f32 %v260, %v494
      %v496 = vpop.f32.mrf.mxu0
      %v497 = vadd.f32 %v260, %v496
      %498 = vmatmul.bf16.gmra.mxu0 %v335
      %v499 = vpop.f32.mrf.mxu0
      %v500 = vadd.f32 %v260, %v499
      %v501 = vpop.f32.mrf.mxu0
      %v502 = vadd.f32 %v260, %v501
      %503 = vmatmul.bf16.gmra.mxu0 %v337
      %v504 = vpop.f32.mrf.mxu0
      %v505 = vadd.f32 %v260, %v504
      %v506 = vpop.f32.mrf.mxu0
      %v507 = vadd.f32 %v260, %v506
      %508 = vmatmul.bf16.gmra.mxu0 %v339
      %v509 = vpop.f32.mrf.mxu0
      %v510 = vadd.f32 %v260, %v509
      %v511 = vpop.f32.mrf.mxu0
      %v512 = vadd.f32 %v260, %v511
      %513 = vmatmul.bf16.gmra.mxu0 %v341
      %v514 = vpop.f32.mrf.mxu0
      %v515 = vadd.f32 %v260, %v514
      %v516 = vpop.f32.mrf.mxu0
      %v517 = vadd.f32 %v260, %v516
      %518 = vmatmul.bf16.gmra.mxu0 %v343
      %v519 = vpop.f32.mrf.mxu0
      %v520 = vadd.f32 %v260, %v519
      %v521 = vpop.f32.mrf.mxu0
      %v522 = vadd.f32 %v260, %v521
      %523 = vmatmul.bf16.gmra.mxu0 %v345
      %v524 = vpop.f32.mrf.mxu0
      %v525 = vadd.f32 %v260, %v524
      %v526 = vpop.f32.mrf.mxu0
      %527 = vdwg.mxu0
      %528 = vmatpush.bf16.msra.mxu0 %v448
      %529 = vmatpush.bf16.msra.mxu0 %v447
      %530 = vmatpush.bf16.msra.mxu0 %v446
      %531 = vmatpush.bf16.msra.mxu0 %v445
      %532 = vmatpush.bf16.msra.mxu0 %v444
      %533 = vmatpush.bf16.msra.mxu0 %v443
      %534 = vmatpush.bf16.msra.mxu0 %v442
      %535 = vmatpush.bf16.msra.mxu0 %v441
      %536 = vmatmul.bf16.gmra.mxu0 %v326
      %v537 = vpop.f32.mrf.mxu0
      %v538 = vadd.f32 %v475, %v537
      %v539 = vpop.f32.mrf.mxu0
      %v540 = vadd.f32 %v477, %v539
      %541 = vmatmul.bf16.gmra.mxu0 %v328
      %v542 = vpop.f32.mrf.mxu0
      %v543 = vadd.f32 %v480, %v542
      %v544 = vpop.f32.mrf.mxu0
      %v545 = vadd.f32 %v482, %v544
      %546 = vmatmul.bf16.gmra.mxu0 %v330
      %v547 = vpop.f32.mrf.mxu0
      %v548 = vadd.f32 %v485, %v547
      %v549 = vpop.f32.mrf.mxu0
      %v550 = vadd.f32 %v487, %v549
      %551 = vmatmul.bf16.gmra.mxu0 %v332
      %v552 = vpop.f32.mrf.mxu0
      %v553 = vadd.f32 %v490, %v552
      %v554 = vpop.f32.mrf.mxu0
      %v555 = vadd.f32 %v492, %v554
      %556 = vmatmul.bf16.gmra.mxu0 %v334
      %v557 = vpop.f32.mrf.mxu0
      %v558 = vadd.f32 %v495, %v557
      %v559 = vpop.f32.mrf.mxu0
      %v560 = vadd.f32 %v497, %v559
      %561 = vmatmul.bf16.gmra.mxu0 %v336
      %v562 = vpop.f32.mrf.mxu0
      %v563 = vadd.f32 %v500, %v562
      %v564 = vpop.f32.mrf.mxu0
      %v565 = vadd.f32 %v502, %v564
      %566 = vmatmul.bf16.gmra.mxu0 %v338
      %v567 = vpop.f32.mrf.mxu0
      %v568 = vadd.f32 %v505, %v567
      %v569 = vpop.f32.mrf.mxu0
      %v570 = vadd.f32 %v507, %v569
      %571 = vmatmul.bf16.gmra.mxu0 %v340
      %v572 = vpop.f32.mrf.mxu0
      %v573 = vadd.f32 %v510, %v572
      %v574 = vpop.f32.mrf.mxu0
      %v575 = vadd.f32 %v512, %v574
      %576 = vmatmul.bf16.gmra.mxu0 %v342
      %v577 = vpop.f32.mrf.mxu0
      %v578 = vadd.f32 %v515, %v577
      %v579 = vpop.f32.mrf.mxu0
      %v580 = vadd.f32 %v517, %v579
      %581 = vmatmul.bf16.gmra.mxu0 %v344
      %v582 = vpop.f32.mrf.mxu0
      %v583 = vadd.f32 %v520, %v582
      %v584 = vpop.f32.mrf.mxu0
      %v585 = vadd.f32 %v522, %v584
      %586 = vmatmul.bf16.gmra.mxu0 %v346
      %v587 = vpop.f32.mrf.mxu0
      %v588 = vadd.f32 %v525, %v587
      %v589 = vpop.f32.mrf.mxu0
      %590 = vdwg.mxu0
      %v591 = vmax.f32 %v538, 0.0
      %v592 = vmax.f32 %v540, 0.0
      %v593 = vmax.f32 %v543, 0.0
      %v594 = vmax.f32 %v545, 0.0
      %v595 = vmax.f32 %v548, 0.0
      %v596 = vmax.f32 %v550, 0.0
      %v597 = vmax.f32 %v553, 0.0
      %v598 = vmax.f32 %v555, 0.0
      %v599 = vmax.f32 %v558, 0.0
      %v600 = vmax.f32 %v560, 0.0
      %v601 = vmax.f32 %v563, 0.0
      %v602 = vmax.f32 %v565, 0.0
      %v603 = vmax.f32 %v568, 0.0
      %v604 = vmax.f32 %v570, 0.0
      %v605 = vmax.f32 %v573, 0.0
      %v606 = vmax.f32 %v575, 0.0
      %v607 = vmax.f32 %v578, 0.0
      %v608 = vmax.f32 %v580, 0.0
      %v609 = vmax.f32 %v583, 0.0
      %v610 = vmax.f32 %v585, 0.0
      %v611 = vmax.f32 %v588, 0.0
      %v612 = vpack.c.bf16 %v591, %v591
      %v613 = vpack.c.bf16 %v592, %v592
      %v614 = vpack.c.bf16 %v593, %v593
      %v615 = vpack.c.bf16 %v594, %v594
      %v616 = vpack.c.bf16 %v595, %v595
      %v617 = vpack.c.bf16 %v596, %v596
      %v618 = vpack.c.bf16 %v597, %v597
      %v619 = vpack.c.bf16 %v598, %v598
      %v620 = vpack.c.bf16 %v599, %v599
      %v621 = vpack.c.bf16 %v600, %v600
      %v622 = vpack.c.bf16 %v601, %v601
      %v623 = vpack.c.bf16 %v602, %v602
      %v624 = vpack.c.bf16 %v603, %v603
      %v625 = vpack.c.bf16 %v604, %v604
      %v626 = vpack.c.bf16 %v605, %v605
      %v627 = vpack.c.bf16 %v606, %v606
      %v628 = vpack.c.bf16 %v607, %v607
      %v629 = vpack.c.bf16 %v608, %v608
      %v630 = vpack.c.bf16 %v609, %v609
      %v631 = vpack.c.bf16 %v610, %v610
      %v632 = vpack.c.bf16 %v611, %v611
      %vm633 = vcmask 257024
      %634 = vst.msk [vmem:[%s204] sm:$0xf] %vm633, %v612
      %635 = vst.msk [vmem:[%s204 + $0x4] sm:$0xf] %vm633, %v613
      %636 = vst.msk [vmem:[%s204 + $0x8] sm:$0xf] %vm633, %v614
      %637 = vst.msk [vmem:[%s204 + $0xc] sm:$0xf] %vm633, %v615
      %638 = vst.msk [vmem:[%s204 + $0x10] sm:$0xf] %vm633, %v616
      %639 = vst.msk [vmem:[%s204 + $0x14] sm:$0xf] %vm633, %v617
      %640 = vst.msk [vmem:[%s204 + $0x18] sm:$0xf] %vm633, %v618
      %641 = vst.msk [vmem:[%s204 + $0x1c] sm:$0xf] %vm633, %v619
      %642 = vst.msk [vmem:[%s204 + $0x20] sm:$0xf] %vm633, %v620
      %643 = vst.msk [vmem:[%s204 + $0x24] sm:$0xf] %vm633, %v621
      %644 = vst.msk [vmem:[%s204 + $0x28] sm:$0xf] %vm633, %v622
      %645 = vst.msk [vmem:[%s204 + $0x2c] sm:$0xf] %vm633, %v623
      %646 = vst.msk [vmem:[%s204 + $0x30] sm:$0xf] %vm633, %v624
      %647 = vst.msk [vmem:[%s204 + $0x34] sm:$0xf] %vm633, %v625
      %648 = vst.msk [vmem:[%s204 + $0x38] sm:$0xf] %vm633, %v626
      %649 = vst.msk [vmem:[%s204 + $0x3c] sm:$0xf] %vm633, %v627
      %650 = vst.msk [vmem:[%s204 + $0x40] sm:$0xf] %vm633, %v628
      %651 = vst.msk [vmem:[%s204 + $0x44] sm:$0xf] %vm633, %v629
      %652 = vst.msk [vmem:[%s204 + $0x48] sm:$0xf] %vm633, %v630
      %653 = vst.msk [vmem:[%s204 + $0x4c] sm:$0xf] %vm633, %v631
      %vm654 = vcmask 253952
      %655 = vst.msk [vmem:[%s204 + $0x50] sm:$0x1] %vm654, %v632
      %p656 = scmp.lt.s32.totalorder %s14, 1
      %s657 = scalar_select %p656, %s14, 1
      %s658 = smul.addr %s657, 21
      %s659 = smul.addr %s658, 4
      %s660 = scalar_lea.vmem %s3, %s659
      // Predicated region
      $region33: #{actor_critic_forward.4} parent=31 // pred_check
        %p661 = pneg %p110
      $region34: #{actor_critic_forward.4} parent=31 // pred_check_branch
        %663 = sbr.rel (%p661) target = $region36
      $region35: #{actor_critic_forward.4} parent=31 // pred_region
        _
      $region36: #{actor_critic_forward.4} parent=31 // pred_fallthru
        _
    $region32: #{actor_critic_forward.4} parent=5 // pred_fallthru
      _
    %p664 = scmp.le.s32.totalorder 2, %s9
    // Predicated region
    $region37: #{actor_critic_forward.4} parent=5 // pred_check
      %p665 = pneg %p664
    $region38: #{actor_critic_forward.4} parent=5 // pred_check_branch
      %667 = sbr.rel (%p665) target = $region40
    $region39: #{actor_critic_forward.4} parent=5 // pred_region
      %s668 = ssub.s32 %s9, 2
      // Predicated region
      $region41: #{actor_critic_forward.4} parent=39 // pred_check
        %p669 = pneg %p116
      $region42: #{actor_critic_forward.4} parent=39 // pred_check_branch
        %671 = sbr.rel (%p669) target = $region44
      $region43: #{actor_critic_forward.4} parent=39 // pred_region
        %p672 = scmp.lt.s32.totalorder %s15, 1
        %s673 = scalar_select %p672, %s15, 1
        %s674 = smul.addr %s673, 21
        %s675 = smul.addr %s674, 4
        %s676 = scalar_lea.vmem %s3, %s675
      $region44: #{actor_critic_forward.4} parent=39 // pred_fallthru
        _
    $region40: #{actor_critic_forward.4} parent=5 // pred_fallthru
      _
  $region6: #{actor_critic_forward.4} parent=0 // loop_footer
    %s13 = sadd.s32 1, %s9
  $region7: #{actor_critic_forward.4} parent=0 // loop_footer_branch
    %8 = sbr.rel target = $region3
  $region8: #{actor_critic_forward.4} parent=0 // loop_exit
    _

// kernel: actor_critic_forward.5
$region0: #{actor_critic_forward.5}
  #allocation0 [shape = 'u32[]', space=smem, size = 0x4, offset = 0x4, fixed_abs, tag = 'smem constant byte address 0x4 - core index']
  #allocation1 [shape = 'u32[72,128]{1,0:T(1,128)}', space=vmem, size = 0x9000, scoped, tag = 'internal scratch']
  %s0 = inlined_call_operand.vmem [shape: bf16[2,2,2592], index: 0, kind: input, shape index: {}]
  %s1 = inlined_call_operand.vmem [shape: bf16[2,2592,256], index: 1, kind: input, shape index: {}]
  %s2 = inlined_call_operand.vmem [shape: f32[2,1,256], index: 2, kind: input, shape index: {}]
  %s3 = inlined_call_operand.vmem [shape: bf16[2,256,8], index: 3, kind: input, shape index: {}]
  %s4 = inlined_call_operand.vmem [shape: f32[2,1,8], index: 4, kind: input, shape index: {}]
  %s5 = inlined_call_operand.vmem [shape: f32[2,2,8], index: 5, kind: output, shape index: {}]
  %s6 = sld [smem:[#allocation0]]
  $region53: #{actor_critic_forward.5} parent=0
    _
  %s8 = ssub.s32 1, %s6
  %s9 = scalar_select 0, %s8, %s6
  loop: start=0, step=1, limit=4
  $region2: #{actor_critic_forward.5} parent=0 // loop_pre_header
    _
  $region3: #{actor_critic_forward.5} parent=0 // loop_header
    %s11 = sphi 0, %s15
    %p12 = scmp.ge.s32.totalorder %s11, 4
    %s21 = sphi 0, %s23
    %s24 = sphi 0, %s21
    %s25 = sphi 0, %s24
    %s41 = sphi 0, %s25
    %s47 = sphi 0, %s49
    %s50 = sphi 0, %s47
    %s51 = sphi 0, %s50
    %s67 = sphi 0, %s51
    %s73 = sphi 0, %s75
    %s76 = sphi 0, %s73
    %s77 = sphi 0, %s76
    %s93 = sphi 0, %s77
    %s99 = sphi 0, %s101
    %s102 = sphi 0, %s99
    %s103 = sphi 0, %s102
    %s119 = sphi 0, %s103
    %s125 = sphi 0, %s127
    %s128 = sphi 0, %s125
    %s129 = sphi 0, %s128
    %s145 = sphi 0, %s129
    %s151 = sphi 0, %s153
    %s154 = sphi 0, %s151
    %s155 = sphi 0, %s154
    %s171 = sphi 0, %s155
  $region4: #{actor_critic_forward.5} parent=0 // loop_header_branch
    %14 = sbr.rel (%p12) target = $region8
  $region5: #{actor_critic_forward.5} parent=0 // loop_body
    %s16 = ssub.s32 %s11, 1
    %s17 = ssub.s32 %s11, 2
    %s18 = sadd.s32 %s11, 1
    %s19 = ssub.s32 %s11, %s18
    %p20 = scmp.eq.s32.totalorder %s19, 0
    %s22 = sadd.s32 %s21, 1
    %s23 = scalar_select %p20, %s21, %s22
    %p26 = pneg %p20
    %p27 = scmp.eq.s32.totalorder %s11, 1
    %p28 = por %p26, %p27
    %p29 = scmp.ne.s32.totalorder %s21, %s24
    %p30 = scmp.eq.s32.totalorder %s11, 0
    %p31 = por %p29, %p30
    %p32 = scmp.ne.s32.totalorder %s21, %s24
    %p33 = scmp.eq.s32.totalorder %s16, 1
    %p34 = por %p32, %p33
    %p35 = scmp.ne.s32.totalorder %s24, %s25
    %p36 = scmp.eq.s32.totalorder %s16, 0
    %p37 = por %p35, %p36
    %p38 = scmp.ne.s32.totalorder %s24, %s25
    %p39 = scmp.eq.s32.totalorder %s17, 1
    %p40 = por %p38, %p39
    %p42 = scmp.ne.s32.totalorder %s25, %s41
    %p43 = scmp.eq.s32.totalorder %s17, 0
    %p44 = por %p42, %p43
    %s45 = ssub.s32 %s11, %s18
    %p46 = scmp.eq.s32.totalorder %s45, 0
    %s48 = sadd.s32 %s47, 1
    %s49 = scalar_select %p46, %s47, %s48
    %p52 = pneg %p46
    %p53 = scmp.eq.s32.totalorder %s11, 1
    %p54 = por %p52, %p53
    %p55 = scmp.ne.s32.totalorder %s47, %s50
    %p56 = scmp.eq.s32.totalorder %s11, 0
    %p57 = por %p55, %p56
    %p58 = scmp.ne.s32.totalorder %s47, %s50
    %p59 = scmp.eq.s32.totalorder %s16, 1
    %p60 = por %p58, %p59
    %p61 = scmp.ne.s32.totalorder %s50, %s51
    %p62 = scmp.eq.s32.totalorder %s16, 0
    %p63 = por %p61, %p62
    %p64 = scmp.ne.s32.totalorder %s50, %s51
    %p65 = scmp.eq.s32.totalorder %s17, 1
    %p66 = por %p64, %p65
    %p68 = scmp.ne.s32.totalorder %s51, %s67
    %p69 = scmp.eq.s32.totalorder %s17, 0
    %p70 = por %p68, %p69
    %s71 = ssub.s32 %s11, %s18
    %p72 = scmp.eq.s32.totalorder %s71, 0
    %s74 = sadd.s32 %s73, 1
    %s75 = scalar_select %p72, %s73, %s74
    %p78 = pneg %p72
    %p79 = scmp.eq.s32.totalorder %s11, 1
    %p80 = por %p78, %p79
    %p81 = scmp.ne.s32.totalorder %s73, %s76
    %p82 = scmp.eq.s32.totalorder %s11, 0
    %p83 = por %p81, %p82
    %p84 = scmp.ne.s32.totalorder %s73, %s76
    %p85 = scmp.eq.s32.totalorder %s16, 1
    %p86 = por %p84, %p85
    %p87 = scmp.ne.s32.totalorder %s76, %s77
    %p88 = scmp.eq.s32.totalorder %s16, 0
    %p89 = por %p87, %p88
    %p90 = scmp.ne.s32.totalorder %s76, %s77
    %p91 = scmp.eq.s32.totalorder %s17, 1
    %p92 = por %p90, %p91
    %p94 = scmp.ne.s32.totalorder %s77, %s93
    %p95 = scmp.eq.s32.totalorder %s17, 0
    %p96 = por %p94, %p95
    %s97 = ssub.s32 %s11, %s18
    %p98 = scmp.eq.s32.totalorder %s97, 0
    %s100 = sadd.s32 %s99, 1
    %s101 = scalar_select %p98, %s99, %s100
    %p104 = pneg %p98
    %p105 = scmp.eq.s32.totalorder %s11, 1
    %p106 = por %p104, %p105
    %p107 = scmp.ne.s32.totalorder %s99, %s102
    %p108 = scmp.eq.s32.totalorder %s11, 0
    %p109 = por %p107, %p108
    %p110 = scmp.ne.s32.totalorder %s99, %s102
    %p111 = scmp.eq.s32.totalorder %s16, 1
    %p112 = por %p110, %p111
    %p113 = scmp.ne.s32.totalorder %s102, %s103
    %p114 = scmp.eq.s32.totalorder %s16, 0
    %p115 = por %p113, %p114
    %p116 = scmp.ne.s32.totalorder %s102, %s103
    %p117 = scmp.eq.s32.totalorder %s17, 1
    %p118 = por %p116, %p117
    %p120 = scmp.ne.s32.totalorder %s103, %s119
    %p121 = scmp.eq.s32.totalorder %s17, 0
    %p122 = por %p120, %p121
    %s123 = ssub.s32 %s11, %s18
    %p124 = scmp.eq.s32.totalorder %s123, 0
    %s126 = sadd.s32 %s125, 1
    %s127 = scalar_select %p124, %s125, %s126
    %p130 = pneg %p124
    %p131 = scmp.eq.s32.totalorder %s11, 1
    %p132 = por %p130, %p131
    %p133 = scmp.ne.s32.totalorder %s125, %s128
    %p134 = scmp.eq.s32.totalorder %s11, 0
    %p135 = por %p133, %p134
    %p136 = scmp.ne.s32.totalorder %s125, %s128
    %p137 = scmp.eq.s32.totalorder %s16, 1
    %p138 = por %p136, %p137
    %p139 = scmp.ne.s32.totalorder %s128, %s129
    %p140 = scmp.eq.s32.totalorder %s16, 0
    %p141 = por %p139, %p140
    %p142 = scmp.ne.s32.totalorder %s128, %s129
    %p143 = scmp.eq.s32.totalorder %s17, 1
    %p144 = por %p142, %p143
    %p146 = scmp.ne.s32.totalorder %s129, %s145
    %p147 = scmp.eq.s32.totalorder %s17, 0
    %p148 = por %p146, %p147
    %s149 = ssub.s32 %s11, %s18
    %p150 = scmp.eq.s32.totalorder %s149, 0
    %s152 = sadd.s32 %s151, 1
    %s153 = scalar_select %p150, %s151, %s152
    %p156 = pneg %p150
    %p157 = scmp.eq.s32.totalorder %s11, 1
    %p158 = por %p156, %p157
    %p159 = scmp.ne.s32.totalorder %s151, %s154
    %p160 = scmp.eq.s32.totalorder %s11, 0
    %p161 = por %p159, %p160
    %p162 = scmp.ne.s32.totalorder %s151, %s154
    %p163 = scmp.eq.s32.totalorder %s16, 1
    %p164 = por %p162, %p163
    %p165 = scmp.ne.s32.totalorder %s154, %s155
    %p166 = scmp.eq.s32.totalorder %s16, 0
    %p167 = por %p165, %p166
    %p168 = scmp.ne.s32.totalorder %s154, %s155
    %p169 = scmp.eq.s32.totalorder %s17, 1
    %p170 = por %p168, %p169
    %p172 = scmp.ne.s32.totalorder %s155, %s171
    %p173 = scmp.eq.s32.totalorder %s17, 0
    %p174 = por %p172, %p173
    %p175 = scmp.le.s32.totalorder 1, %s11
    %p176 = scmp.lt.s32.totalorder %s11, 3
    %p177 = pnand %p175, %p176
    %p178 = pneg %p177
    // Predicated region
    $region9: #{actor_critic_forward.5} parent=5 // pred_check
      _
    $region10: #{actor_critic_forward.5} parent=5 // pred_check_branch
      %180 = sbr.rel (%p177) target = $region12
    $region11: #{actor_critic_forward.5} parent=5 // pred_region
      %s181 = ssub.s32 %s11, 1
    $region12: #{actor_critic_forward.5} parent=5 // pred_fallthru
      _
    %p182 = scmp.lt.s32.totalorder %s11, 2
    // Predicated region
    $region13: #{actor_critic_forward.5} parent=5 // pred_check
      %p183 = pneg %p182
    $region14: #{actor_critic_forward.5} parent=5 // pred_check_branch
      %185 = sbr.rel (%p183) target = $region16
    $region15: #{actor_critic_forward.5} parent=5 // pred_region
      // Predicated region
      $region17: #{actor_critic_forward.5} parent=15 // pred_check
        %p186 = pneg %p31
      $region18: #{actor_critic_forward.5} parent=15 // pred_check_branch
        %188 = sbr.rel (%p186) target = $region20
      $region19: #{actor_critic_forward.5} parent=15 // pred_region
        %p189 = scmp.lt.s32.totalorder %s11, 1
        %s190 = scalar_select %p189, %s11, 1
        %s191 = smul.addr %s190, 21
        %s192 = scalar_lea.vmem %s0, %s191
      $region20: #{actor_critic_forward.5} parent=15 // pred_fallthru
        _
      // Predicated region
      $region21: #{actor_critic_forward.5} parent=15 // pred_check
        %p193 = pneg %p57
      $region22: #{actor_critic_forward.5} parent=15 // pred_check_branch
        %195 = sbr.rel (%p193) target = $region24
      $region23: #{actor_critic_forward.5} parent=15 // pred_region
        %p196 = scmp.lt.s32.totalorder %s11, 1
        %s197 = scalar_select %p196, %s11, 1
        %s198 = smul.addr %s197, 648
        %s199 = smul.addr %s198, 4
        %s200 = scalar_lea.vmem %s1, %s199
      $region24: #{actor_critic_forward.5} parent=15 // pred_fallthru
        _
      // Predicated region
      $region25: #{actor_critic_forward.5} parent=15 // pred_check
        %p201 = pneg %p83
      $region26: #{actor_critic_forward.5} parent=15 // pred_check_branch
        %203 = sbr.rel (%p201) target = $region28
      $region27: #{actor_critic_forward.5} parent=15 // pred_region
        %p204 = scmp.lt.s32.totalorder %s11, 1
        %s205 = scalar_select %p204, %s11, 1
        %s206 = smul.addr %s205, 2
        %s207 = scalar_lea.vmem %s2, %s206
      $region28: #{actor_critic_forward.5} parent=15 // pred_fallthru
        _
      // Predicated region
      $region29: #{actor_critic_forward.5} parent=15 // pred_check
        %p208 = pneg %p109
      $region30: #{actor_critic_forward.5} parent=15 // pred_check_branch
        %210 = sbr.rel (%p208) target = $region32
      $region31: #{actor_critic_forward.5} parent=15 // pred_region
        %p211 = scmp.lt.s32.totalorder %s11, 1
        %s212 = scalar_select %p211, %s11, 1
        %s213 = smul.addr %s212, 32
        %s214 = smul.addr %s213, 4
        %s215 = scalar_lea.vmem %s3, %s214
      $region32: #{actor_critic_forward.5} parent=15 // pred_fallthru
        _
      // Predicated region
      $region33: #{actor_critic_forward.5} parent=15 // pred_check
        %p216 = pneg %p135
      $region34: #{actor_critic_forward.5} parent=15 // pred_check_branch
        %218 = sbr.rel (%p216) target = $region36
      $region35: #{actor_critic_forward.5} parent=15 // pred_region
        %p219 = scmp.lt.s32.totalorder %s11, 1
        %s220 = scalar_select %p219, %s11, 1
        %s221 = scalar_lea.vmem %s4, %s220
      $region36: #{actor_critic_forward.5} parent=15 // pred_fallthru
        _
    $region16: #{actor_critic_forward.5} parent=5 // pred_fallthru
      _
    %p222 = scmp.le.s32.totalorder 1, %s11
    %p223 = scmp.lt.s32.totalorder %s11, 3
    %p224 = pnand %p222, %p223
    %p225 = pneg %p224
    // Predicated region
    $region37: #{actor_critic_forward.5} parent=5 // pred_check
      _
    $region38: #{actor_critic_forward.5} parent=5 // pred_check_branch
      %227 = sbr.rel (%p224) target = $region40
    $region39: #{actor_critic_forward.5} parent=5 // pred_region
      %s228 = ssub.s32 %s11, 1
      %p229 = scmp.lt.s32.totalorder %s16, 1
      %s230 = scalar_select %p229, %s16, 1
      %s231 = smul.addr %s230, 21
      %s232 = scalar_lea.vmem %s0, %s231
      %p233 = pneg %p37
      %p234 = pneg %p34
      %p235 = scmp.lt.s32.totalorder %s16, 1
      %s236 = scalar_select %p235, %s16, 1
      %s237 = smul.addr %s236, 648
      %s238 = smul.addr %s237, 4
      %s239 = scalar_lea.vmem %s1, %s238
      %p240 = pneg %p63
      %p241 = pneg %p60
      %p242 = scmp.lt.s32.totalorder %s16, 1
      %s243 = scalar_select %p242, %s16, 1
      %s244 = smul.addr %s243, 2
      %s245 = scalar_lea.vmem %s2, %s244
      %p246 = pneg %p89
      %p247 = pneg %p86
      %p248 = scmp.lt.s32.totalorder %s16, 1
      %s249 = scalar_select %p248, %s16, 1
      %s250 = smul.addr %s249, 32
      %s251 = smul.addr %s250, 4
      %s252 = scalar_lea.vmem %s3, %s251
      %p253 = pneg %p115
      %p254 = pneg %p112
      %p255 = scmp.lt.s32.totalorder %s16, 1
      %s256 = scalar_select %p255, %s16, 1
      %s257 = scalar_lea.vmem %s4, %s256
      %p258 = pneg %p141
      %p259 = pneg %p138
      %p260 = pneg %p167
      %p261 = pneg %p164
      %p262 = scmp.lt.s32.totalorder %s16, 1
      %s263 = scalar_select %p262, %s16, 1
      %s264 = smul.addr %s263, 2
      %s265 = scalar_lea.vmem %s5, %s264
      %p266 = scmp.lt.s32.totalorder %s16, 1
      %s267 = scalar_select %p266, %s16, 1
      %s268 = smul.addr %s267, 21
      %s269 = scalar_lea.vmem %s0, %s268
      %p270 = scmp.lt.s32.totalorder %s16, 1
      %s271 = scalar_select %p270, %s16, 1
      %s272 = smul.addr %s271, 648
      %s273 = smul.addr %s272, 4
      %s274 = scalar_lea.vmem %s1, %s273
      %p275 = scmp.lt.s32.totalorder %s16, 1
      %s276 = scalar_select %p275, %s16, 1
      %s277 = smul.addr %s276, 2
      %s278 = scalar_lea.vmem %s2, %s277
      %p279 = scmp.lt.s32.totalorder %s16, 1
      %s280 = scalar_select %p279, %s16, 1
      %s281 = smul.addr %s280, 32
      %s282 = smul.addr %s281, 4
      %s283 = scalar_lea.vmem %s3, %s282
      %p284 = scmp.lt.s32.totalorder %s16, 1
      %s285 = scalar_select %p284, %s16, 1
      %s286 = scalar_lea.vmem %s4, %s285
      %p287 = scmp.lt.s32.totalorder %s16, 1
      %s288 = scalar_select %p287, %s16, 1
      %s289 = smul.addr %s288, 2
      %s290 = scalar_lea.vmem %s5, %s289
      %v292 = vld [vmem:[%s269] sm:$0xff]
      %v293 = vld [vmem:[%s269 + $0x8] sm:$0xff]
      %v294 = vld [vmem:[%s269 + $0x10] sm:$0x1f]
      %v295 = vld [vmem:[%s274] sm:$0xff]
      %v296 = vld [vmem:[%s274 + $0x8] sm:$0xff]
      %v297 = vld [vmem:[%s274 + $0x10] sm:$0xff]
      %v298 = vld [vmem:[%s274 + $0x18] sm:$0xff]
      %v299 = vld [vmem:[%s274 + $0x20] sm:$0xff]
      %v300 = vld [vmem:[%s274 + $0x28] sm:$0xff]
      %v301 = vld [vmem:[%s274 + $0x30] sm:$0xff]
      %v302 = vld [vmem:[%s274 + $0x38] sm:$0xff]
      %v303 = vld [vmem:[%s274 + $0x40] sm:$0xff]
      %v304 = vld [vmem:[%s274 + $0x48] sm:$0xff]
      %v305 = vld [vmem:[%s274 + $0x50] sm:$0xff]
      %v306 = vld [vmem:[%s274 + $0x58] sm:$0xff]
      %v307 = vld [vmem:[%s274 + $0x60] sm:$0xff]
      %v308 = vld [vmem:[%s274 + $0x68] sm:$0xff]
      %v309 = vld [vmem:[%s274 + $0x70] sm:$0xff]
      %v310 = vld [vmem:[%s274 + $0x78] sm:$0xff]
      %v311 = vld [vmem:[%s274 + $0x80] sm:$0xff]
      %v312 = vld [vmem:[%s274 + $0x88] sm:$0xff]
      %v313 = vld [vmem:[%s274 + $0x90] sm:$0xff]
      %v314 = vld [vmem:[%s274 + $0x98] sm:$0xff]
      %v315 = vld [vmem:[%s274 + $0xa0] sm:$0xff]
      %v316 = vld [vmem:[%s274 + $0xa8] sm:$0xff]
      %v317 = vld [vmem:[%s274 + $0xb0] sm:$0xff]
      %v318 = vld [vmem:[%s274 + $0xb8] sm:$0xff]
      %v319 = vld [vmem:[%s274 + $0xc0] sm:$0xff]
      %v320 = vld [vmem:[%s274 + $0xc8] sm:$0xff]
      %v321 = vld [vmem:[%s274 + $0xd0] sm:$0xff]
      %v322 = vld [vmem:[%s274 + $0xd8] sm:$0xff]
      %v323 = vld [vmem:[%s274 + $0xe0] sm:$0xff]
      %v324 = vld [vmem:[%s274 + $0xe8] sm:$0xff]
      %v325 = vld [vmem:[%s274 + $0xf0] sm:$0xff]
      %v326 = vld [vmem:[%s274 + $0xf8] sm:$0xff]
      %v327 = vld [vmem:[%s274 + $0x100] sm:$0xff]
      %v328 = vld [vmem:[%s274 + $0x108] sm:$0xff]
      %v329 = vld [vmem:[%s274 + $0x110] sm:$0xff]
      %v330 = vld [vmem:[%s274 + $0x118] sm:$0xff]
      %v331 = vld [vmem:[%s274 + $0x120] sm:$0xff]
      %v332 = vld [vmem:[%s274 + $0x128] sm:$0xff]
      %v333 = vld [vmem:[%s274 + $0x130] sm:$0xff]
      %v334 = vld [vmem:[%s274 + $0x138] sm:$0xff]
      %v335 = vld [vmem:[%s274 + $0x140] sm:$0xff]
      %v336 = vld [vmem:[%s274 + $0x148] sm:$0xff]
      %v337 = vld [vmem:[%s274 + $0x150] sm:$0xff]
      %v338 = vld [vmem:[%s274 + $0x158] sm:$0xff]
      %v339 = vld [vmem:[%s274 + $0x160] sm:$0xff]
      %v340 = vld [vmem:[%s274 + $0x168] sm:$0xff]
      %v341 = vld [vmem:[%s274 + $0x170] sm:$0xff]
      %v342 = vld [vmem:[%s274 + $0x178] sm:$0xff]
      %v343 = vld [vmem:[%s274 + $0x180] sm:$0xff]
      %v344 = vld [vmem:[%s274 + $0x188] sm:$0xff]
      %v345 = vld [vmem:[%s274 + $0x190] sm:$0xff]
      %v346 = vld [vmem:[%s274 + $0x198] sm:$0xff]
      %v347 = vld [vmem:[%s274 + $0x1a0] sm:$0xff]
      %v348 = vld [vmem:[%s274 + $0x1a8] sm:$0xff]
      %v349 = vld [vmem:[%s274 + $0x1b0] sm:$0xff]
      %v350 = vld [vmem:[%s274 + $0x1b8] sm:$0xff]
      %v351 = vld [vmem:[%s274 + $0x1c0] sm:$0xff]
      %v352 = vld [vmem:[%s274 + $0x1c8] sm:$0xff]
      %v353 = vld [vmem:[%s274 + $0x1d0] sm:$0xff]
      %v354 = vld [vmem:[%s274 + $0x1d8] sm:$0xff]
      %v355 = vld [vmem:[%s274 + $0x1e0] sm:$0xff]
      %v356 = vld [vmem:[%s274 + $0x1e8] sm:$0xff]
      %v357 = vld [vmem:[%s274 + $0x1f0] sm:$0xff]
      %v358 = vld [vmem:[%s274 + $0x1f8] sm:$0xff]
      %v359 = vld [vmem:[%s274 + $0x200] sm:$0xff]
      %v360 = vld [vmem:[%s274 + $0x208] sm:$0xff]
      %v361 = vld [vmem:[%s274 + $0x210] sm:$0xff]
      %v362 = vld [vmem:[%s274 + $0x218] sm:$0xff]
      %v363 = vld [vmem:[%s274 + $0x220] sm:$0xff]
      %v364 = vld [vmem:[%s274 + $0x228] sm:$0xff]
      %v365 = vld [vmem:[%s274 + $0x230] sm:$0xff]
      %v366 = vld [vmem:[%s274 + $0x238] sm:$0xff]
      %v367 = vld [vmem:[%s274 + $0x240] sm:$0xff]
      %v368 = vld [vmem:[%s274 + $0x248] sm:$0xff]
      %v369 = vld [vmem:[%s274 + $0x250] sm:$0xff]
      %v370 = vld [vmem:[%s274 + $0x258] sm:$0xff]
      %v371 = vld [vmem:[%s274 + $0x260] sm:$0xff]
      %v372 = vld [vmem:[%s274 + $0x268] sm:$0xff]
      %v373 = vld [vmem:[%s274 + $0x270] sm:$0xff]
      %v374 = vld [vmem:[%s274 + $0x278] sm:$0xff]
      %v375 = vld [vmem:[%s274 + $0x280] sm:$0xff]
      %v376 = vld [vmem:[%s274 + $0x288] sm:$0xff]
      %v377 = vld [vmem:[%s274 + $0x290] sm:$0xff]
      %v378 = vld [vmem:[%s274 + $0x298] sm:$0xff]
      %v379 = vld [vmem:[%s274 + $0x2a0] sm:$0xff]
      %v380 = vld [vmem:[%s274 + $0x2a8] sm:$0xff]
      %v381 = vld [vmem:[%s274 + $0x2b0] sm:$0xff]
      %v382 = vld [vmem:[%s274 + $0x2b8] sm:$0xff]
      %v383 = vld [vmem:[%s274 + $0x2c0] sm:$0xff]
      %v384 = vld [vmem:[%s274 + $0x2c8] sm:$0xff]
      %v385 = vld [vmem:[%s274 + $0x2d0] sm:$0xff]
      %v386 = vld [vmem:[%s274 + $0x2d8] sm:$0xff]
      %v387 = vld [vmem:[%s274 + $0x2e0] sm:$0xff]
      %v388 = vld [vmem:[%s274 + $0x2e8] sm:$0xff]
      %v389 = vld [vmem:[%s274 + $0x2f0] sm:$0xff]
      %v390 = vld [vmem:[%s274 + $0x2f8] sm:$0xff]
      %v391 = vld [vmem:[%s274 + $0x300] sm:$0xff]
      %v392 = vld [vmem:[%s274 + $0x308] sm:$0xff]
      %v393 = vld [vmem:[%s274 + $0x310] sm:$0xff]
      %v394 = vld [vmem:[%s274 + $0x318] sm:$0xff]
      %v395 = vld [vmem:[%s274 + $0x320] sm:$0xff]
      %v396 = vld [vmem:[%s274 + $0x328] sm:$0xff]
      %v397 = vld [vmem:[%s274 + $0x330] sm:$0xff]
      %v398 = vld [vmem:[%s274 + $0x338] sm:$0xff]
      %v399 = vld [vmem:[%s274 + $0x340] sm:$0xff]
      %v400 = vld [vmem:[%s274 + $0x348] sm:$0xff]
      %v401 = vld [vmem:[%s274 + $0x350] sm:$0xff]
      %v402 = vld [vmem:[%s274 + $0x358] sm:$0xff]
      %v403 = vld [vmem:[%s274 + $0x360] sm:$0xff]
      %v404 = vld [vmem:[%s274 + $0x368] sm:$0xff]
      %v405 = vld [vmem:[%s274 + $0x370] sm:$0xff]
      %v406 = vld [vmem:[%s274 + $0x378] sm:$0xff]
      %v407 = vld [vmem:[%s274 + $0x380] sm:$0xff]
      %v408 = vld [vmem:[%s274 + $0x388] sm:$0xff]
      %v409 = vld [vmem:[%s274 + $0x390] sm:$0xff]
      %v410 = vld [vmem:[%s274 + $0x398] sm:$0xff]
      %v411 = vld [vmem:[%s274 + $0x3a0] sm:$0xff]
      %v412 = vld [vmem:[%s274 + $0x3a8] sm:$0xff]
      %v413 = vld [vmem:[%s274 + $0x3b0] sm:$0xff]
      %v414 = vld [vmem:[%s274 + $0x3b8] sm:$0xff]
      %v415 = vld [vmem:[%s274 + $0x3c0] sm:$0xff]
      %v416 = vld [vmem:[%s274 + $0x3c8] sm:$0xff]
      %v417 = vld [vmem:[%s274 + $0x3d0] sm:$0xff]
      %v418 = vld [vmem:[%s274 + $0x3d8] sm:$0xff]
      %v419 = vld [vmem:[%s274 + $0x3e0] sm:$0xff]
      %v420 = vld [vmem:[%s274 + $0x3e8] sm:$0xff]
      %v421 = vld [vmem:[%s274 + $0x3f0] sm:$0xff]
      %v422 = vld [vmem:[%s274 + $0x3f8] sm:$0xff]
      %v423 = vld [vmem:[%s274 + $0x400] sm:$0xff]
      %v424 = vld [vmem:[%s274 + $0x408] sm:$0xff]
      %v425 = vld [vmem:[%s274 + $0x410] sm:$0xff]
      %v426 = vld [vmem:[%s274 + $0x418] sm:$0xff]
      %v427 = vld [vmem:[%s274 + $0x420] sm:$0xff]
      %v428 = vld [vmem:[%s274 + $0x428] sm:$0xff]
      %v429 = vld [vmem:[%s274 + $0x430] sm:$0xff]
      %v430 = vld [vmem:[%s274 + $0x438] sm:$0xff]
      %v431 = vld [vmem:[%s274 + $0x440] sm:$0xff]
      %v432 = vld [vmem:[%s274 + $0x448] sm:$0xff]
      %v433 = vld [vmem:[%s274 + $0x450] sm:$0xff]
      %v434 = vld [vmem:[%s274 + $0x458] sm:$0xff]
      %v435 = vld [vmem:[%s274 + $0x460] sm:$0xff]
      %v436 = vld [vmem:[%s274 + $0x468] sm:$0xff]
      %v437 = vld [vmem:[%s274 + $0x470] sm:$0xff]
      %v438 = vld [vmem:[%s274 + $0x478] sm:$0xff]
      %v439 = vld [vmem:[%s274 + $0x480] sm:$0xff]
      %v440 = vld [vmem:[%s274 + $0x488] sm:$0xff]
      %v441 = vld [vmem:[%s274 + $0x490] sm:$0xff]
      %v442 = vld [vmem:[%s274 + $0x498] sm:$0xff]
      %v443 = vld [vmem:[%s274 + $0x4a0] sm:$0xff]
      %v444 = vld [vmem:[%s274 + $0x4a8] sm:$0xff]
      %v445 = vld [vmem:[%s274 + $0x4b0] sm:$0xff]
      %v446 = vld [vmem:[%s274 + $0x4b8] sm:$0xff]
      %v447 = vld [vmem:[%s274 + $0x4c0] sm:$0xff]
      %v448 = vld [vmem:[%s274 + $0x4c8] sm:$0xff]
      %v449 = vld [vmem:[%s274 + $0x4d0] sm:$0xff]
      %v450 = vld [vmem:[%s274 + $0x4d8] sm:$0xff]
      %v451 = vld [vmem:[%s274 + $0x4e0] sm:$0xff]
      %v452 = vld [vmem:[%s274 + $0x4e8] sm:$0xff]
      %v453 = vld [vmem:[%s274 + $0x4f0] sm:$0xff]
      %v454 = vld [vmem:[%s274 + $0x4f8] sm:$0xff]
      %v455 = vld [vmem:[%s274 + $0x500] sm:$0xff]
      %v456 = vld [vmem:[%s274 + $0x508] sm:$0xff]
      %v457 = vld [vmem:[%s274 + $0x510] sm:$0xff]
      %v458 = vld [vmem:[%s274 + $0x518] sm:$0xff]
      %v459 = vld [vmem:[%s274 + $0x520] sm:$0xff]
      %v460 = vld [vmem:[%s274 + $0x528] sm:$0xff]
      %v461 = vld [vmem:[%s274 + $0x530] sm:$0xff]
      %v462 = vld [vmem:[%s274 + $0x538] sm:$0xff]
      %v463 = vld [vmem:[%s274 + $0x540] sm:$0xff]
      %v464 = vld [vmem:[%s274 + $0x548] sm:$0xff]
      %v465 = vld [vmem:[%s274 + $0x550] sm:$0xff]
      %v466 = vld [vmem:[%s274 + $0x558] sm:$0xff]
      %v467 = vld [vmem:[%s274 + $0x560] sm:$0xff]
      %v468 = vld [vmem:[%s274 + $0x568] sm:$0xff]
      %v469 = vld [vmem:[%s274 + $0x570] sm:$0xff]
      %v470 = vld [vmem:[%s274 + $0x578] sm:$0xff]
      %v471 = vld [vmem:[%s274 + $0x580] sm:$0xff]
      %v472 = vld [vmem:[%s274 + $0x588] sm:$0xff]
      %v473 = vld [vmem:[%s274 + $0x590] sm:$0xff]
      %v474 = vld [vmem:[%s274 + $0x598] sm:$0xff]
      %v475 = vld [vmem:[%s274 + $0x5a0] sm:$0xff]
      %v476 = vld [vmem:[%s274 + $0x5a8] sm:$0xff]
      %v477 = vld [vmem:[%s274 + $0x5b0] sm:$0xff]
      %v478 = vld [vmem:[%s274 + $0x5b8] sm:$0xff]
      %v479 = vld [vmem:[%s274 + $0x5c0] sm:$0xff]
      %v480 = vld [vmem:[%s274 + $0x5c8] sm:$0xff]
      %v481 = vld [vmem:[%s274 + $0x5d0] sm:$0xff]
      %v482 = vld [vmem:[%s274 + $0x5d8] sm:$0xff]
      %v483 = vld [vmem:[%s274 + $0x5e0] sm:$0xff]
      %v484 = vld [vmem:[%s274 + $0x5e8] sm:$0xff]
      %v485 = vld [vmem:[%s274 + $0x5f0] sm:$0xff]
      %v486 = vld [vmem:[%s274 + $0x5f8] sm:$0xff]
      %v487 = vld [vmem:[%s274 + $0x600] sm:$0xff]
      %v488 = vld [vmem:[%s274 + $0x608] sm:$0xff]
      %v489 = vld [vmem:[%s274 + $0x610] sm:$0xff]
      %v490 = vld [vmem:[%s274 + $0x618] sm:$0xff]
      %v491 = vld [vmem:[%s274 + $0x620] sm:$0xff]
      %v492 = vld [vmem:[%s274 + $0x628] sm:$0xff]
      %v493 = vld [vmem:[%s274 + $0x630] sm:$0xff]
      %v494 = vld [vmem:[%s274 + $0x638] sm:$0xff]
      %v495 = vld [vmem:[%s274 + $0x640] sm:$0xff]
      %v496 = vld [vmem:[%s274 + $0x648] sm:$0xff]
      %v497 = vld [vmem:[%s274 + $0x650] sm:$0xff]
      %v498 = vld [vmem:[%s274 + $0x658] sm:$0xff]
      %v499 = vld [vmem:[%s274 + $0x660] sm:$0xff]
      %v500 = vld [vmem:[%s274 + $0x668] sm:$0xff]
      %v501 = vld [vmem:[%s274 + $0x670] sm:$0xff]
      %v502 = vld [vmem:[%s274 + $0x678] sm:$0xff]
      %v503 = vld [vmem:[%s274 + $0x680] sm:$0xff]
      %v504 = vld [vmem:[%s274 + $0x688] sm:$0xff]
      %v505 = vld [vmem:[%s274 + $0x690] sm:$0xff]
      %v506 = vld [vmem:[%s274 + $0x698] sm:$0xff]
      %v507 = vld [vmem:[%s274 + $0x6a0] sm:$0xff]
      %v508 = vld [vmem:[%s274 + $0x6a8] sm:$0xff]
      %v509 = vld [vmem:[%s274 + $0x6b0] sm:$0xff]
      %v510 = vld [vmem:[%s274 + $0x6b8] sm:$0xff]
      %v511 = vld [vmem:[%s274 + $0x6c0] sm:$0xff]
      %v512 = vld [vmem:[%s274 + $0x6c8] sm:$0xff]
      %v513 = vld [vmem:[%s274 + $0x6d0] sm:$0xff]
      %v514 = vld [vmem:[%s274 + $0x6d8] sm:$0xff]
      %v515 = vld [vmem:[%s274 + $0x6e0] sm:$0xff]
      %v516 = vld [vmem:[%s274 + $0x6e8] sm:$0xff]
      %v517 = vld [vmem:[%s274 + $0x6f0] sm:$0xff]
      %v518 = vld [vmem:[%s274 + $0x6f8] sm:$0xff]
      %v519 = vld [vmem:[%s274 + $0x700] sm:$0xff]
      %v520 = vld [vmem:[%s274 + $0x708] sm:$0xff]
      %v521 = vld [vmem:[%s274 + $0x710] sm:$0xff]
      %v522 = vld [vmem:[%s274 + $0x718] sm:$0xff]
      %v523 = vld [vmem:[%s274 + $0x720] sm:$0xff]
      %v524 = vld [vmem:[%s274 + $0x728] sm:$0xff]
      %v525 = vld [vmem:[%s274 + $0x730] sm:$0xff]
      %v526 = vld [vmem:[%s274 + $0x738] sm:$0xff]
      %v527 = vld [vmem:[%s274 + $0x740] sm:$0xff]
      %v528 = vld [vmem:[%s274 + $0x748] sm:$0xff]
      %v529 = vld [vmem:[%s274 + $0x750] sm:$0xff]
      %v530 = vld [vmem:[%s274 + $0x758] sm:$0xff]
      %v531 = vld [vmem:[%s274 + $0x760] sm:$0xff]
      %v532 = vld [vmem:[%s274 + $0x768] sm:$0xff]
      %v533 = vld [vmem:[%s274 + $0x770] sm:$0xff]
      %v534 = vld [vmem:[%s274 + $0x778] sm:$0xff]
      %v535 = vld [vmem:[%s274 + $0x780] sm:$0xff]
      %v536 = vld [vmem:[%s274 + $0x788] sm:$0xff]
      %v537 = vld [vmem:[%s274 + $0x790] sm:$0xff]
      %v538 = vld [vmem:[%s274 + $0x798] sm:$0xff]
      %v539 = vld [vmem:[%s274 + $0x7a0] sm:$0xff]
      %v540 = vld [vmem:[%s274 + $0x7a8] sm:$0xff]
      %v541 = vld [vmem:[%s274 + $0x7b0] sm:$0xff]
      %v542 = vld [vmem:[%s274 + $0x7b8] sm:$0xff]
      %v543 = vld [vmem:[%s274 + $0x7c0] sm:$0xff]
      %v544 = vld [vmem:[%s274 + $0x7c8] sm:$0xff]
      %v545 = vld [vmem:[%s274 + $0x7d0] sm:$0xff]
      %v546 = vld [vmem:[%s274 + $0x7d8] sm:$0xff]
      %v547 = vld [vmem:[%s274 + $0x7e0] sm:$0xff]
      %v548 = vld [vmem:[%s274 + $0x7e8] sm:$0xff]
      %v549 = vld [vmem:[%s274 + $0x7f0] sm:$0xff]
      %v550 = vld [vmem:[%s274 + $0x7f8] sm:$0xff]
      %v551 = vld [vmem:[%s274 + $0x800] sm:$0xff]
      %v552 = vld [vmem:[%s274 + $0x808] sm:$0xff]
      %v553 = vld [vmem:[%s274 + $0x810] sm:$0xff]
      %v554 = vld [vmem:[%s274 + $0x818] sm:$0xff]
      %v555 = vld [vmem:[%s274 + $0x820] sm:$0xff]
      %v556 = vld [vmem:[%s274 + $0x828] sm:$0xff]
      %v557 = vld [vmem:[%s274 + $0x830] sm:$0xff]
      %v558 = vld [vmem:[%s274 + $0x838] sm:$0xff]
      %v559 = vld [vmem:[%s274 + $0x840] sm:$0xff]
      %v560 = vld [vmem:[%s274 + $0x848] sm:$0xff]
      %v561 = vld [vmem:[%s274 + $0x850] sm:$0xff]
      %v562 = vld [vmem:[%s274 + $0x858] sm:$0xff]
      %v563 = vld [vmem:[%s274 + $0x860] sm:$0xff]
      %v564 = vld [vmem:[%s274 + $0x868] sm:$0xff]
      %v565 = vld [vmem:[%s274 + $0x870] sm:$0xff]
      %v566 = vld [vmem:[%s274 + $0x878] sm:$0xff]
      %v567 = vld [vmem:[%s274 + $0x880] sm:$0xff]
      %v568 = vld [vmem:[%s274 + $0x888] sm:$0xff]
      %v569 = vld [vmem:[%s274 + $0x890] sm:$0xff]
      %v570 = vld [vmem:[%s274 + $0x898] sm:$0xff]
      %v571 = vld [vmem:[%s274 + $0x8a0] sm:$0xff]
      %v572 = vld [vmem:[%s274 + $0x8a8] sm:$0xff]
      %v573 = vld [vmem:[%s274 + $0x8b0] sm:$0xff]
      %v574 = vld [vmem:[%s274 + $0x8b8] sm:$0xff]
      %v575 = vld [vmem:[%s274 + $0x8c0] sm:$0xff]
      %v576 = vld [vmem:[%s274 + $0x8c8] sm:$0xff]
      %v577 = vld [vmem:[%s274 + $0x8d0] sm:$0xff]
      %v578 = vld [vmem:[%s274 + $0x8d8] sm:$0xff]
      %v579 = vld [vmem:[%s274 + $0x8e0] sm:$0xff]
      %v580 = vld [vmem:[%s274 + $0x8e8] sm:$0xff]
      %v581 = vld [vmem:[%s274 + $0x8f0] sm:$0xff]
      %v582 = vld [vmem:[%s274 + $0x8f8] sm:$0xff]
      %v583 = vld [vmem:[%s274 + $0x900] sm:$0xff]
      %v584 = vld [vmem:[%s274 + $0x908] sm:$0xff]
      %v585 = vld [vmem:[%s274 + $0x910] sm:$0xff]
      %v586 = vld [vmem:[%s274 + $0x918] sm:$0xff]
      %v587 = vld [vmem:[%s274 + $0x920] sm:$0xff]
      %v588 = vld [vmem:[%s274 + $0x928] sm:$0xff]
      %v589 = vld [vmem:[%s274 + $0x930] sm:$0xff]
      %v590 = vld [vmem:[%s274 + $0x938] sm:$0xff]
      %v591 = vld [vmem:[%s274 + $0x940] sm:$0xff]
      %v592 = vld [vmem:[%s274 + $0x948] sm:$0xff]
      %v593 = vld [vmem:[%s274 + $0x950] sm:$0xff]
      %v594 = vld [vmem:[%s274 + $0x958] sm:$0xff]
      %v595 = vld [vmem:[%s274 + $0x960] sm:$0xff]
      %v596 = vld [vmem:[%s274 + $0x968] sm:$0xff]
      %v597 = vld [vmem:[%s274 + $0x970] sm:$0xff]
      %v598 = vld [vmem:[%s274 + $0x978] sm:$0xff]
      %v599 = vld [vmem:[%s274 + $0x980] sm:$0xff]
      %v600 = vld [vmem:[%s274 + $0x988] sm:$0xff]
      %v601 = vld [vmem:[%s274 + $0x990] sm:$0xff]
      %v602 = vld [vmem:[%s274 + $0x998] sm:$0xff]
      %v603 = vld [vmem:[%s274 + $0x9a0] sm:$0xff]
      %v604 = vld [vmem:[%s274 + $0x9a8] sm:$0xff]
      %v605 = vld [vmem:[%s274 + $0x9b0] sm:$0xff]
      %v606 = vld [vmem:[%s274 + $0x9b8] sm:$0xff]
      %v607 = vld [vmem:[%s274 + $0x9c0] sm:$0xff]
      %v608 = vld [vmem:[%s274 + $0x9c8] sm:$0xff]
      %v609 = vld [vmem:[%s274 + $0x9d0] sm:$0xff]
      %v610 = vld [vmem:[%s274 + $0x9d8] sm:$0xff]
      %v611 = vld [vmem:[%s274 + $0x9e0] sm:$0xff]
      %v612 = vld [vmem:[%s274 + $0x9e8] sm:$0xff]
      %v613 = vld [vmem:[%s274 + $0x9f0] sm:$0xff]
      %v614 = vld [vmem:[%s274 + $0x9f8] sm:$0xff]
      %v615 = vld [vmem:[%s274 + $0xa00] sm:$0xff]
      %v616 = vld [vmem:[%s274 + $0xa08] sm:$0xff]
      %v617 = vld [vmem:[%s274 + $0xa10] sm:$0xff]
      %v618 = vld [vmem:[%s274 + $0xa18] sm:$0xff]
      %v619 = vld [vmem:[%s278] sm:$0x3]
      %v621 = vperm.slane %v619, 0
      %v622 = vperm.slane %v619, 1
      %626 = vst [vmem:[#allocation1] ss:$9 sm:$0xff] %v292
      %v627 = vld [vmem:[#allocation1] sm:$0xff]
      %v628 = vld [vmem:[#allocation1 + $0x9] sm:$0xff]
      %v629 = vld [vmem:[#allocation1 + $0x12] sm:$0xff]
      %v630 = vld [vmem:[#allocation1 + $0x1b] sm:$0xff]
      %v631 = vld [vmem:[#allocation1 + $0x24] sm:$0xff]
      %v632 = vld [vmem:[#allocation1 + $0x2d] sm:$0xff]
      %v633 = vld [vmem:[#allocation1 + $0x36] sm:$0xff]
      %v634 = vld [vmem:[#allocation1 + $0x3f] sm:$0xff]
      %636 = vst [vmem:[#allocation1] ss:$9 sm:$0xff] %v293
      %v637 = vld [vmem:[#allocation1] sm:$0xff]
      %v638 = vld [vmem:[#allocation1 + $0x9] sm:$0xff]
      %v639 = vld [vmem:[#allocation1 + $0x12] sm:$0xff]
      %v640 = vld [vmem:[#allocation1 + $0x1b] sm:$0xff]
      %v641 = vld [vmem:[#allocation1 + $0x24] sm:$0xff]
      %v642 = vld [vmem:[#allocation1 + $0x2d] sm:$0xff]
      %v643 = vld [vmem:[#allocation1 + $0x36] sm:$0xff]
      %v644 = vld [vmem:[#allocation1 + $0x3f] sm:$0xff]
      %646 = vst [vmem:[#allocation1] ss:$9 sm:$0xff] %v294
      %v647 = vld [vmem:[#allocation1] sm:$0xff]
      %v648 = vld [vmem:[#allocation1 + $0x9] sm:$0xff]
      %v649 = vld [vmem:[#allocation1 + $0x12] sm:$0xff]
      %v650 = vld [vmem:[#allocation1 + $0x1b] sm:$0xff]
      %v651 = vld [vmem:[#allocation1 + $0x24] sm:$0xff]
      %v996 = vunpack.c.l.b16 %v295
      %v997 = vunpack.c.h.b16 %v295
      %v998 = vunpack.c.l.b16 %v296
      %v999 = vunpack.c.h.b16 %v296
      %v1000 = vunpack.c.l.b16 %v297
      %v1001 = vunpack.c.h.b16 %v297
      %v1002 = vunpack.c.l.b16 %v298
      %v1003 = vunpack.c.h.b16 %v298
      %v1004 = vunpack.c.l.b16 %v299
      %v1005 = vunpack.c.h.b16 %v299
      %v1006 = vunpack.c.l.b16 %v300
      %v1007 = vunpack.c.h.b16 %v300
      %v1008 = vunpack.c.l.b16 %v301
      %v1009 = vunpack.c.h.b16 %v301
      %v1010 = vunpack.c.l.b16 %v302
      %v1011 = vunpack.c.h.b16 %v302
      %v1012 = vunpack.c.l.b16 %v303
      %v1013 = vunpack.c.h.b16 %v303
      %v1014 = vunpack.c.l.b16 %v304
      %v1015 = vunpack.c.h.b16 %v304
      %v1016 = vunpack.c.l.b16 %v305
      %v1017 = vunpack.c.h.b16 %v305
      %v1018 = vunpack.c.l.b16 %v306
      %v1019 = vunpack.c.h.b16 %v306
      %v1020 = vunpack.c.l.b16 %v307
      %v1021 = vunpack.c.h.b16 %v307
      %v1022 = vunpack.c.l.b16 %v308
      %v1023 = vunpack.c.h.b16 %v308
      %v1024 = vunpack.c.l.b16 %v309
      %v1025 = vunpack.c.h.b16 %v309
      %v1026 = vunpack.c.l.b16 %v310
      %v1027 = vunpack.c.h.b16 %v310
      %v1028 = vunpack.c.l.b16 %v311
      %v1029 = vunpack.c.h.b16 %v311
      %v1030 = vunpack.c.l.b16 %v312
      %v1031 = vunpack.c.h.b16 %v312
      %v1032 = vunpack.c.l.b16 %v313
      %v1033 = vunpack.c.h.b16 %v313
      %v1034 = vunpack.c.l.b16 %v314
      %v1035 = vunpack.c.h.b16 %v314
      %v1036 = vunpack.c.l.b16 %v315
      %v1037 = vunpack.c.h.b16 %v315
      %v1038 = vunpack.c.l.b16 %v316
      %v1039 = vunpack.c.h.b16 %v316
      %v1040 = vunpack.c.l.b16 %v317
      %v1041 = vunpack.c.h.b16 %v317
      %v1042 = vunpack.c.l.b16 %v318
      %v1043 = vunpack.c.h.b16 %v318
      %v1044 = vunpack.c.l.b16 %v319
      %v1045 = vunpack.c.h.b16 %v319
      %v1046 = vunpack.c.l.b16 %v320
      %v1047 = vunpack.c.h.b16 %v320
      %v1048 = vunpack.c.l.b16 %v321
      %v1049 = vunpack.c.h.b16 %v321
      %v1050 = vunpack.c.l.b16 %v322
      %v1051 = vunpack.c.h.b16 %v322
      %v1052 = vunpack.c.l.b16 %v323
      %v1053 = vunpack.c.h.b16 %v323
      %v1054 = vunpack.c.l.b16 %v324
      %v1055 = vunpack.c.h.b16 %v324
      %v1056 = vunpack.c.l.b16 %v325
      %v1057 = vunpack.c.h.b16 %v325
      %v1058 = vunpack.c.l.b16 %v326
      %v1059 = vunpack.c.h.b16 %v326
      %v1060 = vunpack.c.l.b16 %v327
      %v1061 = vunpack.c.h.b16 %v327
      %v1062 = vunpack.c.l.b16 %v328
      %v1063 = vunpack.c.h.b16 %v328
      %v1064 = vunpack.c.l.b16 %v329
      %v1065 = vunpack.c.h.b16 %v329
      %v1066 = vunpack.c.l.b16 %v330
      %v1067 = vunpack.c.h.b16 %v330
      %v1068 = vunpack.c.l.b16 %v331
      %v1069 = vunpack.c.h.b16 %v331
      %v1070 = vunpack.c.l.b16 %v332
      %v1071 = vunpack.c.h.b16 %v332
      %v1072 = vunpack.c.l.b16 %v333
      %v1073 = vunpack.c.h.b16 %v333
      %v1074 = vunpack.c.l.b16 %v334
      %v1075 = vunpack.c.h.b16 %v334
      %v1076 = vunpack.c.l.b16 %v335
      %v1077 = vunpack.c.h.b16 %v335
      %v1078 = vunpack.c.l.b16 %v336
      %v1079 = vunpack.c.h.b16 %v336
      %v1080 = vunpack.c.l.b16 %v337
      %v1081 = vunpack.c.h.b16 %v337
      %v1082 = vunpack.c.l.b16 %v338
      %v1083 = vunpack.c.h.b16 %v338
      %v1084 = vunpack.c.l.b16 %v339
      %v1085 = vunpack.c.h.b16 %v339
      %v1086 = vunpack.c.l.b16 %v340
      %v1087 = vunpack.c.h.b16 %v340
      %v1088 = vunpack.c.l.b16 %v341
      %v1089 = vunpack.c.h.b16 %v341
      %v1090 = vunpack.c.l.b16 %v342
      %v1091 = vunpack.c.h.b16 %v342
      %v1092 = vunpack.c.l.b16 %v343
      %v1093 = vunpack.c.h.b16 %v343
      %v1094 = vunpack.c.l.b16 %v344
      %v1095 = vunpack.c.h.b16 %v344
      %v1096 = vunpack.c.l.b16 %v345
      %v1097 = vunpack.c.h.b16 %v345
      %v1098 = vunpack.c.l.b16 %v346
      %v1099 = vunpack.c.h.b16 %v346
      %v1100 = vunpack.c.l.b16 %v347
      %v1101 = vunpack.c.h.b16 %v347
      %v1102 = vunpack.c.l.b16 %v348
      %v1103 = vunpack.c.h.b16 %v348
      %v1104 = vunpack.c.l.b16 %v349
      %v1105 = vunpack.c.h.b16 %v349
      %v1106 = vunpack.c.l.b16 %v350
      %v1107 = vunpack.c.h.b16 %v350
      %v1108 = vunpack.c.l.b16 %v351
      %v1109 = vunpack.c.h.b16 %v351
      %v1110 = vunpack.c.l.b16 %v352
      %v1111 = vunpack.c.h.b16 %v352
      %v1112 = vunpack.c.l.b16 %v353
      %v1113 = vunpack.c.h.b16 %v353
      %v1114 = vunpack.c.l.b16 %v354
      %v1115 = vunpack.c.h.b16 %v354
      %v1116 = vunpack.c.l.b16 %v355
      %v1117 = vunpack.c.h.b16 %v355
      %v1118 = vunpack.c.l.b16 %v356
      %v1119 = vunpack.c.h.b16 %v356
      %v1120 = vunpack.c.l.b16 %v357
      %v1121 = vunpack.c.h.b16 %v357
      %v1122 = vunpack.c.l.b16 %v358
      %v1123 = vunpack.c.h.b16 %v358
      %v1124 = vunpack.c.l.b16 %v359
      %v1125 = vunpack.c.h.b16 %v359
      %v1126 = vunpack.c.l.b16 %v360
      %v1127 = vunpack.c.h.b16 %v360
      %v1128 = vunpack.c.l.b16 %v361
      %v1129 = vunpack.c.h.b16 %v361
      %v1130 = vunpack.c.l.b16 %v362
      %v1131 = vunpack.c.h.b16 %v362
      %v1132 = vunpack.c.l.b16 %v363
      %v1133 = vunpack.c.h.b16 %v363
      %v1134 = vunpack.c.l.b16 %v364
      %v1135 = vunpack.c.h.b16 %v364
      %v1136 = vunpack.c.l.b16 %v365
      %v1137 = vunpack.c.h.b16 %v365
      %v1138 = vunpack.c.l.b16 %v366
      %v1139 = vunpack.c.h.b16 %v366
      %v1140 = vunpack.c.l.b16 %v367
      %v1141 = vunpack.c.h.b16 %v367
      %v1142 = vunpack.c.l.b16 %v368
      %v1143 = vunpack.c.h.b16 %v368
      %v1144 = vunpack.c.l.b16 %v369
      %v1145 = vunpack.c.h.b16 %v369
      %v1146 = vunpack.c.l.b16 %v370
      %v1147 = vunpack.c.h.b16 %v370
      %v1148 = vunpack.c.l.b16 %v371
      %v1149 = vunpack.c.h.b16 %v371
      %v1150 = vunpack.c.l.b16 %v372
      %v1151 = vunpack.c.h.b16 %v372
      %v1152 = vunpack.c.l.b16 %v373
      %v1153 = vunpack.c.h.b16 %v373
      %v1154 = vunpack.c.l.b16 %v374
      %v1155 = vunpack.c.h.b16 %v374
      %v1156 = vunpack.c.l.b16 %v375
      %v1157 = vunpack.c.h.b16 %v375
      %v1158 = vunpack.c.l.b16 %v376
      %v1159 = vunpack.c.h.b16 %v376
      %v1160 = vunpack.c.l.b16 %v377
      %v1161 = vunpack.c.h.b16 %v377
      %v1162 = vunpack.c.l.b16 %v378
      %v1163 = vunpack.c.h.b16 %v378
      %v1164 = vunpack.c.l.b16 %v379
      %v1165 = vunpack.c.h.b16 %v379
      %v1166 = vunpack.c.l.b16 %v380
      %v1167 = vunpack.c.h.b16 %v380
      %v1168 = vunpack.c.l.b16 %v381
      %v1169 = vunpack.c.h.b16 %v381
      %v1170 = vunpack.c.l.b16 %v382
      %v1171 = vunpack.c.h.b16 %v382
      %v1172 = vunpack.c.l.b16 %v383
      %v1173 = vunpack.c.h.b16 %v383
      %v1174 = vunpack.c.l.b16 %v384
      %v1175 = vunpack.c.h.b16 %v384
      %v1176 = vunpack.c.l.b16 %v385
      %v1177 = vunpack.c.h.b16 %v385
      %v1178 = vunpack.c.l.b16 %v386
      %v1179 = vunpack.c.h.b16 %v386
      %v1180 = vunpack.c.l.b16 %v387
      %v1181 = vunpack.c.h.b16 %v387
      %v1182 = vunpack.c.l.b16 %v388
      %v1183 = vunpack.c.h.b16 %v388
      %v1184 = vunpack.c.l.b16 %v389
      %v1185 = vunpack.c.h.b16 %v389
      %v1186 = vunpack.c.l.b16 %v390
      %v1187 = vunpack.c.h.b16 %v390
      %v1188 = vunpack.c.l.b16 %v391
      %v1189 = vunpack.c.h.b16 %v391
      %v1190 = vunpack.c.l.b16 %v392
      %v1191 = vunpack.c.h.b16 %v392
      %v1192 = vunpack.c.l.b16 %v393
      %v1193 = vunpack.c.h.b16 %v393
      %v1194 = vunpack.c.l.b16 %v394
      %v1195 = vunpack.c.h.b16 %v394
      %v1196 = vunpack.c.l.b16 %v395
      %v1197 = vunpack.c.h.b16 %v395
      %v1198 = vunpack.c.l.b16 %v396
      %v1199 = vunpack.c.h.b16 %v396
      %v1200 = vunpack.c.l.b16 %v397
      %v1201 = vunpack.c.h.b16 %v397
      %v1202 = vunpack.c.l.b16 %v398
      %v1203 = vunpack.c.h.b16 %v398
      %v1204 = vunpack.c.l.b16 %v399
      %v1205 = vunpack.c.h.b16 %v399
      %v1206 = vunpack.c.l.b16 %v400
      %v1207 = vunpack.c.h.b16 %v400
      %v1208 = vunpack.c.l.b16 %v401
      %v1209 = vunpack.c.h.b16 %v401
      %v1210 = vunpack.c.l.b16 %v402
      %v1211 = vunpack.c.h.b16 %v402
      %v1212 = vunpack.c.l.b16 %v403
      %v1213 = vunpack.c.h.b16 %v403
      %v1214 = vunpack.c.l.b16 %v404
      %v1215 = vunpack.c.h.b16 %v404
      %v1216 = vunpack.c.l.b16 %v405
      %v1217 = vunpack.c.h.b16 %v405
      %v1218 = vunpack.c.l.b16 %v406
      %v1219 = vunpack.c.h.b16 %v406
      %v1220 = vunpack.c.l.b16 %v407
      %v1221 = vunpack.c.h.b16 %v407
      %v1222 = vunpack.c.l.b16 %v408
      %v1223 = vunpack.c.h.b16 %v408
      %v1224 = vunpack.c.l.b16 %v409
      %v1225 = vunpack.c.h.b16 %v409
      %v1226 = vunpack.c.l.b16 %v410
      %v1227 = vunpack.c.h.b16 %v410
      %v1228 = vunpack.c.l.b16 %v411
      %v1229 = vunpack.c.h.b16 %v411
      %v1230 = vunpack.c.l.b16 %v412
      %v1231 = vunpack.c.h.b16 %v412
      %v1232 = vunpack.c.l.b16 %v413
      %v1233 = vunpack.c.h.b16 %v413
      %v1234 = vunpack.c.l.b16 %v414
      %v1235 = vunpack.c.h.b16 %v414
      %v1236 = vunpack.c.l.b16 %v415
      %v1237 = vunpack.c.h.b16 %v415
      %v1238 = vunpack.c.l.b16 %v416
      %v1239 = vunpack.c.h.b16 %v416
      %v1240 = vunpack.c.l.b16 %v417
      %v1241 = vunpack.c.h.b16 %v417
      %v1242 = vunpack.c.l.b16 %v418
      %v1243 = vunpack.c.h.b16 %v418
      %v1244 = vunpack.c.l.b16 %v419
      %v1245 = vunpack.c.h.b16 %v419
      %v1246 = vunpack.c.l.b16 %v420
      %v1247 = vunpack.c.h.b16 %v420
      %v1248 = vunpack.c.l.b16 %v421
      %v1249 = vunpack.c.h.b16 %v421
      %v1250 = vunpack.c.l.b16 %v422
      %v1251 = vunpack.c.h.b16 %v422
      %v1252 = vunpack.c.l.b16 %v423
      %v1253 = vunpack.c.h.b16 %v423
      %v1254 = vunpack.c.l.b16 %v424
      %v1255 = vunpack.c.h.b16 %v424
      %v1256 = vunpack.c.l.b16 %v425
      %v1257 = vunpack.c.h.b16 %v425
      %v1258 = vunpack.c.l.b16 %v426
      %v1259 = vunpack.c.h.b16 %v426
      %v1260 = vunpack.c.l.b16 %v427
      %v1261 = vunpack.c.h.b16 %v427
      %v1262 = vunpack.c.l.b16 %v428
      %v1263 = vunpack.c.h.b16 %v428
      %v1264 = vunpack.c.l.b16 %v429
      %v1265 = vunpack.c.h.b16 %v429
      %v1266 = vunpack.c.l.b16 %v430
      %v1267 = vunpack.c.h.b16 %v430
      %v1268 = vunpack.c.l.b16 %v431
      %v1269 = vunpack.c.h.b16 %v431
      %v1270 = vunpack.c.l.b16 %v432
      %v1271 = vunpack.c.h.b16 %v432
      %v1272 = vunpack.c.l.b16 %v433
      %v1273 = vunpack.c.h.b16 %v433
      %v1274 = vunpack.c.l.b16 %v434
      %v1275 = vunpack.c.h.b16 %v434
      %v1276 = vunpack.c.l.b16 %v435
      %v1277 = vunpack.c.h.b16 %v435
      %v1278 = vunpack.c.l.b16 %v436
      %v1279 = vunpack.c.h.b16 %v436
      %v1280 = vunpack.c.l.b16 %v437
      %v1281 = vunpack.c.h.b16 %v437
      %v1282 = vunpack.c.l.b16 %v438
      %v1283 = vunpack.c.h.b16 %v438
      %v1284 = vunpack.c.l.b16 %v439
      %v1285 = vunpack.c.h.b16 %v439
      %v1286 = vunpack.c.l.b16 %v440
      %v1287 = vunpack.c.h.b16 %v440
      %v1288 = vunpack.c.l.b16 %v441
      %v1289 = vunpack.c.h.b16 %v441
      %v1290 = vunpack.c.l.b16 %v442
      %v1291 = vunpack.c.h.b16 %v442
      %v1292 = vunpack.c.l.b16 %v443
      %v1293 = vunpack.c.h.b16 %v443
      %v1294 = vunpack.c.l.b16 %v444
      %v1295 = vunpack.c.h.b16 %v444
      %v1296 = vunpack.c.l.b16 %v445
      %v1297 = vunpack.c.h.b16 %v445
      %v1298 = vunpack.c.l.b16 %v446
      %v1299 = vunpack.c.h.b16 %v446
      %v1300 = vunpack.c.l.b16 %v447
      %v1301 = vunpack.c.h.b16 %v447
      %v1302 = vunpack.c.l.b16 %v448
      %v1303 = vunpack.c.h.b16 %v448
      %v1304 = vunpack.c.l.b16 %v449
      %v1305 = vunpack.c.h.b16 %v449
      %v1306 = vunpack.c.l.b16 %v450
      %v1307 = vunpack.c.h.b16 %v450
      %v1308 = vunpack.c.l.b16 %v451
      %v1309 = vunpack.c.h.b16 %v451
      %v1310 = vunpack.c.l.b16 %v452
      %v1311 = vunpack.c.h.b16 %v452
      %v1312 = vunpack.c.l.b16 %v453
      %v1313 = vunpack.c.h.b16 %v453
      %v1314 = vunpack.c.l.b16 %v454
      %v1315 = vunpack.c.h.b16 %v454
      %v1316 = vunpack.c.l.b16 %v455
      %v1317 = vunpack.c.h.b16 %v455
      %v1318 = vunpack.c.l.b16 %v456
      %v1319 = vunpack.c.h.b16 %v456
      %v1320 = vunpack.c.l.b16 %v457
      %v1321 = vunpack.c.h.b16 %v457
      %v1322 = vunpack.c.l.b16 %v458
      %v1323 = vunpack.c.h.b16 %v458
      %v1324 = vunpack.c.l.b16 %v459
      %v1325 = vunpack.c.h.b16 %v459
      %v1326 = vunpack.c.l.b16 %v460
      %v1327 = vunpack.c.h.b16 %v460
      %v1328 = vunpack.c.l.b16 %v461
      %v1329 = vunpack.c.h.b16 %v461
      %v1330 = vunpack.c.l.b16 %v462
      %v1331 = vunpack.c.h.b16 %v462
      %v1332 = vunpack.c.l.b16 %v463
      %v1333 = vunpack.c.h.b16 %v463
      %v1334 = vunpack.c.l.b16 %v464
      %v1335 = vunpack.c.h.b16 %v464
      %v1336 = vunpack.c.l.b16 %v465
      %v1337 = vunpack.c.h.b16 %v465
      %v1338 = vunpack.c.l.b16 %v466
      %v1339 = vunpack.c.h.b16 %v466
      %v1340 = vunpack.c.l.b16 %v467
      %v1341 = vunpack.c.h.b16 %v467
      %v1342 = vunpack.c.l.b16 %v468
      %v1343 = vunpack.c.h.b16 %v468
      %v1344 = vunpack.c.l.b16 %v469
      %v1345 = vunpack.c.h.b16 %v469
      %v1346 = vunpack.c.l.b16 %v470
      %v1347 = vunpack.c.h.b16 %v470
      %v1348 = vunpack.c.l.b16 %v471
      %v1349 = vunpack.c.h.b16 %v471
      %v1350 = vunpack.c.l.b16 %v472
      %v1351 = vunpack.c.h.b16 %v472
      %v1352 = vunpack.c.l.b16 %v473
      %v1353 = vunpack.c.h.b16 %v473
      %v1354 = vunpack.c.l.b16 %v474
      %v1355 = vunpack.c.h.b16 %v474
      %v1356 = vunpack.c.l.b16 %v475
      %v1357 = vunpack.c.h.b16 %v475
      %v1358 = vunpack.c.l.b16 %v476
      %v1359 = vunpack.c.h.b16 %v476
      %v1360 = vunpack.c.l.b16 %v477
      %v1361 = vunpack.c.h.b16 %v477
      %v1362 = vunpack.c.l.b16 %v478
      %v1363 = vunpack.c.h.b16 %v478
      %v1364 = vunpack.c.l.b16 %v479
      %v1365 = vunpack.c.h.b16 %v479
      %v1366 = vunpack.c.l.b16 %v480
      %v1367 = vunpack.c.h.b16 %v480
      %v1368 = vunpack.c.l.b16 %v481
      %v1369 = vunpack.c.h.b16 %v481
      %v1370 = vunpack.c.l.b16 %v482
      %v1371 = vunpack.c.h.b16 %v482
      %v1372 = vunpack.c.l.b16 %v483
      %v1373 = vunpack.c.h.b16 %v483
      %v1374 = vunpack.c.l.b16 %v484
      %v1375 = vunpack.c.h.b16 %v484
      %v1376 = vunpack.c.l.b16 %v485
      %v1377 = vunpack.c.h.b16 %v485
      %v1378 = vunpack.c.l.b16 %v486
      %v1379 = vunpack.c.h.b16 %v486
      %v1380 = vunpack.c.l.b16 %v487
      %v1381 = vunpack.c.h.b16 %v487
      %v1382 = vunpack.c.l.b16 %v488
      %v1383 = vunpack.c.h.b16 %v488
      %v1384 = vunpack.c.l.b16 %v489
      %v1385 = vunpack.c.h.b16 %v489
      %v1386 = vunpack.c.l.b16 %v490
      %v1387 = vunpack.c.h.b16 %v490
      %v1388 = vunpack.c.l.b16 %v491
      %v1389 = vunpack.c.h.b16 %v491
      %v1390 = vunpack.c.l.b16 %v492
      %v1391 = vunpack.c.h.b16 %v492
      %v1392 = vunpack.c.l.b16 %v493
      %v1393 = vunpack.c.h.b16 %v493
      %v1394 = vunpack.c.l.b16 %v494
      %v1395 = vunpack.c.h.b16 %v494
      %v1396 = vunpack.c.l.b16 %v495
      %v1397 = vunpack.c.h.b16 %v495
      %v1398 = vunpack.c.l.b16 %v496
      %v1399 = vunpack.c.h.b16 %v496
      %v1400 = vunpack.c.l.b16 %v497
      %v1401 = vunpack.c.h.b16 %v497
      %v1402 = vunpack.c.l.b16 %v498
      %v1403 = vunpack.c.h.b16 %v498
      %v1404 = vunpack.c.l.b16 %v499
      %v1405 = vunpack.c.h.b16 %v499
      %v1406 = vunpack.c.l.b16 %v500
      %v1407 = vunpack.c.h.b16 %v500
      %v1408 = vunpack.c.l.b16 %v501
      %v1409 = vunpack.c.h.b16 %v501
      %v1410 = vunpack.c.l.b16 %v502
      %v1411 = vunpack.c.h.b16 %v502
      %v1412 = vunpack.c.l.b16 %v503
      %v1413 = vunpack.c.h.b16 %v503
      %v1414 = vunpack.c.l.b16 %v504
      %v1415 = vunpack.c.h.b16 %v504
      %v1416 = vunpack.c.l.b16 %v505
      %v1417 = vunpack.c.h.b16 %v505
      %v1418 = vunpack.c.l.b16 %v506
      %v1419 = vunpack.c.h.b16 %v506
      %v1420 = vunpack.c.l.b16 %v507
      %v1421 = vunpack.c.h.b16 %v507
      %v1422 = vunpack.c.l.b16 %v508
      %v1423 = vunpack.c.h.b16 %v508
      %v1424 = vunpack.c.l.b16 %v509
      %v1425 = vunpack.c.h.b16 %v509
      %v1426 = vunpack.c.l.b16 %v510
      %v1427 = vunpack.c.h.b16 %v510
      %v1428 = vunpack.c.l.b16 %v511
      %v1429 = vunpack.c.h.b16 %v511
      %v1430 = vunpack.c.l.b16 %v512
      %v1431 = vunpack.c.h.b16 %v512
      %v1432 = vunpack.c.l.b16 %v513
      %v1433 = vunpack.c.h.b16 %v513
      %v1434 = vunpack.c.l.b16 %v514
      %v1435 = vunpack.c.h.b16 %v514
      %v1436 = vunpack.c.l.b16 %v515
      %v1437 = vunpack.c.h.b16 %v515
      %v1438 = vunpack.c.l.b16 %v516
      %v1439 = vunpack.c.h.b16 %v516
      %v1440 = vunpack.c.l.b16 %v517
      %v1441 = vunpack.c.h.b16 %v517
      %v1442 = vunpack.c.l.b16 %v518
      %v1443 = vunpack.c.h.b16 %v518
      %v1444 = vunpack.c.l.b16 %v519
      %v1445 = vunpack.c.h.b16 %v519
      %v1446 = vunpack.c.l.b16 %v520
      %v1447 = vunpack.c.h.b16 %v520
      %v1448 = vunpack.c.l.b16 %v521
      %v1449 = vunpack.c.h.b16 %v521
      %v1450 = vunpack.c.l.b16 %v522
      %v1451 = vunpack.c.h.b16 %v522
      %v1452 = vunpack.c.l.b16 %v523
      %v1453 = vunpack.c.h.b16 %v523
      %v1454 = vunpack.c.l.b16 %v524
      %v1455 = vunpack.c.h.b16 %v524
      %v1456 = vunpack.c.l.b16 %v525
      %v1457 = vunpack.c.h.b16 %v525
      %v1458 = vunpack.c.l.b16 %v526
      %v1459 = vunpack.c.h.b16 %v526
      %v1460 = vunpack.c.l.b16 %v527
      %v1461 = vunpack.c.h.b16 %v527
      %v1462 = vunpack.c.l.b16 %v528
      %v1463 = vunpack.c.h.b16 %v528
      %v1464 = vunpack.c.l.b16 %v529
      %v1465 = vunpack.c.h.b16 %v529
      %v1466 = vunpack.c.l.b16 %v530
      %v1467 = vunpack.c.h.b16 %v530
      %v1468 = vunpack.c.l.b16 %v531
      %v1469 = vunpack.c.h.b16 %v531
      %v1470 = vunpack.c.l.b16 %v532
      %v1471 = vunpack.c.h.b16 %v532
      %v1472 = vunpack.c.l.b16 %v533
      %v1473 = vunpack.c.h.b16 %v533
      %v1474 = vunpack.c.l.b16 %v534
      %v1475 = vunpack.c.h.b16 %v534
      %v1476 = vunpack.c.l.b16 %v535
      %v1477 = vunpack.c.h.b16 %v535
      %v1478 = vunpack.c.l.b16 %v536
      %v1479 = vunpack.c.h.b16 %v536
      %v1480 = vunpack.c.l.b16 %v537
      %v1481 = vunpack.c.h.b16 %v537
      %v1482 = vunpack.c.l.b16 %v538
      %v1483 = vunpack.c.h.b16 %v538
      %v1484 = vunpack.c.l.b16 %v539
      %v1485 = vunpack.c.h.b16 %v539
      %v1486 = vunpack.c.l.b16 %v540
      %v1487 = vunpack.c.h.b16 %v540
      %v1488 = vunpack.c.l.b16 %v541
      %v1489 = vunpack.c.h.b16 %v541
      %v1490 = vunpack.c.l.b16 %v542
      %v1491 = vunpack.c.h.b16 %v542
      %v1492 = vunpack.c.l.b16 %v543
      %v1493 = vunpack.c.h.b16 %v543
      %v1494 = vunpack.c.l.b16 %v544
      %v1495 = vunpack.c.h.b16 %v544
      %v1496 = vunpack.c.l.b16 %v545
      %v1497 = vunpack.c.h.b16 %v545
      %v1498 = vunpack.c.l.b16 %v546
      %v1499 = vunpack.c.h.b16 %v546
      %v1500 = vunpack.c.l.b16 %v547
      %v1501 = vunpack.c.h.b16 %v547
      %v1502 = vunpack.c.l.b16 %v548
      %v1503 = vunpack.c.h.b16 %v548
      %v1504 = vunpack.c.l.b16 %v549
      %v1505 = vunpack.c.h.b16 %v549
      %v1506 = vunpack.c.l.b16 %v550
      %v1507 = vunpack.c.h.b16 %v550
      %v1508 = vunpack.c.l.b16 %v551
      %v1509 = vunpack.c.h.b16 %v551
      %v1510 = vunpack.c.l.b16 %v552
      %v1511 = vunpack.c.h.b16 %v552
      %v1512 = vunpack.c.l.b16 %v553
      %v1513 = vunpack.c.h.b16 %v553
      %v1514 = vunpack.c.l.b16 %v554
      %v1515 = vunpack.c.h.b16 %v554
      %v1516 = vunpack.c.l.b16 %v555
      %v1517 = vunpack.c.h.b16 %v555
      %v1518 = vunpack.c.l.b16 %v556
      %v1519 = vunpack.c.h.b16 %v556
      %v1520 = vunpack.c.l.b16 %v557
      %v1521 = vunpack.c.h.b16 %v557
      %v1522 = vunpack.c.l.b16 %v558
      %v1523 = vunpack.c.h.b16 %v558
      %v1524 = vunpack.c.l.b16 %v559
      %v1525 = vunpack.c.h.b16 %v559
      %v1526 = vunpack.c.l.b16 %v560
      %v1527 = vunpack.c.h.b16 %v560
      %v1528 = vunpack.c.l.b16 %v561
      %v1529 = vunpack.c.h.b16 %v561
      %v1530 = vunpack.c.l.b16 %v562
      %v1531 = vunpack.c.h.b16 %v562
      %v1532 = vunpack.c.l.b16 %v563
      %v1533 = vunpack.c.h.b16 %v563
      %v1534 = vunpack.c.l.b16 %v564
      %v1535 = vunpack.c.h.b16 %v564
      %v1536 = vunpack.c.l.b16 %v565
      %v1537 = vunpack.c.h.b16 %v565
      %v1538 = vunpack.c.l.b16 %v566
      %v1539 = vunpack.c.h.b16 %v566
      %v1540 = vunpack.c.l.b16 %v567
      %v1541 = vunpack.c.h.b16 %v567
      %v1542 = vunpack.c.l.b16 %v568
      %v1543 = vunpack.c.h.b16 %v568
      %v1544 = vunpack.c.l.b16 %v569
      %v1545 = vunpack.c.h.b16 %v569
      %v1546 = vunpack.c.l.b16 %v570
      %v1547 = vunpack.c.h.b16 %v570
      %v1548 = vunpack.c.l.b16 %v571
      %v1549 = vunpack.c.h.b16 %v571
      %v1550 = vunpack.c.l.b16 %v572
      %v1551 = vunpack.c.h.b16 %v572
      %v1552 = vunpack.c.l.b16 %v573
      %v1553 = vunpack.c.h.b16 %v573
      %v1554 = vunpack.c.l.b16 %v574
      %v1555 = vunpack.c.h.b16 %v574
      %v1556 = vunpack.c.l.b16 %v575
      %v1557 = vunpack.c.h.b16 %v575
      %v1558 = vunpack.c.l.b16 %v576
      %v1559 = vunpack.c.h.b16 %v576
      %v1560 = vunpack.c.l.b16 %v577
      %v1561 = vunpack.c.h.b16 %v577
      %v1562 = vunpack.c.l.b16 %v578
      %v1563 = vunpack.c.h.b16 %v578
      %v1564 = vunpack.c.l.b16 %v579
      %v1565 = vunpack.c.h.b16 %v579
      %v1566 = vunpack.c.l.b16 %v580
      %v1567 = vunpack.c.h.b16 %v580
      %v1568 = vunpack.c.l.b16 %v581
      %v1569 = vunpack.c.h.b16 %v581
      %v1570 = vunpack.c.l.b16 %v582
      %v1571 = vunpack.c.h.b16 %v582
      %v1572 = vunpack.c.l.b16 %v583
      %v1573 = vunpack.c.h.b16 %v583
      %v1574 = vunpack.c.l.b16 %v584
      %v1575 = vunpack.c.h.b16 %v584
      %v1576 = vunpack.c.l.b16 %v585
      %v1577 = vunpack.c.h.b16 %v585
      %v1578 = vunpack.c.l.b16 %v586
      %v1579 = vunpack.c.h.b16 %v586
      %v1580 = vunpack.c.l.b16 %v587
      %v1581 = vunpack.c.h.b16 %v587
      %v1582 = vunpack.c.l.b16 %v588
      %v1583 = vunpack.c.h.b16 %v588
      %v1584 = vunpack.c.l.b16 %v589
      %v1585 = vunpack.c.h.b16 %v589
      %v1586 = vunpack.c.l.b16 %v590
      %v1587 = vunpack.c.h.b16 %v590
      %v1588 = vunpack.c.l.b16 %v591
      %v1589 = vunpack.c.h.b16 %v591
      %v1590 = vunpack.c.l.b16 %v592
      %v1591 = vunpack.c.h.b16 %v592
      %v1592 = vunpack.c.l.b16 %v593
      %v1593 = vunpack.c.h.b16 %v593
      %v1594 = vunpack.c.l.b16 %v594
      %v1595 = vunpack.c.h.b16 %v594
      %v1596 = vunpack.c.l.b16 %v595
      %v1597 = vunpack.c.h.b16 %v595
      %v1598 = vunpack.c.l.b16 %v596
      %v1599 = vunpack.c.h.b16 %v596
      %v1600 = vunpack.c.l.b16 %v597
      %v1601 = vunpack.c.h.b16 %v597
      %v1602 = vunpack.c.l.b16 %v598
      %v1603 = vunpack.c.h.b16 %v598
      %v1604 = vunpack.c.l.b16 %v599
      %v1605 = vunpack.c.h.b16 %v599
      %v1606 = vunpack.c.l.b16 %v600
      %v1607 = vunpack.c.h.b16 %v600
      %v1608 = vunpack.c.l.b16 %v601
      %v1609 = vunpack.c.h.b16 %v601
      %v1610 = vunpack.c.l.b16 %v602
      %v1611 = vunpack.c.h.b16 %v602
      %v1612 = vunpack.c.l.b16 %v603
      %v1613 = vunpack.c.h.b16 %v603
      %v1614 = vunpack.c.l.b16 %v604
      %v1615 = vunpack.c.h.b16 %v604
      %v1616 = vunpack.c.l.b16 %v605
      %v1617 = vunpack.c.h.b16 %v605
      %v1618 = vunpack.c.l.b16 %v606
      %v1619 = vunpack.c.h.b16 %v606
      %v1620 = vunpack.c.l.b16 %v607
      %v1621 = vunpack.c.h.b16 %v607
      %v1622 = vunpack.c.l.b16 %v608
      %v1623 = vunpack.c.h.b16 %v608
      %v1624 = vunpack.c.l.b16 %v609
      %v1625 = vunpack.c.h.b16 %v609
      %v1626 = vunpack.c.l.b16 %v610
      %v1627 = vunpack.c.h.b16 %v610
      %v1628 = vunpack.c.l.b16 %v611
      %v1629 = vunpack.c.h.b16 %v611
      %v1630 = vunpack.c.l.b16 %v612
      %v1631 = vunpack.c.h.b16 %v612
      %v1632 = vunpack.c.l.b16 %v613
      %v1633 = vunpack.c.h.b16 %v613
      %v1634 = vunpack.c.l.b16 %v614
      %v1635 = vunpack.c.h.b16 %v614
      %v1636 = vunpack.c.l.b16 %v615
      %v1637 = vunpack.c.h.b16 %v615
      %v1638 = vunpack.c.l.b16 %v616
      %v1639 = vunpack.c.h.b16 %v616
      %v1640 = vunpack.c.l.b16 %v617
      %v1641 = vunpack.c.h.b16 %v617
      %v1642 = vunpack.c.l.b16 %v618
      %v1643 = vunpack.c.h.b16 %v618
      %v1644 = vpack.c.b16 %v998, %v996
      %v1645 = vpack.c.b16 %v999, %v997
      %v1646 = vpack.c.b16 %v1002, %v1000
      %v1647 = vpack.c.b16 %v1003, %v1001
      %v1648 = vpack.c.b16 %v1006, %v1004
      %v1649 = vpack.c.b16 %v1007, %v1005
      %v1650 = vpack.c.b16 %v1010, %v1008
      %v1651 = vpack.c.b16 %v1011, %v1009
      %v1652 = vpack.c.b16 %v1014, %v1012
      %v1653 = vpack.c.b16 %v1015, %v1013
      %v1654 = vpack.c.b16 %v1018, %v1016
      %v1655 = vpack.c.b16 %v1019, %v1017
      %v1656 = vpack.c.b16 %v1022, %v1020
      %v1657 = vpack.c.b16 %v1023, %v1021
      %v1658 = vpack.c.b16 %v1026, %v1024
      %v1659 = vpack.c.b16 %v1027, %v1025
      %v1660 = vpack.c.b16 %v1030, %v1028
      %v1661 = vpack.c.b16 %v1031, %v1029
      %v1662 = vpack.c.b16 %v1034, %v1032
      %v1663 = vpack.c.b16 %v1035, %v1033
      %v1664 = vpack.c.b16 %v1038, %v1036
      %v1665 = vpack.c.b16 %v1039, %v1037
      %v1666 = vpack.c.b16 %v1042, %v1040
      %v1667 = vpack.c.b16 %v1043, %v1041
      %v1668 = vpack.c.b16 %v1046, %v1044
      %v1669 = vpack.c.b16 %v1047, %v1045
      %v1670 = vpack.c.b16 %v1050, %v1048
      %v1671 = vpack.c.b16 %v1051, %v1049
      %v1672 = vpack.c.b16 %v1054, %v1052
      %v1673 = vpack.c.b16 %v1055, %v1053
      %v1674 = vpack.c.b16 %v1058, %v1056
      %v1675 = vpack.c.b16 %v1059, %v1057
      %v1676 = vpack.c.b16 %v1062, %v1060
      %v1677 = vpack.c.b16 %v1063, %v1061
      %v1678 = vpack.c.b16 %v1066, %v1064
      %v1679 = vpack.c.b16 %v1067, %v1065
      %v1680 = vpack.c.b16 %v1070, %v1068
      %v1681 = vpack.c.b16 %v1071, %v1069
      %v1682 = vpack.c.b16 %v1074, %v1072
      %v1683 = vpack.c.b16 %v1075, %v1073
      %v1684 = vpack.c.b16 %v1078, %v1076
      %v1685 = vpack.c.b16 %v1079, %v1077
      %v1686 = vpack.c.b16 %v1082, %v1080
      %v1687 = vpack.c.b16 %v1083, %v1081
      %v1688 = vpack.c.b16 %v1086, %v1084
      %v1689 = vpack.c.b16 %v1087, %v1085
      %v1690 = vpack.c.b16 %v1090, %v1088
      %v1691 = vpack.c.b16 %v1091, %v1089
      %v1692 = vpack.c.b16 %v1094, %v1092
      %v1693 = vpack.c.b16 %v1095, %v1093
      %v1694 = vpack.c.b16 %v1098, %v1096
      %v1695 = vpack.c.b16 %v1099, %v1097
      %v1696 = vpack.c.b16 %v1102, %v1100
      %v1697 = vpack.c.b16 %v1103, %v1101
      %v1698 = vpack.c.b16 %v1106, %v1104
      %v1699 = vpack.c.b16 %v1107, %v1105
      %v1700 = vpack.c.b16 %v1110, %v1108
      %v1701 = vpack.c.b16 %v1111, %v1109
      %v1702 = vpack.c.b16 %v1114, %v1112
      %v1703 = vpack.c.b16 %v1115, %v1113
      %v1704 = vpack.c.b16 %v1118, %v1116
      %v1705 = vpack.c.b16 %v1119, %v1117
      %v1706 = vpack.c.b16 %v1122, %v1120
      %v1707 = vpack.c.b16 %v1123, %v1121
      %v1708 = vpack.c.b16 %v1126, %v1124
      %v1709 = vpack.c.b16 %v1127, %v1125
      %v1710 = vpack.c.b16 %v1130, %v1128
      %v1711 = vpack.c.b16 %v1131, %v1129
      %v1712 = vpack.c.b16 %v1134, %v1132
      %v1713 = vpack.c.b16 %v1135, %v1133
      %v1714 = vpack.c.b16 %v1138, %v1136
      %v1715 = vpack.c.b16 %v1139, %v1137
      %v1716 = vpack.c.b16 %v1142, %v1140
      %v1717 = vpack.c.b16 %v1143, %v1141
      %v1718 = vpack.c.b16 %v1146, %v1144
      %v1719 = vpack.c.b16 %v1147, %v1145
      %v1720 = vpack.c.b16 %v1150, %v1148
      %v1721 = vpack.c.b16 %v1151, %v1149
      %v1722 = vpack.c.b16 %v1154, %v1152
      %v1723 = vpack.c.b16 %v1155, %v1153
      %v1724 = vpack.c.b16 %v1158, %v1156
      %v1725 = vpack.c.b16 %v1159, %v1157
      %v1726 = vpack.c.b16 %v1162, %v1160
      %v1727 = vpack.c.b16 %v1163, %v1161
      %v1728 = vpack.c.b16 %v1166, %v1164
      %v1729 = vpack.c.b16 %v1167, %v1165
      %v1730 = vpack.c.b16 %v1170, %v1168
      %v1731 = vpack.c.b16 %v1171, %v1169
      %v1732 = vpack.c.b16 %v1174, %v1172
      %v1733 = vpack.c.b16 %v1175, %v1173
      %v1734 = vpack.c.b16 %v1178, %v1176
      %v1735 = vpack.c.b16 %v1179, %v1177
      %v1736 = vpack.c.b16 %v1182, %v1180
      %v1737 = vpack.c.b16 %v1183, %v1181
      %v1738 = vpack.c.b16 %v1186, %v1184
      %v1739 = vpack.c.b16 %v1187, %v1185
      %v1740 = vpack.c.b16 %v1190, %v1188
      %v1741 = vpack.c.b16 %v1191, %v1189
      %v1742 = vpack.c.b16 %v1194, %v1192
      %v1743 = vpack.c.b16 %v1195, %v1193
      %v1744 = vpack.c.b16 %v1198, %v1196
      %v1745 = vpack.c.b16 %v1199, %v1197
      %v1746 = vpack.c.b16 %v1202, %v1200
      %v1747 = vpack.c.b16 %v1203, %v1201
      %v1748 = vpack.c.b16 %v1206, %v1204
      %v1749 = vpack.c.b16 %v1207, %v1205
      %v1750 = vpack.c.b16 %v1210, %v1208
      %v1751 = vpack.c.b16 %v1211, %v1209
      %v1752 = vpack.c.b16 %v1214, %v1212
      %v1753 = vpack.c.b16 %v1215, %v1213
      %v1754 = vpack.c.b16 %v1218, %v1216
      %v1755 = vpack.c.b16 %v1219, %v1217
      %v1756 = vpack.c.b16 %v1222, %v1220
      %v1757 = vpack.c.b16 %v1223, %v1221
      %v1758 = vpack.c.b16 %v1226, %v1224
      %v1759 = vpack.c.b16 %v1227, %v1225
      %v1760 = vpack.c.b16 %v1230, %v1228
      %v1761 = vpack.c.b16 %v1231, %v1229
      %v1762 = vpack.c.b16 %v1234, %v1232
      %v1763 = vpack.c.b16 %v1235, %v1233
      %v1764 = vpack.c.b16 %v1238, %v1236
      %v1765 = vpack.c.b16 %v1239, %v1237
      %v1766 = vpack.c.b16 %v1242, %v1240
      %v1767 = vpack.c.b16 %v1243, %v1241
      %v1768 = vpack.c.b16 %v1246, %v1244
      %v1769 = vpack.c.b16 %v1247, %v1245
      %v1770 = vpack.c.b16 %v1250, %v1248
      %v1771 = vpack.c.b16 %v1251, %v1249
      %v1772 = vpack.c.b16 %v1254, %v1252
      %v1773 = vpack.c.b16 %v1255, %v1253
      %v1774 = vpack.c.b16 %v1258, %v1256
      %v1775 = vpack.c.b16 %v1259, %v1257
      %v1776 = vpack.c.b16 %v1262, %v1260
      %v1777 = vpack.c.b16 %v1263, %v1261
      %v1778 = vpack.c.b16 %v1266, %v1264
      %v1779 = vpack.c.b16 %v1267, %v1265
      %v1780 = vpack.c.b16 %v1270, %v1268
      %v1781 = vpack.c.b16 %v1271, %v1269
      %v1782 = vpack.c.b16 %v1274, %v1272
      %v1783 = vpack.c.b16 %v1275, %v1273
      %v1784 = vpack.c.b16 %v1278, %v1276
      %v1785 = vpack.c.b16 %v1279, %v1277
      %v1786 = vpack.c.b16 %v1282, %v1280
      %v1787 = vpack.c.b16 %v1283, %v1281
      %v1788 = vpack.c.b16 %v1286, %v1284
      %v1789 = vpack.c.b16 %v1287, %v1285
      %v1790 = vpack.c.b16 %v1290, %v1288
      %v1791 = vpack.c.b16 %v1291, %v1289
      %v1792 = vpack.c.b16 %v1294, %v1292
      %v1793 = vpack.c.b16 %v1295, %v1293
      %v1794 = vpack.c.b16 %v1298, %v1296
      %v1795 = vpack.c.b16 %v1299, %v1297
      %v1796 = vpack.c.b16 %v1302, %v1300
      %v1797 = vpack.c.b16 %v1303, %v1301
      %v1798 = vpack.c.b16 %v1306, %v1304
      %v1799 = vpack.c.b16 %v1307, %v1305
      %v1800 = vpack.c.b16 %v1310, %v1308
      %v1801 = vpack.c.b16 %v1311, %v1309
      %v1802 = vpack.c.b16 %v1314, %v1312
      %v1803 = vpack.c.b16 %v1315, %v1313
      %v1804 = vpack.c.b16 %v1318, %v1316
      %v1805 = vpack.c.b16 %v1319, %v1317
      %v1806 = vpack.c.b16 %v1322, %v1320
      %v1807 = vpack.c.b16 %v1323, %v1321
      %v1808 = vpack.c.b16 %v1326, %v1324
      %v1809 = vpack.c.b16 %v1327, %v1325
      %v1810 = vpack.c.b16 %v1330, %v1328
      %v1811 = vpack.c.b16 %v1331, %v1329
      %v1812 = vpack.c.b16 %v1334, %v1332
      %v1813 = vpack.c.b16 %v1335, %v1333
      %v1814 = vpack.c.b16 %v1338, %v1336
      %v1815 = vpack.c.b16 %v1339, %v1337
      %v1816 = vpack.c.b16 %v1342, %v1340
      %v1817 = vpack.c.b16 %v1343, %v1341
      %v1818 = vpack.c.b16 %v1346, %v1344
      %v1819 = vpack.c.b16 %v1347, %v1345
      %v1820 = vpack.c.b16 %v1350, %v1348
      %v1821 = vpack.c.b16 %v1351, %v1349
      %v1822 = vpack.c.b16 %v1354, %v1352
      %v1823 = vpack.c.b16 %v1355, %v1353
      %v1824 = vpack.c.b16 %v1358, %v1356
      %v1825 = vpack.c.b16 %v1359, %v1357
      %v1826 = vpack.c.b16 %v1362, %v1360
      %v1827 = vpack.c.b16 %v1363, %v1361
      %v1828 = vpack.c.b16 %v1366, %v1364
      %v1829 = vpack.c.b16 %v1367, %v1365
      %v1830 = vpack.c.b16 %v1370, %v1368
      %v1831 = vpack.c.b16 %v1371, %v1369
      %v1832 = vpack.c.b16 %v1374, %v1372
      %v1833 = vpack.c.b16 %v1375, %v1373
      %v1834 = vpack.c.b16 %v1378, %v1376
      %v1835 = vpack.c.b16 %v1379, %v1377
      %v1836 = vpack.c.b16 %v1382, %v1380
      %v1837 = vpack.c.b16 %v1383, %v1381
      %v1838 = vpack.c.b16 %v1386, %v1384
      %v1839 = vpack.c.b16 %v1387, %v1385
      %v1840 = vpack.c.b16 %v1390, %v1388
      %v1841 = vpack.c.b16 %v1391, %v1389
      %v1842 = vpack.c.b16 %v1394, %v1392
      %v1843 = vpack.c.b16 %v1395, %v1393
      %v1844 = vpack.c.b16 %v1398, %v1396
      %v1845 = vpack.c.b16 %v1399, %v1397
      %v1846 = vpack.c.b16 %v1402, %v1400
      %v1847 = vpack.c.b16 %v1403, %v1401
      %v1848 = vpack.c.b16 %v1406, %v1404
      %v1849 = vpack.c.b16 %v1407, %v1405
      %v1850 = vpack.c.b16 %v1410, %v1408
      %v1851 = vpack.c.b16 %v1411, %v1409
      %v1852 = vpack.c.b16 %v1414, %v1412
      %v1853 = vpack.c.b16 %v1415, %v1413
      %v1854 = vpack.c.b16 %v1418, %v1416
      %v1855 = vpack.c.b16 %v1419, %v1417
      %v1856 = vpack.c.b16 %v1422, %v1420
      %v1857 = vpack.c.b16 %v1423, %v1421
      %v1858 = vpack.c.b16 %v1426, %v1424
      %v1859 = vpack.c.b16 %v1427, %v1425
      %v1860 = vpack.c.b16 %v1430, %v1428
      %v1861 = vpack.c.b16 %v1431, %v1429
      %v1862 = vpack.c.b16 %v1434, %v1432
      %v1863 = vpack.c.b16 %v1435, %v1433
      %v1864 = vpack.c.b16 %v1438, %v1436
      %v1865 = vpack.c.b16 %v1439, %v1437
      %v1866 = vpack.c.b16 %v1442, %v1440
      %v1867 = vpack.c.b16 %v1443, %v1441
      %v1868 = vpack.c.b16 %v1446, %v1444
      %v1869 = vpack.c.b16 %v1447, %v1445
      %v1870 = vpack.c.b16 %v1450, %v1448
      %v1871 = vpack.c.b16 %v1451, %v1449
      %v1872 = vpack.c.b16 %v1454, %v1452
      %v1873 = vpack.c.b16 %v1455, %v1453
      %v1874 = vpack.c.b16 %v1458, %v1456
      %v1875 = vpack.c.b16 %v1459, %v1457
      %v1876 = vpack.c.b16 %v1462, %v1460
      %v1877 = vpack.c.b16 %v1463, %v1461
      %v1878 = vpack.c.b16 %v1466, %v1464
      %v1879 = vpack.c.b16 %v1467, %v1465
      %v1880 = vpack.c.b16 %v1470, %v1468
      %v1881 = vpack.c.b16 %v1471, %v1469
      %v1882 = vpack.c.b16 %v1474, %v1472
      %v1883 = vpack.c.b16 %v1475, %v1473
      %v1884 = vpack.c.b16 %v1478, %v1476
      %v1885 = vpack.c.b16 %v1479, %v1477
      %v1886 = vpack.c.b16 %v1482, %v1480
      %v1887 = vpack.c.b16 %v1483, %v1481
      %v1888 = vpack.c.b16 %v1486, %v1484
      %v1889 = vpack.c.b16 %v1487, %v1485
      %v1890 = vpack.c.b16 %v1490, %v1488
      %v1891 = vpack.c.b16 %v1491, %v1489
      %v1892 = vpack.c.b16 %v1494, %v1492
      %v1893 = vpack.c.b16 %v1495, %v1493
      %v1894 = vpack.c.b16 %v1498, %v1496
      %v1895 = vpack.c.b16 %v1499, %v1497
      %v1896 = vpack.c.b16 %v1502, %v1500
      %v1897 = vpack.c.b16 %v1503, %v1501
      %v1898 = vpack.c.b16 %v1506, %v1504
      %v1899 = vpack.c.b16 %v1507, %v1505
      %v1900 = vpack.c.b16 %v1510, %v1508
      %v1901 = vpack.c.b16 %v1511, %v1509
      %v1902 = vpack.c.b16 %v1514, %v1512
      %v1903 = vpack.c.b16 %v1515, %v1513
      %v1904 = vpack.c.b16 %v1518, %v1516
      %v1905 = vpack.c.b16 %v1519, %v1517
      %v1906 = vpack.c.b16 %v1522, %v1520
      %v1907 = vpack.c.b16 %v1523, %v1521
      %v1908 = vpack.c.b16 %v1526, %v1524
      %v1909 = vpack.c.b16 %v1527, %v1525
      %v1910 = vpack.c.b16 %v1530, %v1528
      %v1911 = vpack.c.b16 %v1531, %v1529
      %v1912 = vpack.c.b16 %v1534, %v1532
      %v1913 = vpack.c.b16 %v1535, %v1533
      %v1914 = vpack.c.b16 %v1538, %v1536
      %v1915 = vpack.c.b16 %v1539, %v1537
      %v1916 = vpack.c.b16 %v1542, %v1540
      %v1917 = vpack.c.b16 %v1543, %v1541
      %v1918 = vpack.c.b16 %v1546, %v1544
      %v1919 = vpack.c.b16 %v1547, %v1545
      %v1920 = vpack.c.b16 %v1550, %v1548
      %v1921 = vpack.c.b16 %v1551, %v1549
      %v1922 = vpack.c.b16 %v1554, %v1552
      %v1923 = vpack.c.b16 %v1555, %v1553
      %v1924 = vpack.c.b16 %v1558, %v1556
      %v1925 = vpack.c.b16 %v1559, %v1557
      %v1926 = vpack.c.b16 %v1562, %v1560
      %v1927 = vpack.c.b16 %v1563, %v1561
      %v1928 = vpack.c.b16 %v1566, %v1564
      %v1929 = vpack.c.b16 %v1567, %v1565
      %v1930 = vpack.c.b16 %v1570, %v1568
      %v1931 = vpack.c.b16 %v1571, %v1569
      %v1932 = vpack.c.b16 %v1574, %v1572
      %v1933 = vpack.c.b16 %v1575, %v1573
      %v1934 = vpack.c.b16 %v1578, %v1576
      %v1935 = vpack.c.b16 %v1579, %v1577
      %v1936 = vpack.c.b16 %v1582, %v1580
      %v1937 = vpack.c.b16 %v1583, %v1581
      %v1938 = vpack.c.b16 %v1586, %v1584
      %v1939 = vpack.c.b16 %v1587, %v1585
      %v1940 = vpack.c.b16 %v1590, %v1588
      %v1941 = vpack.c.b16 %v1591, %v1589
      %v1942 = vpack.c.b16 %v1594, %v1592
      %v1943 = vpack.c.b16 %v1595, %v1593
      %v1944 = vpack.c.b16 %v1598, %v1596
      %v1945 = vpack.c.b16 %v1599, %v1597
      %v1946 = vpack.c.b16 %v1602, %v1600
      %v1947 = vpack.c.b16 %v1603, %v1601
      %v1948 = vpack.c.b16 %v1606, %v1604
      %v1949 = vpack.c.b16 %v1607, %v1605
      %v1950 = vpack.c.b16 %v1610, %v1608
      %v1951 = vpack.c.b16 %v1611, %v1609
      %v1952 = vpack.c.b16 %v1614, %v1612
      %v1953 = vpack.c.b16 %v1615, %v1613
      %v1954 = vpack.c.b16 %v1618, %v1616
      %v1955 = vpack.c.b16 %v1619, %v1617
      %v1956 = vpack.c.b16 %v1622, %v1620
      %v1957 = vpack.c.b16 %v1623, %v1621
      %v1958 = vpack.c.b16 %v1626, %v1624
      %v1959 = vpack.c.b16 %v1627, %v1625
      %v1960 = vpack.c.b16 %v1630, %v1628
      %v1961 = vpack.c.b16 %v1631, %v1629
      %v1962 = vpack.c.b16 %v1634, %v1632
      %v1963 = vpack.c.b16 %v1635, %v1633
      %v1964 = vpack.c.b16 %v1638, %v1636
      %v1965 = vpack.c.b16 %v1639, %v1637
      %v1966 = vpack.c.b16 %v1642, %v1640
      %v1967 = vpack.c.b16 %v1643, %v1641
      %vm2292 = vcmask 261120
      %v2293 = vsel %vm2292, %v651, 0
      %2295 = vmatpush.bf16.msra.mxu0 %v1658
      %2296 = vmatpush.bf16.msra.mxu0 %v1656
      %2297 = vmatpush.bf16.msra.mxu0 %v1654
      %2298 = vmatpush.bf16.msra.mxu0 %v1652
      %2299 = vmatpush.bf16.msra.mxu0 %v1650
      %2300 = vmatpush.bf16.msra.mxu0 %v1648
      %2301 = vmatpush.bf16.msra.mxu0 %v1646
      %2302 = vmatpush.bf16.msra.mxu0 %v1644
      %2303 = vmatmul.bf16.gmra.mxu0 %v627
      %v2304 = vpop.f32.mrf.mxu0
      %v2305 = vadd.f32 %v621, %v2304
      %v2306 = vpop.f32.mrf.mxu0
      %2307 = vdwg.mxu0
      %2308 = vmatpush.bf16.msra.mxu0 %v1674
      %2309 = vmatpush.bf16.msra.mxu0 %v1672
      %2310 = vmatpush.bf16.msra.mxu0 %v1670
      %2311 = vmatpush.bf16.msra.mxu0 %v1668
      %2312 = vmatpush.bf16.msra.mxu0 %v1666
      %2313 = vmatpush.bf16.msra.mxu0 %v1664
      %2314 = vmatpush.bf16.msra.mxu0 %v1662
      %2315 = vmatpush.bf16.msra.mxu0 %v1660
      %2316 = vmatmul.bf16.gmra.mxu0 %v628
      %v2317 = vpop.f32.mrf.mxu0
      %v2318 = vadd.f32 %v2305, %v2317
      %v2319 = vpop.f32.mrf.mxu0
      %2320 = vdwg.mxu0
      %2321 = vmatpush.bf16.msra.mxu0 %v1690
      %2322 = vmatpush.bf16.msra.mxu0 %v1688
      %2323 = vmatpush.bf16.msra.mxu0 %v1686
      %2324 = vmatpush.bf16.msra.mxu0 %v1684
      %2325 = vmatpush.bf16.msra.mxu0 %v1682
      %2326 = vmatpush.bf16.msra.mxu0 %v1680
      %2327 = vmatpush.bf16.msra.mxu0 %v1678
      %2328 = vmatpush.bf16.msra.mxu0 %v1676
      %2329 = vmatmul.bf16.gmra.mxu0 %v629
      %v2330 = vpop.f32.mrf.mxu0
      %v2331 = vadd.f32 %v2318, %v2330
      %v2332 = vpop.f32.mrf.mxu0
      %2333 = vdwg.mxu0
      %2334 = vmatpush.bf16.msra.mxu0 %v1706
      %2335 = vmatpush.bf16.msra.mxu0 %v1704
      %2336 = vmatpush.bf16.msra.mxu0 %v1702
      %2337 = vmatpush.bf16.msra.mxu0 %v1700
      %2338 = vmatpush.bf16.msra.mxu0 %v1698
      %2339 = vmatpush.bf16.msra.mxu0 %v1696
      %2340 = vmatpush.bf16.msra.mxu0 %v1694
      %2341 = vmatpush.bf16.msra.mxu0 %v1692
      %2342 = vmatmul.bf16.gmra.mxu0 %v630
      %v2343 = vpop.f32.mrf.mxu0
      %v2344 = vadd.f32 %v2331, %v2343
      %v2345 = vpop.f32.mrf.mxu0
      %2346 = vdwg.mxu0
      %2347 = vmatpush.bf16.msra.mxu0 %v1722
      %2348 = vmatpush.bf16.msra.mxu0 %v1720
      %2349 = vmatpush.bf16.msra.mxu0 %v1718
      %2350 = vmatpush.bf16.msra.mxu0 %v1716
      %2351 = vmatpush.bf16.msra.mxu0 %v1714
      %2352 = vmatpush.bf16.msra.mxu0 %v1712
      %2353 = vmatpush.bf16.msra.mxu0 %v1710
      %2354 = vmatpush.bf16.msra.mxu0 %v1708
      %2355 = vmatmul.bf16.gmra.mxu0 %v631
      %v2356 = vpop.f32.mrf.mxu0
      %v2357 = vadd.f32 %v2344, %v2356
      %v2358 = vpop.f32.mrf.mxu0
      %2359 = vdwg.mxu0
      %2360 = vmatpush.bf16.msra.mxu0 %v1738
      %2361 = vmatpush.bf16.msra.mxu0 %v1736
      %2362 = vmatpush.bf16.msra.mxu0 %v1734
      %2363 = vmatpush.bf16.msra.mxu0 %v1732
      %2364 = vmatpush.bf16.msra.mxu0 %v1730
      %2365 = vmatpush.bf16.msra.mxu0 %v1728
      %2366 = vmatpush.bf16.msra.mxu0 %v1726
      %2367 = vmatpush.bf16.msra.mxu0 %v1724
      %2368 = vmatmul.bf16.gmra.mxu0 %v632
      %v2369 = vpop.f32.mrf.mxu0
      %v2370 = vadd.f32 %v2357, %v2369
      %v2371 = vpop.f32.mrf.mxu0
      %2372 = vdwg.mxu0
      %2373 = vmatpush.bf16.msra.mxu0 %v1754
      %2374 = vmatpush.bf16.msra.mxu0 %v1752
      %2375 = vmatpush.bf16.msra.mxu0 %v1750
      %2376 = vmatpush.bf16.msra.mxu0 %v1748
      %2377 = vmatpush.bf16.msra.mxu0 %v1746
      %2378 = vmatpush.bf16.msra.mxu0 %v1744
      %2379 = vmatpush.bf16.msra.mxu0 %v1742
      %2380 = vmatpush.bf16.msra.mxu0 %v1740
      %2381 = vmatmul.bf16.gmra.mxu0 %v633
      %v2382 = vpop.f32.mrf.mxu0
      %v2383 = vadd.f32 %v2370, %v2382
      %v2384 = vpop.f32.mrf.mxu0
      %2385 = vdwg.mxu0
      %2386 = vmatpush.bf16.msra.mxu0 %v1770
      %2387 = vmatpush.bf16.msra.mxu0 %v1768
      %2388 = vmatpush.bf16.msra.mxu0 %v1766
      %2389 = vmatpush.bf16.msra.mxu0 %v1764
      %2390 = vmatpush.bf16.msra.mxu0 %v1762
      %2391 = vmatpush.bf16.msra.mxu0 %v1760
      %2392 = vmatpush.bf16.msra.mxu0 %v1758
      %2393 = vmatpush.bf16.msra.mxu0 %v1756
      %2394 = vmatmul.bf16.gmra.mxu0 %v634
      %v2395 = vpop.f32.mrf.mxu0
      %v2396 = vadd.f32 %v2383, %v2395
      %v2397 = vpop.f32.mrf.mxu0
      %2398 = vdwg.mxu0
      %2399 = vmatpush.bf16.msra.mxu0 %v1786
      %2400 = vmatpush.bf16.msra.mxu0 %v1784
      %2401 = vmatpush.bf16.msra.mxu0 %v1782
      %2402 = vmatpush.bf16.msra.mxu0 %v1780
      %2403 = vmatpush.bf16.msra.mxu0 %v1778
      %2404 = vmatpush.bf16.msra.mxu0 %v1776
      %2405 = vmatpush.bf16.msra.mxu0 %v1774
      %2406 = vmatpush.bf16.msra.mxu0 %v1772
      %2407 = vmatmul.bf16.gmra.mxu0 %v637
      %v2408 = vpop.f32.mrf.mxu0
      %v2409 = vadd.f32 %v2396, %v2408
      %v2410 = vpop.f32.mrf.mxu0
      %2411 = vdwg.mxu0
      %2412 = vmatpush.bf16.msra.mxu0 %v1802
      %2413 = vmatpush.bf16.msra.mxu0 %v1800
      %2414 = vmatpush.bf16.msra.mxu0 %v1798
      %2415 = vmatpush.bf16.msra.mxu0 %v1796
      %2416 = vmatpush.bf16.msra.mxu0 %v1794
      %2417 = vmatpush.bf16.msra.mxu0 %v1792
      %2418 = vmatpush.bf16.msra.mxu0 %v1790
      %2419 = vmatpush.bf16.msra.mxu0 %v1788
      %2420 = vmatmul.bf16.gmra.mxu0 %v638
      %v2421 = vpop.f32.mrf.mxu0
      %v2422 = vadd.f32 %v2409, %v2421
      %v2423 = vpop.f32.mrf.mxu0
      %2424 = vdwg.mxu0
      %2425 = vmatpush.bf16.msra.mxu0 %v1818
      %2426 = vmatpush.bf16.msra.mxu0 %v1816
      %2427 = vmatpush.bf16.msra.mxu0 %v1814
      %2428 = vmatpush.bf16.msra.mxu0 %v1812
      %2429 = vmatpush.bf16.msra.mxu0 %v1810
      %2430 = vmatpush.bf16.msra.mxu0 %v1808
      %2431 = vmatpush.bf16.msra.mxu0 %v1806
      %2432 = vmatpush.bf16.msra.mxu0 %v1804
      %2433 = vmatmul.bf16.gmra.mxu0 %v639
      %v2434 = vpop.f32.mrf.mxu0
      %v2435 = vadd.f32 %v2422, %v2434
      %v2436 = vpop.f32.mrf.mxu0
      %2437 = vdwg.mxu0
      %2438 = vmatpush.bf16.msra.mxu0 %v1834
      %2439 = vmatpush.bf16.msra.mxu0 %v1832
      %2440 = vmatpush.bf16.msra.mxu0 %v1830
      %2441 = vmatpush.bf16.msra.mxu0 %v1828
      %2442 = vmatpush.bf16.msra.mxu0 %v1826
      %2443 = vmatpush.bf16.msra.mxu0 %v1824
      %2444 = vmatpush.bf16.msra.mxu0 %v1822
      %2445 = vmatpush.bf16.msra.mxu0 %v1820
      %2446 = vmatmul.bf16.gmra.mxu0 %v640
      %v2447 = vpop.f32.mrf.mxu0
      %v2448 = vadd.f32 %v2435, %v2447
      %v2449 = vpop.f32.mrf.mxu0
      %2450 = vdwg.mxu0
      %2451 = vmatpush.bf16.msra.mxu0 %v1850
      %2452 = vmatpush.bf16.msra.mxu0 %v1848
      %2453 = vmatpush.bf16.msra.mxu0 %v1846
      %2454 = vmatpush.bf16.msra.mxu0 %v1844
      %2455 = vmatpush.bf16.msra.mxu0 %v1842
      %2456 = vmatpush.bf16.msra.mxu0 %v1840
      %2457 = vmatpush.bf16.msra.mxu0 %v1838
      %2458 = vmatpush.bf16.msra.mxu0 %v1836
      %2459 = vmatmul.bf16.gmra.mxu0 %v641
      %v2460 = vpop.f32.mrf.mxu0
      %v2461 = vadd.f32 %v2448, %v2460
      %v2462 = vpop.f32.mrf.mxu0
      %2463 = vdwg.mxu0
      %2464 = vmatpush.bf16.msra.mxu0 %v1866
      %2465 = vmatpush.bf16.msra.mxu0 %v1864
      %2466 = vmatpush.bf16.msra.mxu0 %v1862
      %2467 = vmatpush.bf16.msra.mxu0 %v1860
      %2468 = vmatpush.bf16.msra.mxu0 %v1858
      %2469 = vmatpush.bf16.msra.mxu0 %v1856
      %2470 = vmatpush.bf16.msra.mxu0 %v1854
      %2471 = vmatpush.bf16.msra.mxu0 %v1852
      %2472 = vmatmul.bf16.gmra.mxu0 %v642
      %v2473 = vpop.f32.mrf.mxu0
      %v2474 = vadd.f32 %v2461, %v2473
      %v2475 = vpop.f32.mrf.mxu0
      %2476 = vdwg.mxu0
      %2477 = vmatpush.bf16.msra.mxu0 %v1882
      %2478 = vmatpush.bf16.msra.mxu0 %v1880
      %2479 = vmatpush.bf16.msra.mxu0 %v1878
      %2480 = vmatpush.bf16.msra.mxu0 %v1876
      %2481 = vmatpush.bf16.msra.mxu0 %v1874
      %2482 = vmatpush.bf16.msra.mxu0 %v1872
      %2483 = vmatpush.bf16.msra.mxu0 %v1870
      %2484 = vmatpush.bf16.msra.mxu0 %v1868
      %2485 = vmatmul.bf16.gmra.mxu0 %v643
      %v2486 = vpop.f32.mrf.mxu0
      %v2487 = vadd.f32 %v2474, %v2486
      %v2488 = vpop.f32.mrf.mxu0
      %2489 = vdwg.mxu0
      %2490 = vmatpush.bf16.msra.mxu0 %v1898
      %2491 = vmatpush.bf16.msra.mxu0 %v1896
      %2492 = vmatpush.bf16.msra.mxu0 %v1894
      %2493 = vmatpush.bf16.msra.mxu0 %v1892
      %2494 = vmatpush.bf16.msra.mxu0 %v1890
      %2495 = vmatpush.bf16.msra.mxu0 %v1888
      %2496 = vmatpush.bf16.msra.mxu0 %v1886
      %2497 = vmatpush.bf16.msra.mxu0 %v1884
      %2498 = vmatmul.bf16.gmra.mxu0 %v644
      %v2499 = vpop.f32.mrf.mxu0
      %v2500 = vadd.f32 %v2487, %v2499
      %v2501 = vpop.f32.mrf.mxu0
      %2502 = vdwg.mxu0
      %2503 = vmatpush.bf16.msra.mxu0 %v1914
      %2504 = vmatpush.bf16.msra.mxu0 %v1912
      %2505 = vmatpush.bf16.msra.mxu0 %v1910
      %2506 = vmatpush.bf16.msra.mxu0 %v1908
      %2507 = vmatpush.bf16.msra.mxu0 %v1906
      %2508 = vmatpush.bf16.msra.mxu0 %v1904
      %2509 = vmatpush.bf16.msra.mxu0 %v1902
      %2510 = vmatpush.bf16.msra.mxu0 %v1900
      %2511 = vmatmul.bf16.gmra.mxu0 %v647
      %v2512 = vpop.f32.mrf.mxu0
      %v2513 = vadd.f32 %v2500, %v2512
      %v2514 = vpop.f32.mrf.mxu0
      %2515 = vdwg.mxu0
      %2516 = vmatpush.bf16.msra.mxu0 %v1930
      %2517 = vmatpush.bf16.msra.mxu0 %v1928
      %2518 = vmatpush.bf16.msra.mxu0 %v1926
      %2519 = vmatpush.bf16.msra.mxu0 %v1924
      %2520 = vmatpush.bf16.msra.mxu0 %v1922
      %2521 = vmatpush.bf16.msra.mxu0 %v1920
      %2522 = vmatpush.bf16.msra.mxu0 %v1918
      %2523 = vmatpush.bf16.msra.mxu0 %v1916
      %2524 = vmatmul.bf16.gmra.mxu0 %v648
      %v2525 = vpop.f32.mrf.mxu0
      %v2526 = vadd.f32 %v2513, %v2525
      %v2527 = vpop.f32.mrf.mxu0
      %2528 = vdwg.mxu0
      %2529 = vmatpush.bf16.msra.mxu0 %v1946
      %2530 = vmatpush.bf16.msra.mxu0 %v1944
      %2531 = vmatpush.bf16.msra.mxu0 %v1942
      %2532 = vmatpush.bf16.msra.mxu0 %v1940
      %2533 = vmatpush.bf16.msra.mxu0 %v1938
      %2534 = vmatpush.bf16.msra.mxu0 %v1936
      %2535 = vmatpush.bf16.msra.mxu0 %v1934
      %2536 = vmatpush.bf16.msra.mxu0 %v1932
      %2537 = vmatmul.bf16.gmra.mxu0 %v649
      %v2538 = vpop.f32.mrf.mxu0
      %v2539 = vadd.f32 %v2526, %v2538
      %v2540 = vpop.f32.mrf.mxu0
      %2541 = vdwg.mxu0
      %2542 = vmatpush.bf16.msra.mxu0 %v1962
      %2543 = vmatpush.bf16.msra.mxu0 %v1960
      %2544 = vmatpush.bf16.msra.mxu0 %v1958
      %2545 = vmatpush.bf16.msra.mxu0 %v1956
      %2546 = vmatpush.bf16.msra.mxu0 %v1954
      %2547 = vmatpush.bf16.msra.mxu0 %v1952
      %2548 = vmatpush.bf16.msra.mxu0 %v1950
      %2549 = vmatpush.bf16.msra.mxu0 %v1948
      %2550 = vmatmul.bf16.gmra.mxu0 %v650
      %v2551 = vpop.f32.mrf.mxu0
      %v2552 = vadd.f32 %v2539, %v2551
      %v2553 = vpop.f32.mrf.mxu0
      %2554 = vdwg.mxu0
      %2555 = vmatpush.bf16.msra.mxu0 0
      %2556 = vmatpush.bf16.msra.mxu0 0
      %2557 = vmatpush.bf16.msra.mxu0 0
      %2558 = vmatpush.bf16.msra.mxu0 0
      %2559 = vmatpush.bf16.msra.mxu0 0
      %2560 = vmatpush.bf16.msra.mxu0 0
      %2561 = vmatpush.bf16.msra.mxu0 %v1966
      %2562 = vmatpush.bf16.msra.mxu0 %v1964
      %2563 = vmatmul.bf16.gmra.mxu0 %v2293
      %v2564 = vpop.f32.mrf.mxu0
      %v2565 = vadd.f32 %v2552, %v2564
      %v2566 = vpop.f32.mrf.mxu0
      %2567 = vdwg.mxu0
      %2568 = vmatpush.bf16.msra.mxu0 %v1659
      %2569 = vmatpush.bf16.msra.mxu0 %v1657
      %2570 = vmatpush.bf16.msra.mxu0 %v1655
      %2571 = vmatpush.bf16.msra.mxu0 %v1653
      %2572 = vmatpush.bf16.msra.mxu0 %v1651
      %2573 = vmatpush.bf16.msra.mxu0 %v1649
      %2574 = vmatpush.bf16.msra.mxu0 %v1647
      %2575 = vmatpush.bf16.msra.mxu0 %v1645
      %2576 = vmatmul.bf16.gmra.mxu0 %v627
      %v2577 = vpop.f32.mrf.mxu0
      %v2578 = vadd.f32 %v622, %v2577
      %v2579 = vpop.f32.mrf.mxu0
      %2580 = vdwg.mxu0
      %2581 = vmatpush.bf16.msra.mxu0 %v1675
      %2582 = vmatpush.bf16.msra.mxu0 %v1673
      %2583 = vmatpush.bf16.msra.mxu0 %v1671
      %2584 = vmatpush.bf16.msra.mxu0 %v1669
      %2585 = vmatpush.bf16.msra.mxu0 %v1667
      %2586 = vmatpush.bf16.msra.mxu0 %v1665
      %2587 = vmatpush.bf16.msra.mxu0 %v1663
      %2588 = vmatpush.bf16.msra.mxu0 %v1661
      %2589 = vmatmul.bf16.gmra.mxu0 %v628
      %v2590 = vpop.f32.mrf.mxu0
      %v2591 = vadd.f32 %v2578, %v2590
      %v2592 = vpop.f32.mrf.mxu0
      %2593 = vdwg.mxu0
      %2594 = vmatpush.bf16.msra.mxu0 %v1691
      %2595 = vmatpush.bf16.msra.mxu0 %v1689
      %2596 = vmatpush.bf16.msra.mxu0 %v1687
      %2597 = vmatpush.bf16.msra.mxu0 %v1685
      %2598 = vmatpush.bf16.msra.mxu0 %v1683
      %2599 = vmatpush.bf16.msra.mxu0 %v1681
      %2600 = vmatpush.bf16.msra.mxu0 %v1679
      %2601 = vmatpush.bf16.msra.mxu0 %v1677
      %2602 = vmatmul.bf16.gmra.mxu0 %v629
      %v2603 = vpop.f32.mrf.mxu0
      %v2604 = vadd.f32 %v2591, %v2603
      %v2605 = vpop.f32.mrf.mxu0
      %2606 = vdwg.mxu0
      %2607 = vmatpush.bf16.msra.mxu0 %v1707
      %2608 = vmatpush.bf16.msra.mxu0 %v1705
      %2609 = vmatpush.bf16.msra.mxu0 %v1703
      %2610 = vmatpush.bf16.msra.mxu0 %v1701
      %2611 = vmatpush.bf16.msra.mxu0 %v1699
      %2612 = vmatpush.bf16.msra.mxu0 %v1697
      %2613 = vmatpush.bf16.msra.mxu0 %v1695
      %2614 = vmatpush.bf16.msra.mxu0 %v1693
      %2615 = vmatmul.bf16.gmra.mxu0 %v630
      %v2616 = vpop.f32.mrf.mxu0
      %v2617 = vadd.f32 %v2604, %v2616
      %v2618 = vpop.f32.mrf.mxu0
      %2619 = vdwg.mxu0
      %2620 = vmatpush.bf16.msra.mxu0 %v1723
      %2621 = vmatpush.bf16.msra.mxu0 %v1721
      %2622 = vmatpush.bf16.msra.mxu0 %v1719
      %2623 = vmatpush.bf16.msra.mxu0 %v1717
      %2624 = vmatpush.bf16.msra.mxu0 %v1715
      %2625 = vmatpush.bf16.msra.mxu0 %v1713
      %2626 = vmatpush.bf16.msra.mxu0 %v1711
      %2627 = vmatpush.bf16.msra.mxu0 %v1709
      %2628 = vmatmul.bf16.gmra.mxu0 %v631
      %v2629 = vpop.f32.mrf.mxu0
      %v2630 = vadd.f32 %v2617, %v2629
      %v2631 = vpop.f32.mrf.mxu0
      %2632 = vdwg.mxu0
      %2633 = vmatpush.bf16.msra.mxu0 %v1739
      %2634 = vmatpush.bf16.msra.mxu0 %v1737
      %2635 = vmatpush.bf16.msra.mxu0 %v1735
      %2636 = vmatpush.bf16.msra.mxu0 %v1733
      %2637 = vmatpush.bf16.msra.mxu0 %v1731
      %2638 = vmatpush.bf16.msra.mxu0 %v1729
      %2639 = vmatpush.bf16.msra.mxu0 %v1727
      %2640 = vmatpush.bf16.msra.mxu0 %v1725
      %2641 = vmatmul.bf16.gmra.mxu0 %v632
      %v2642 = vpop.f32.mrf.mxu0
      %v2643 = vadd.f32 %v2630, %v2642
      %v2644 = vpop.f32.mrf.mxu0
      %2645 = vdwg.mxu0
      %2646 = vmatpush.bf16.msra.mxu0 %v1755
      %2647 = vmatpush.bf16.msra.mxu0 %v1753
      %2648 = vmatpush.bf16.msra.mxu0 %v1751
      %2649 = vmatpush.bf16.msra.mxu0 %v1749
      %2650 = vmatpush.bf16.msra.mxu0 %v1747
      %2651 = vmatpush.bf16.msra.mxu0 %v1745
      %2652 = vmatpush.bf16.msra.mxu0 %v1743
      %2653 = vmatpush.bf16.msra.mxu0 %v1741
      %2654 = vmatmul.bf16.gmra.mxu0 %v633
      %v2655 = vpop.f32.mrf.mxu0
      %v2656 = vadd.f32 %v2643, %v2655
      %v2657 = vpop.f32.mrf.mxu0
      %2658 = vdwg.mxu0
      %2659 = vmatpush.bf16.msra.mxu0 %v1771
      %2660 = vmatpush.bf16.msra.mxu0 %v1769
      %2661 = vmatpush.bf16.msra.mxu0 %v1767
      %2662 = vmatpush.bf16.msra.mxu0 %v1765
      %2663 = vmatpush.bf16.msra.mxu0 %v1763
      %2664 = vmatpush.bf16.msra.mxu0 %v1761
      %2665 = vmatpush.bf16.msra.mxu0 %v1759
      %2666 = vmatpush.bf16.msra.mxu0 %v1757
      %2667 = vmatmul.bf16.gmra.mxu0 %v634
      %v2668 = vpop.f32.mrf.mxu0
      %v2669 = vadd.f32 %v2656, %v2668
      %v2670 = vpop.f32.mrf.mxu0
      %2671 = vdwg.mxu0
      %2672 = vmatpush.bf16.msra.mxu0 %v1787
      %2673 = vmatpush.bf16.msra.mxu0 %v1785
      %2674 = vmatpush.bf16.msra.mxu0 %v1783
      %2675 = vmatpush.bf16.msra.mxu0 %v1781
      %2676 = vmatpush.bf16.msra.mxu0 %v1779
      %2677 = vmatpush.bf16.msra.mxu0 %v1777
      %2678 = vmatpush.bf16.msra.mxu0 %v1775
      %2679 = vmatpush.bf16.msra.mxu0 %v1773
      %2680 = vmatmul.bf16.gmra.mxu0 %v637
      %v2681 = vpop.f32.mrf.mxu0
      %v2682 = vadd.f32 %v2669, %v2681
      %v2683 = vpop.f32.mrf.mxu0
      %2684 = vdwg.mxu0
      %2685 = vmatpush.bf16.msra.mxu0 %v1803
      %2686 = vmatpush.bf16.msra.mxu0 %v1801
      %2687 = vmatpush.bf16.msra.mxu0 %v1799
      %2688 = vmatpush.bf16.msra.mxu0 %v1797
      %2689 = vmatpush.bf16.msra.mxu0 %v1795
      %2690 = vmatpush.bf16.msra.mxu0 %v1793
      %2691 = vmatpush.bf16.msra.mxu0 %v1791
      %2692 = vmatpush.bf16.msra.mxu0 %v1789
      %2693 = vmatmul.bf16.gmra.mxu0 %v638
      %v2694 = vpop.f32.mrf.mxu0
      %v2695 = vadd.f32 %v2682, %v2694
      %v2696 = vpop.f32.mrf.mxu0
      %2697 = vdwg.mxu0
      %2698 = vmatpush.bf16.msra.mxu0 %v1819
      %2699 = vmatpush.bf16.msra.mxu0 %v1817
      %2700 = vmatpush.bf16.msra.mxu0 %v1815
      %2701 = vmatpush.bf16.msra.mxu0 %v1813
      %2702 = vmatpush.bf16.msra.mxu0 %v1811
      %2703 = vmatpush.bf16.msra.mxu0 %v1809
      %2704 = vmatpush.bf16.msra.mxu0 %v1807
      %2705 = vmatpush.bf16.msra.mxu0 %v1805
      %2706 = vmatmul.bf16.gmra.mxu0 %v639
      %v2707 = vpop.f32.mrf.mxu0
      %v2708 = vadd.f32 %v2695, %v2707
      %v2709 = vpop.f32.mrf.mxu0
      %2710 = vdwg.mxu0
      %2711 = vmatpush.bf16.msra.mxu0 %v1835
      %2712 = vmatpush.bf16.msra.mxu0 %v1833
      %2713 = vmatpush.bf16.msra.mxu0 %v1831
      %2714 = vmatpush.bf16.msra.mxu0 %v1829
      %2715 = vmatpush.bf16.msra.mxu0 %v1827
      %2716 = vmatpush.bf16.msra.mxu0 %v1825
      %2717 = vmatpush.bf16.msra.mxu0 %v1823
      %2718 = vmatpush.bf16.msra.mxu0 %v1821
      %2719 = vmatmul.bf16.gmra.mxu0 %v640
      %v2720 = vpop.f32.mrf.mxu0
      %v2721 = vadd.f32 %v2708, %v2720
      %v2722 = vpop.f32.mrf.mxu0
      %2723 = vdwg.mxu0
      %2724 = vmatpush.bf16.msra.mxu0 %v1851
      %2725 = vmatpush.bf16.msra.mxu0 %v1849
      %2726 = vmatpush.bf16.msra.mxu0 %v1847
      %2727 = vmatpush.bf16.msra.mxu0 %v1845
      %2728 = vmatpush.bf16.msra.mxu0 %v1843
      %2729 = vmatpush.bf16.msra.mxu0 %v1841
      %2730 = vmatpush.bf16.msra.mxu0 %v1839
      %2731 = vmatpush.bf16.msra.mxu0 %v1837
      %2732 = vmatmul.bf16.gmra.mxu0 %v641
      %v2733 = vpop.f32.mrf.mxu0
      %v2734 = vadd.f32 %v2721, %v2733
      %v2735 = vpop.f32.mrf.mxu0
      %2736 = vdwg.mxu0
      %2737 = vmatpush.bf16.msra.mxu0 %v1867
      %2738 = vmatpush.bf16.msra.mxu0 %v1865
      %2739 = vmatpush.bf16.msra.mxu0 %v1863
      %2740 = vmatpush.bf16.msra.mxu0 %v1861
      %2741 = vmatpush.bf16.msra.mxu0 %v1859
      %2742 = vmatpush.bf16.msra.mxu0 %v1857
      %2743 = vmatpush.bf16.msra.mxu0 %v1855
      %2744 = vmatpush.bf16.msra.mxu0 %v1853
      %2745 = vmatmul.bf16.gmra.mxu0 %v642
      %v2746 = vpop.f32.mrf.mxu0
      %v2747 = vadd.f32 %v2734, %v2746
      %v2748 = vpop.f32.mrf.mxu0
      %2749 = vdwg.mxu0
      %2750 = vmatpush.bf16.msra.mxu0 %v1883
      %2751 = vmatpush.bf16.msra.mxu0 %v1881
      %2752 = vmatpush.bf16.msra.mxu0 %v1879
      %2753 = vmatpush.bf16.msra.mxu0 %v1877
      %2754 = vmatpush.bf16.msra.mxu0 %v1875
      %2755 = vmatpush.bf16.msra.mxu0 %v1873
      %2756 = vmatpush.bf16.msra.mxu0 %v1871
      %2757 = vmatpush.bf16.msra.mxu0 %v1869
      %2758 = vmatmul.bf16.gmra.mxu0 %v643
      %v2759 = vpop.f32.mrf.mxu0
      %v2760 = vadd.f32 %v2747, %v2759
      %v2761 = vpop.f32.mrf.mxu0
      %2762 = vdwg.mxu0
      %2763 = vmatpush.bf16.msra.mxu0 %v1899
      %2764 = vmatpush.bf16.msra.mxu0 %v1897
      %2765 = vmatpush.bf16.msra.mxu0 %v1895
      %2766 = vmatpush.bf16.msra.mxu0 %v1893
      %2767 = vmatpush.bf16.msra.mxu0 %v1891
      %2768 = vmatpush.bf16.msra.mxu0 %v1889
      %2769 = vmatpush.bf16.msra.mxu0 %v1887
      %2770 = vmatpush.bf16.msra.mxu0 %v1885
      %2771 = vmatmul.bf16.gmra.mxu0 %v644
      %v2772 = vpop.f32.mrf.mxu0
      %v2773 = vadd.f32 %v2760, %v2772
      %v2774 = vpop.f32.mrf.mxu0
      %2775 = vdwg.mxu0
      %2776 = vmatpush.bf16.msra.mxu0 %v1915
      %2777 = vmatpush.bf16.msra.mxu0 %v1913
      %2778 = vmatpush.bf16.msra.mxu0 %v1911
      %2779 = vmatpush.bf16.msra.mxu0 %v1909
      %2780 = vmatpush.bf16.msra.mxu0 %v1907
      %2781 = vmatpush.bf16.msra.mxu0 %v1905
      %2782 = vmatpush.bf16.msra.mxu0 %v1903
      %2783 = vmatpush.bf16.msra.mxu0 %v1901
      %2784 = vmatmul.bf16.gmra.mxu0 %v647
      %v2785 = vpop.f32.mrf.mxu0
      %v2786 = vadd.f32 %v2773, %v2785
      %v2787 = vpop.f32.mrf.mxu0
      %2788 = vdwg.mxu0
      %2789 = vmatpush.bf16.msra.mxu0 %v1931
      %2790 = vmatpush.bf16.msra.mxu0 %v1929
      %2791 = vmatpush.bf16.msra.mxu0 %v1927
      %2792 = vmatpush.bf16.msra.mxu0 %v1925
      %2793 = vmatpush.bf16.msra.mxu0 %v1923
      %2794 = vmatpush.bf16.msra.mxu0 %v1921
      %2795 = vmatpush.bf16.msra.mxu0 %v1919
      %2796 = vmatpush.bf16.msra.mxu0 %v1917
      %2797 = vmatmul.bf16.gmra.mxu0 %v648
      %v2798 = vpop.f32.mrf.mxu0
      %v2799 = vadd.f32 %v2786, %v2798
      %v2800 = vpop.f32.mrf.mxu0
      %2801 = vdwg.mxu0
      %2802 = vmatpush.bf16.msra.mxu0 %v1947
      %2803 = vmatpush.bf16.msra.mxu0 %v1945
      %2804 = vmatpush.bf16.msra.mxu0 %v1943
      %2805 = vmatpush.bf16.msra.mxu0 %v1941
      %2806 = vmatpush.bf16.msra.mxu0 %v1939
      %2807 = vmatpush.bf16.msra.mxu0 %v1937
      %2808 = vmatpush.bf16.msra.mxu0 %v1935
      %2809 = vmatpush.bf16.msra.mxu0 %v1933
      %2810 = vmatmul.bf16.gmra.mxu0 %v649
      %v2811 = vpop.f32.mrf.mxu0
      %v2812 = vadd.f32 %v2799, %v2811
      %v2813 = vpop.f32.mrf.mxu0
      %2814 = vdwg.mxu0
      %2815 = vmatpush.bf16.msra.mxu0 %v1963
      %2816 = vmatpush.bf16.msra.mxu0 %v1961
      %2817 = vmatpush.bf16.msra.mxu0 %v1959
      %2818 = vmatpush.bf16.msra.mxu0 %v1957
      %2819 = vmatpush.bf16.msra.mxu0 %v1955
      %2820 = vmatpush.bf16.msra.mxu0 %v1953
      %2821 = vmatpush.bf16.msra.mxu0 %v1951
      %2822 = vmatpush.bf16.msra.mxu0 %v1949
      %2823 = vmatmul.bf16.gmra.mxu0 %v650
      %v2824 = vpop.f32.mrf.mxu0
      %v2825 = vadd.f32 %v2812, %v2824
      %v2826 = vpop.f32.mrf.mxu0
      %2827 = vdwg.mxu0
      %2828 = vmatpush.bf16.msra.mxu0 0
      %2829 = vmatpush.bf16.msra.mxu0 0
      %2830 = vmatpush.bf16.msra.mxu0 0
      %2831 = vmatpush.bf16.msra.mxu0 0
      %2832 = vmatpush.bf16.msra.mxu0 0
      %2833 = vmatpush.bf16.msra.mxu0 0
      %2834 = vmatpush.bf16.msra.mxu0 %v1967
      %2835 = vmatpush.bf16.msra.mxu0 %v1965
      %2836 = vmatmul.bf16.gmra.mxu0 %v2293
      %v2837 = vpop.f32.mrf.mxu0
      %v2838 = vadd.f32 %v2825, %v2837
      %v2839 = vpop.f32.mrf.mxu0
      %2840 = vdwg.mxu0
      %v2841 = vmax.f32 %v2565, 0.0
      %v2842 = vmax.f32 %v2838, 0.0
      %v2843 = vpack.c.bf16 %v2841, %v2841
      %v2844 = vpack.c.bf16 %v2842, %v2842
      %v2845 = vld [vmem:[%s283] sm:$0xf]
      %v2846 = vld [vmem:[%s283 + $0x4] sm:$0xf]
      %v2847 = vld [vmem:[%s283 + $0x8] sm:$0xf]
      %v2848 = vld [vmem:[%s283 + $0xc] sm:$0xf]
      %v2849 = vld [vmem:[%s283 + $0x10] sm:$0xf]
      %v2850 = vld [vmem:[%s283 + $0x14] sm:$0xf]
      %v2851 = vld [vmem:[%s283 + $0x18] sm:$0xf]
      %v2852 = vld [vmem:[%s283 + $0x1c] sm:$0xf]
      %v2853 = vld [vmem:[%s283 + $0x20] sm:$0xf]
      %v2854 = vld [vmem:[%s283 + $0x24] sm:$0xf]
      %v2855 = vld [vmem:[%s283 + $0x28] sm:$0xf]
      %v2856 = vld [vmem:[%s283 + $0x2c] sm:$0xf]
      %v2857 = vld [vmem:[%s283 + $0x30] sm:$0xf]
      %v2858 = vld [vmem:[%s283 + $0x34] sm:$0xf]
      %v2859 = vld [vmem:[%s283 + $0x38] sm:$0xf]
      %v2860 = vld [vmem:[%s283 + $0x3c] sm:$0xf]
      %v2861 = vld [vmem:[%s283 + $0x40] sm:$0xf]
      %v2862 = vld [vmem:[%s283 + $0x44] sm:$0xf]
      %v2863 = vld [vmem:[%s283 + $0x48] sm:$0xf]
      %v2864 = vld [vmem:[%s283 + $0x4c] sm:$0xf]
      %v2865 = vld [vmem:[%s283 + $0x50] sm:$0xf]
      %v2866 = vld [vmem:[%s283 + $0x54] sm:$0xf]
      %v2867 = vld [vmem:[%s283 + $0x58] sm:$0xf]
      %v2868 = vld [vmem:[%s283 + $0x5c] sm:$0xf]
      %v2869 = vld [vmem:[%s283 + $0x60] sm:$0xf]
      %v2870 = vld [vmem:[%s283 + $0x64] sm:$0xf]
      %v2871 = vld [vmem:[%s283 + $0x68] sm:$0xf]
      %v2872 = vld [vmem:[%s283 + $0x6c] sm:$0xf]
      %v2873 = vld [vmem:[%s283 + $0x70] sm:$0xf]
      %v2874 = vld [vmem:[%s283 + $0x74] sm:$0xf]
      %v2875 = vld [vmem:[%s283 + $0x78] sm:$0xf]
      %v2876 = vld [vmem:[%s283 + $0x7c] sm:$0xf]
      %v2877 = vld [vmem:[%s286] sm:$0x1]
      %v2879 = vperm.slane %v2877, 0
      %v2913 = vunpack.c.l.b16 %v2845
      %v2914 = vunpack.c.l.b16 %v2846
      %v2915 = vunpack.c.l.b16 %v2847
      %v2916 = vunpack.c.l.b16 %v2848
      %v2917 = vunpack.c.l.b16 %v2849
      %v2918 = vunpack.c.l.b16 %v2850
      %v2919 = vunpack.c.l.b16 %v2851
      %v2920 = vunpack.c.l.b16 %v2852
      %v2921 = vunpack.c.l.b16 %v2853
      %v2922 = vunpack.c.l.b16 %v2854
      %v2923 = vunpack.c.l.b16 %v2855
      %v2924 = vunpack.c.l.b16 %v2856
      %v2925 = vunpack.c.l.b16 %v2857
      %v2926 = vunpack.c.l.b16 %v2858
      %v2927 = vunpack.c.l.b16 %v2859
      %v2928 = vunpack.c.l.b16 %v2860
      %v2929 = vunpack.c.l.b16 %v2861
      %v2930 = vunpack.c.l.b16 %v2862
      %v2931 = vunpack.c.l.b16 %v2863
      %v2932 = vunpack.c.l.b16 %v2864
      %v2933 = vunpack.c.l.b16 %v2865
      %v2934 = vunpack.c.l.b16 %v2866
      %v2935 = vunpack.c.l.b16 %v2867
      %v2936 = vunpack.c.l.b16 %v2868
      %v2937 = vunpack.c.l.b16 %v2869
      %v2938 = vunpack.c.l.b16 %v2870
      %v2939 = vunpack.c.l.b16 %v2871
      %v2940 = vunpack.c.l.b16 %v2872
      %v2941 = vunpack.c.l.b16 %v2873
      %v2942 = vunpack.c.l.b16 %v2874
      %v2943 = vunpack.c.l.b16 %v2875
      %v2944 = vunpack.c.l.b16 %v2876
      %v2945 = vpack.c.b16 %v2914, %v2913
      %v2946 = vpack.c.b16 %v2916, %v2915
      %v2947 = vpack.c.b16 %v2918, %v2917
      %v2948 = vpack.c.b16 %v2920, %v2919
      %v2949 = vpack.c.b16 %v2922, %v2921
      %v2950 = vpack.c.b16 %v2924, %v2923
      %v2951 = vpack.c.b16 %v2926, %v2925
      %v2952 = vpack.c.b16 %v2928, %v2927
      %v2953 = vpack.c.b16 %v2930, %v2929
      %v2954 = vpack.c.b16 %v2932, %v2931
      %v2955 = vpack.c.b16 %v2934, %v2933
      %v2956 = vpack.c.b16 %v2936, %v2935
      %v2957 = vpack.c.b16 %v2938, %v2937
      %v2958 = vpack.c.b16 %v2940, %v2939
      %v2959 = vpack.c.b16 %v2942, %v2941
      %v2960 = vpack.c.b16 %v2944, %v2943
      %2977 = vmatpush.bf16.msra.mxu0 %v2952
      %2978 = vmatpush.bf16.msra.mxu0 %v2951
      %2979 = vmatpush.bf16.msra.mxu0 %v2950
      %2980 = vmatpush.bf16.msra.mxu0 %v2949
      %2981 = vmatpush.bf16.msra.mxu0 %v2948
      %2982 = vmatpush.bf16.msra.mxu0 %v2947
      %2983 = vmatpush.bf16.msra.mxu0 %v2946
      %2984 = vmatpush.bf16.msra.mxu0 %v2945
      %2985 = vmatmul.bf16.gmra.mxu0 %v2843
      %v2986 = vpop.f32.mrf.mxu0
      %v2987 = vadd.f32 %v2879, %v2986
      %v2988 = vpop.f32.mrf.mxu0
      %2989 = vdwg.mxu0
      %2990 = vmatpush.bf16.msra.mxu0 %v2960
      %2991 = vmatpush.bf16.msra.mxu0 %v2959
      %2992 = vmatpush.bf16.msra.mxu0 %v2958
      %2993 = vmatpush.bf16.msra.mxu0 %v2957
      %2994 = vmatpush.bf16.msra.mxu0 %v2956
      %2995 = vmatpush.bf16.msra.mxu0 %v2955
      %2996 = vmatpush.bf16.msra.mxu0 %v2954
      %2997 = vmatpush.bf16.msra.mxu0 %v2953
      %2998 = vmatmul.bf16.gmra.mxu0 %v2844
      %v2999 = vpop.f32.mrf.mxu0
      %v3000 = vadd.f32 %v2987, %v2999
      %v3001 = vpop.f32.mrf.mxu0
      %3002 = vdwg.mxu0
      %vm3003 = vcmask 58368
      %3004 = vst.msk [vmem:[%s290] sm:$0x3] %vm3003, %v3000
      %p3005 = scmp.lt.s32.totalorder %s16, 1
      %s3006 = scalar_select %p3005, %s16, 1
      %s3007 = smul.addr %s3006, 2
      %s3008 = scalar_lea.vmem %s5, %s3007
      // Predicated region
      $region41: #{actor_critic_forward.5} parent=39 // pred_check
        %p3009 = pneg %p164
      $region42: #{actor_critic_forward.5} parent=39 // pred_check_branch
        %3011 = sbr.rel (%p3009) target = $region44
      $region43: #{actor_critic_forward.5} parent=39 // pred_region
        _
      $region44: #{actor_critic_forward.5} parent=39 // pred_fallthru
        _
    $region40: #{actor_critic_forward.5} parent=5 // pred_fallthru
      _
    %p3012 = scmp.le.s32.totalorder 2, %s11
    // Predicated region
    $region45: #{actor_critic_forward.5} parent=5 // pred_check
      %p3013 = pneg %p3012
    $region46: #{actor_critic_forward.5} parent=5 // pred_check_branch
      %3015 = sbr.rel (%p3013) target = $region48
    $region47: #{actor_critic_forward.5} parent=5 // pred_region
      %s3016 = ssub.s32 %s11, 2
      // Predicated region
      $region49: #{actor_critic_forward.5} parent=47 // pred_check
        %p3017 = pneg %p170
      $region50: #{actor_critic_forward.5} parent=47 // pred_check_branch
        %3019 = sbr.rel (%p3017) target = $region52
      $region51: #{actor_critic_forward.5} parent=47 // pred_region
        %p3020 = scmp.lt.s32.totalorder %s17, 1
        %s3021 = scalar_select %p3020, %s17, 1
        %s3022 = smul.addr %s3021, 2
        %s3023 = scalar_lea.vmem %s5, %s3022
      $region52: #{actor_critic_forward.5} parent=47 // pred_fallthru
        _
    $region48: #{actor_critic_forward.5} parent=5 // pred_fallthru
      _
  $region6: #{actor_critic_forward.5} parent=0 // loop_footer
    %s15 = sadd.s32 1, %s11
  $region7: #{actor_critic_forward.5} parent=0 // loop_footer_branch
    %10 = sbr.rel target = $region3
  $region8: #{actor_critic_forward.5} parent=0 // loop_exit
    _

</llo_original>
